<compile_context>
chip_gen: v7x
topology: tpu7x:2x2x1
jax: 0.10.0
libtpu: 0.0.40
codegen_flags: <defaults>
</compile_context>

<pallas_src>
import math

import jax
import jax.numpy as jnp
from jax.experimental import pallas as pl
from jax.experimental.pallas import tpu as pltpu

# ----------------------- small RoBERTa-like config -----------------------
VOCAB = 100
VOCAB_PAD = 128             # vocab table padded to a full lane width for one-hot matmul
PAD_IDX = 1                 # RoBERTa padding_idx
HIDDEN = 128                # hidden_size (roberta-base uses 768)
NUM_HEADS = 4
HEAD_DIM = HIDDEN // NUM_HEADS
FFN = 256                   # intermediate_size
NUM_LAYERS = 2
SEQ = 8                     # == MAX_LEN (MaxPool1d kernel size == full sequence)
POS_PAD = 128               # position table padded to lane width (only rows 0..SEQ+1 used)
BATCH = 2
NUM_CLASSES = 2
LN_EPS = 1e-5
NEG_INF = -1e9


# ----------------------------- in-kernel math -----------------------------
def _layer_norm(x, gamma, beta, eps=LN_EPS):
    mu = jnp.mean(x, axis=-1, keepdims=True)
    var = jnp.mean((x - mu) ** 2, axis=-1, keepdims=True)
    return (x - mu) * jax.lax.rsqrt(var + eps) * gamma + beta


def _gelu(x):
    # TODO(synk): nn.GELU() default is the exact erf form; the tanh approximation is used
    # here because it has a guaranteed Mosaic lowering (max abs error ~1e-3).
    return 0.5 * x * (1.0 + jnp.tanh(0.7978845608028654 * (x + 0.044715 * x * x * x)))


# ------------------------------ fused Pallas kernel ------------------------------
def fused_forward_kernel(
        ids_ref, pos_ref, kmask_ref,                      # (L,1) i32, (L,1) i32, (1,L) i32
        wtab_ref, ptab_ref, trow_ref, eg_ref, eb_ref,     # embedding tables + emb LayerNorm
        wqkv_ref, bqkv_ref, wo_ref, bo_ref, g1_ref, bt1_ref,
        wi_ref, bi_ref, w2_ref, b2_ref, g2_ref, bt2_ref,  # per-layer stacks
        cw_ref, cb_ref,                                   # classifier head
        out_ref):                                         # (1, NUM_CLASSES) f32
    L = SEQ

    # ---- embeddings via one-hot matmuls (MXU gather), fused with embedding LayerNorm ----
    ids = ids_ref[...]                                            # (L, 1) int32
    pos = pos_ref[...]                                            # (L, 1) int32
    iota = jax.lax.broadcasted_iota(jnp.int32, (L, VOCAB_PAD), 1)  # VOCAB_PAD == POS_PAD
    oh_w = (iota == ids).astype(jnp.bfloat16)                     # (L, 128)
    oh_p = (iota == pos).astype(jnp.bfloat16)                     # (L, 128)
    emb = (jnp.dot(oh_w, wtab_ref[...], preferred_element_type=jnp.float32)
           + jnp.dot(oh_p, ptab_ref[...], preferred_element_type=jnp.float32)
           + trow_ref[...])                                       # (L, H) f32
    x = _layer_norm(emb, eg_ref[...], eb_ref[...])                # (L, H) f32

    # additive attention bias built in-kernel from the int key mask: 0 on tokens, -1e9 on pads
    bias = jnp.where(kmask_ref[...] == 0, NEG_INF, 0.0)           # (1, L) f32
    scale = 1.0 / math.sqrt(HEAD_DIM)

    # ---- encoder layers, fully unrolled, weights VMEM-resident ----
    for l in range(NUM_LAYERS):
        xb = x.astype(jnp.bfloat16)
        # fused Q/K/V projection: one (L,H) @ (H,3H) matmul
        qkv = jnp.dot(xb, wqkv_ref[l], preferred_element_type=jnp.float32) + bqkv_ref[l]

        attn = jnp.zeros((L, HIDDEN), jnp.float32)
        for h in range(NUM_HEADS):
            q = qkv[:, h * HEAD_DIM:(h + 1) * HEAD_DIM]                              # (L, HD)
            k = qkv[:, HIDDEN + h * HEAD_DIM:HIDDEN + (h + 1) * HEAD_DIM]            # (L, HD)
            v = qkv[:, 2 * HIDDEN + h * HEAD_DIM:2 * HIDDEN + (h + 1) * HEAD_DIM]    # (L, HD)
            s = jnp.dot(q, k.T, preferred_element_type=jnp.float32) * scale + bias   # (L, L)
            s = s - jnp.max(s, axis=-1, keepdims=True)
            p = jnp.exp(s)
            p = p * pl.reciprocal(jnp.sum(p, axis=-1, keepdims=True), approx=True)
            ctx = jnp.dot(p, v, preferred_element_type=jnp.float32)                  # (L, HD)
            # output projection folded per-head -> no jnp.concatenate relayout
            attn = attn + jnp.dot(ctx.astype(jnp.bfloat16), wo_ref[l * NUM_HEADS + h],
                                  preferred_element_type=jnp.float32)                # (L, H)

        h1 = _layer_norm(x + attn + bo_ref[l], g1_ref[l], bt1_ref[l])
        inter = _gelu(jnp.dot(h1.astype(jnp.bfloat16), wi_ref[l],
                              preferred_element_type=jnp.float32) + bi_ref[l])
        ffn = jnp.dot(inter.astype(jnp.bfloat16), w2_ref[l],
                      preferred_element_type=jnp.float32) + b2_ref[l]
        x = _layer_norm(h1 + ffn, g2_ref[l], bt2_ref[l])

    # ---- head: MaxPool1d(MAX_LEN) over seq + Linear(H, 2) + LogSoftmax(dim=1) ----
    # (pools over all positions, incl. padded ones — matches raw MaxPool1d in the PyTorch spec)
    pooled = jnp.max(x, axis=0, keepdims=True)                                        # (1, H)
    logits = jnp.dot(pooled.astype(jnp.bfloat16), cw_ref[...],
                     preferred_element_type=jnp.float32) + cb_ref[...]                # (1, C)
    z = logits - jnp.max(logits, axis=-1, keepdims=True)
    out_ref[...] = z - jnp.log(jnp.sum(jnp.exp(z), axis=-1, keepdims=True))


# ------------------------------ pallas_call wrapper ------------------------------
def _const_spec(arr):
    zeros = (0,) * arr.ndim
    return pl.BlockSpec(arr.shape, lambda b: zeros)   # full array, fetched once (block reuse)


def transformer_classifier(input_ids, mask, params):
    """input_ids, mask: (B, L) int32.  Returns log-probs (B, 2)."""
    B, L = input_ids.shape
    mask_i = mask.astype(jnp.int32)
    # HF RoBERTa position ids: cumsum over non-pad tokens, offset by padding_idx.
    position_ids = jnp.cumsum(mask_i, axis=1) * mask_i + PAD_IDX
    ids3 = input_ids.astype(jnp.int32).reshape(B, L, 1)
    pos3 = position_ids.astype(jnp.int32).reshape(B, L, 1)
    km3 = mask_i.reshape(B, 1, L)

    weights = (params["word_tab"], params["pos_tab"], params["type_row"],
               params["emb_ln_g"], params["emb_ln_b"],
               params["wqkv"], params["bqkv"], params["wo"], params["bo"],
               params["ln1_g"], params["ln1_b"],
               params["wi"], params["bi"], params["w2"], params["b2"],
               params["ln2_g"], params["ln2_b"],
               params["cls_w"], params["cls_b"])

    in_specs = [pl.BlockSpec((None, L, 1), lambda b: (b, 0, 0)),   # input ids
                pl.BlockSpec((None, L, 1), lambda b: (b, 0, 0)),   # position ids
                pl.BlockSpec((None, 1, L), lambda b: (b, 0, 0))]   # key mask
    in_specs += [_const_spec(w) for w in weights]

    out = pl.pallas_call(
        fused_forward_kernel,
        out_shape=jax.ShapeDtypeStruct((B, 1, NUM_CLASSES), jnp.float32),
        grid=(B,),
        in_specs=in_specs,
        out_specs=pl.BlockSpec((None, 1, NUM_CLASSES), lambda b: (b, 0, 0)),
        compiler_params=pltpu.CompilerParams(
            dimension_semantics=("parallel",),           # v7x: one example per TensorCore
            vmem_limit_bytes=32 * 1024 * 1024),
    )(ids3, pos3, km3, *weights)
    return out.reshape(B, NUM_CLASSES)


# ------------------------------ parameter init (plain JAX) ------------------------------
def init_params(key):
    ks = jax.random.split(key, 4 + NUM_LAYERS)

    def nrm(k, shape):
        return 0.02 * jax.random.normal(k, shape, dtype=jnp.float32)

    word = nrm(ks[0], (VOCAB, HIDDEN))
    word_tab = jnp.pad(word, ((0, VOCAB_PAD - VOCAB), (0, 0))).astype(jnp.bfloat16)
    n_pos = SEQ + PAD_IDX + 1
    pos_t = nrm(ks[1], (n_pos, HIDDEN))
    pos_tab = jnp.pad(pos_t, ((0, POS_PAD - n_pos), (0, 0))).astype(jnp.bfloat16)

    wqkv_l, wo_l, wi_l, w2_l = [], [], [], []
    for i in range(NUM_LAYERS):
        lk = jax.random.split(ks[4 + i], 6)
        wq = nrm(lk[0], (HIDDEN, HIDDEN))
        wk = nrm(lk[1], (HIDDEN, HIDDEN))
        wv = nrm(lk[2], (HIDDEN, HIDDEN))
        wqkv_l.append(jnp.concatenate([wq, wk, wv], axis=1))                  # (H, 3H)
        wo_l.append(nrm(lk[3], (HIDDEN, HIDDEN)).reshape(NUM_HEADS, HEAD_DIM, HIDDEN))
        wi_l.append(nrm(lk[4], (HIDDEN, FFN)))
        w2_l.append(nrm(lk[5], (FFN, HIDDEN)))

    params = dict(
        word_tab=word_tab,
        pos_tab=pos_tab,
        type_row=nrm(ks[2], (1, HIDDEN)),
        emb_ln_g=jnp.ones((1, HIDDEN), jnp.float32),
        emb_ln_b=jnp.zeros((1, HIDDEN), jnp.float32),
        wqkv=jnp.stack(wqkv_l).astype(jnp.bfloat16),                          # (NL, H, 3H)
        bqkv=jnp.zeros((NUM_LAYERS, 1, 3 * HIDDEN), jnp.float32),
        wo=jnp.stack(wo_l).reshape(NUM_LAYERS * NUM_HEADS, HEAD_DIM, HIDDEN
                                   ).astype(jnp.bfloat16),                    # (NL*NH, HD, H)
        bo=jnp.zeros((NUM_LAYERS, 1, HIDDEN), jnp.float32),
        ln1_g=jnp.ones((NUM_LAYERS, 1, HIDDEN), jnp.float32),
        ln1_b=jnp.zeros((NUM_LAYERS, 1, HIDDEN), jnp.float32),
        wi=jnp.stack(wi_l).astype(jnp.bfloat16),                              # (NL, H, F)
        bi=jnp.zeros((NUM_LAYERS, 1, FFN), jnp.float32),
        w2=jnp.stack(w2_l).astype(jnp.bfloat16),                              # (NL, F, H)
        b2=jnp.zeros((NUM_LAYERS, 1, HIDDEN), jnp.float32),
        ln2_g=jnp.ones((NUM_LAYERS, 1, HIDDEN), jnp.float32),
        ln2_b=jnp.zeros((NUM_LAYERS, 1, HIDDEN), jnp.float32),
        cls_w=nrm(ks[3], (HIDDEN, NUM_CLASSES)).astype(jnp.bfloat16),
        cls_b=jnp.zeros((1, NUM_CLASSES), jnp.float32),
    )
    return params


# ----------------------------------- main -----------------------------------
if __name__ == "__main__":
    key = jax.random.PRNGKey(0)
    pkey, ikey = jax.random.split(key)
    params = init_params(pkey)

    # deterministic inputs: second example is padded (length SEQ - 3)
    input_ids = jax.random.randint(ikey, (BATCH, SEQ), 3, VOCAB, dtype=jnp.int32)
    lengths = jnp.array([SEQ, SEQ - 3], dtype=jnp.int32)
    pos = jnp.arange(SEQ, dtype=jnp.int32)[None, :]
    mask = (pos < lengths[:, None]).astype(jnp.int32)
    input_ids = jnp.where(mask == 1, input_ids, PAD_IDX)

    fwd = jax.jit(transformer_classifier)
    out = fwd(input_ids, mask, params)
    out = jax.block_until_ready(out)

    assert out.shape == (BATCH, NUM_CLASSES)
    assert bool(jnp.all(jnp.isfinite(out)))
    # rows of log_softmax output must exponentiate-sum to ~1
    assert bool(jnp.allclose(jnp.sum(jnp.exp(out), axis=1), 1.0, atol=1e-3))
    print("KERNEL_OK")
</pallas_src>

<mosaic_0001>
module attributes {stable_mosaic.version = 11 : i64} {
  func.func @fused_forward_kernel(%arg0: i32, %arg1: memref<1x8x1xi32, #tpu.memory_space<vmem>>, %arg2: memref<1x8x1xi32, #tpu.memory_space<vmem>>, %arg3: memref<1x1x8xi32, #tpu.memory_space<vmem>>, %arg4: memref<128x128xbf16, #tpu.memory_space<vmem>>, %arg5: memref<128x128xbf16, #tpu.memory_space<vmem>>, %arg6: memref<1x128xf32, #tpu.memory_space<vmem>>, %arg7: memref<1x128xf32, #tpu.memory_space<vmem>>, %arg8: memref<1x128xf32, #tpu.memory_space<vmem>>, %arg9: memref<2x128x384xbf16, #tpu.memory_space<vmem>>, %arg10: memref<2x1x384xf32, #tpu.memory_space<vmem>>, %arg11: memref<8x32x128xbf16, #tpu.memory_space<vmem>>, %arg12: memref<2x1x128xf32, #tpu.memory_space<vmem>>, %arg13: memref<2x1x128xf32, #tpu.memory_space<vmem>>, %arg14: memref<2x1x128xf32, #tpu.memory_space<vmem>>, %arg15: memref<2x128x256xbf16, #tpu.memory_space<vmem>>, %arg16: memref<2x1x256xf32, #tpu.memory_space<vmem>>, %arg17: memref<2x256x128xbf16, #tpu.memory_space<vmem>>, %arg18: memref<2x1x128xf32, #tpu.memory_space<vmem>>, %arg19: memref<2x1x128xf32, #tpu.memory_space<vmem>>, %arg20: memref<2x1x128xf32, #tpu.memory_space<vmem>>, %arg21: memref<128x2xbf16, #tpu.memory_space<vmem>>, %arg22: memref<1x2xf32, #tpu.memory_space<vmem>>, %arg23: memref<1x1x2xf32, #tpu.memory_space<vmem>>) attributes {dimension_semantics = [#tpu.dimension_semantics<parallel>], iteration_bounds = array<i64: 2>, scalar_prefetch = 0 : i64, scratch_operands = 0 : i64, tpu.core_type = #tpu.core_type<tc>, window_params = [{transform_indices = @transform_0, window_bounds = array<i64: 1, 8, 1>}, {transform_indices = @transform_1, window_bounds = array<i64: 1, 8, 1>}, {transform_indices = @transform_2, window_bounds = array<i64: 1, 1, 8>}, {pipeline_mode = #tpu.pipeline_mode<synchronous>, transform_indices = @transform_3, window_bounds = array<i64: 128, 128>}, {pipeline_mode = #tpu.pipeline_mode<synchronous>, transform_indices = @transform_4, window_bounds = array<i64: 128, 128>}, {pipeline_mode = #tpu.pipeline_mode<synchronous>, transform_indices = @transform_5, window_bounds = array<i64: 1, 128>}, {pipeline_mode = #tpu.pipeline_mode<synchronous>, transform_indices = @transform_6, window_bounds = array<i64: 1, 128>}, {pipeline_mode = #tpu.pipeline_mode<synchronous>, transform_indices = @transform_7, window_bounds = array<i64: 1, 128>}, {pipeline_mode = #tpu.pipeline_mode<synchronous>, transform_indices = @transform_8, window_bounds = array<i64: 2, 128, 384>}, {pipeline_mode = #tpu.pipeline_mode<synchronous>, transform_indices = @transform_9, window_bounds = array<i64: 2, 1, 384>}, {pipeline_mode = #tpu.pipeline_mode<synchronous>, transform_indices = @transform_10, window_bounds = array<i64: 8, 32, 128>}, {pipeline_mode = #tpu.pipeline_mode<synchronous>, transform_indices = @transform_11, window_bounds = array<i64: 2, 1, 128>}, {pipeline_mode = #tpu.pipeline_mode<synchronous>, transform_indices = @transform_12, window_bounds = array<i64: 2, 1, 128>}, {pipeline_mode = #tpu.pipeline_mode<synchronous>, transform_indices = @transform_13, window_bounds = array<i64: 2, 1, 128>}, {pipeline_mode = #tpu.pipeline_mode<synchronous>, transform_indices = @transform_14, window_bounds = array<i64: 2, 128, 256>}, {pipeline_mode = #tpu.pipeline_mode<synchronous>, transform_indices = @transform_15, window_bounds = array<i64: 2, 1, 256>}, {pipeline_mode = #tpu.pipeline_mode<synchronous>, transform_indices = @transform_16, window_bounds = array<i64: 2, 256, 128>}, {pipeline_mode = #tpu.pipeline_mode<synchronous>, transform_indices = @transform_17, window_bounds = array<i64: 2, 1, 128>}, {pipeline_mode = #tpu.pipeline_mode<synchronous>, transform_indices = @transform_18, window_bounds = array<i64: 2, 1, 128>}, {pipeline_mode = #tpu.pipeline_mode<synchronous>, transform_indices = @transform_19, window_bounds = array<i64: 2, 1, 128>}, {pipeline_mode = #tpu.pipeline_mode<synchronous>, transform_indices = @transform_20, window_bounds = array<i64: 128, 2>}, {pipeline_mode = #tpu.pipeline_mode<synchronous>, transform_indices = @transform_21, window_bounds = array<i64: 1, 2>}, {transform_indices = @transform_22, window_bounds = array<i64: 1, 1, 2>}]} {
    %c0 = arith.constant 0 : index
    %c0_0 = arith.constant 0 : index
    %c0_1 = arith.constant 0 : index
    %0 = vector.load %arg1[%c0, %c0_0, %c0_1] : memref<1x8x1xi32, #tpu.memory_space<vmem>>, vector<1x8x1xi32>
    %1 = vector.shape_cast %0 : vector<1x8x1xi32> to vector<8x1xi32>
    %c0_2 = arith.constant 0 : index
    %c0_3 = arith.constant 0 : index
    %c0_4 = arith.constant 0 : index
    %2 = vector.load %arg2[%c0_2, %c0_3, %c0_4] : memref<1x8x1xi32, #tpu.memory_space<vmem>>, vector<1x8x1xi32>
    %3 = vector.shape_cast %2 : vector<1x8x1xi32> to vector<8x1xi32>
    %4 = tpu.iota {dimensions = array<i32: 1>} : vector<8x128xi32>
    %5 = vector.broadcast %1 : vector<8x1xi32> to vector<8x128xi32>
    %6 = arith.cmpi eq, %4, %5 : vector<8x128xi32>
    %7 = arith.extui %6 : vector<8x128xi1> to vector<8x128xi32>
    %8 = arith.sitofp %7 : vector<8x128xi32> to vector<8x128xf32>
    %9 = arith.truncf %8 : vector<8x128xf32> to vector<8x128xbf16>
    %10 = vector.broadcast %3 : vector<8x1xi32> to vector<8x128xi32>
    %11 = arith.cmpi eq, %4, %10 : vector<8x128xi32>
    %12 = arith.extui %11 : vector<8x128xi1> to vector<8x128xi32>
    %13 = arith.sitofp %12 : vector<8x128xi32> to vector<8x128xf32>
    %14 = arith.truncf %13 : vector<8x128xf32> to vector<8x128xbf16>
    %c0_5 = arith.constant 0 : index
    %c0_6 = arith.constant 0 : index
    %15 = vector.load %arg4[%c0_5, %c0_6] : memref<128x128xbf16, #tpu.memory_space<vmem>>, vector<128x128xbf16>
    %cst = arith.constant dense<0.000000e+00> : vector<8x128xf32>
    %16 = tpu.matmul %9, %15, %cst {dimension_numbers = #tpu.dot_dimension_numbers<[1], [0], [0], [1], [0, 0, 1, 1], [], []>} : vector<8x128xbf16>, vector<128x128xbf16>, vector<8x128xf32> -> vector<8x128xf32>
    %c0_7 = arith.constant 0 : index
    %c0_8 = arith.constant 0 : index
    %17 = vector.load %arg5[%c0_7, %c0_8] : memref<128x128xbf16, #tpu.memory_space<vmem>>, vector<128x128xbf16>
    %cst_9 = arith.constant dense<0.000000e+00> : vector<8x128xf32>
    %18 = tpu.matmul %14, %17, %cst_9 {dimension_numbers = #tpu.dot_dimension_numbers<[1], [0], [0], [1], [0, 0, 1, 1], [], []>} : vector<8x128xbf16>, vector<128x128xbf16>, vector<8x128xf32> -> vector<8x128xf32>
    %19 = arith.addf %16, %18 : vector<8x128xf32>
    %c0_10 = arith.constant 0 : index
    %c0_11 = arith.constant 0 : index
    %20 = vector.load %arg6[%c0_10, %c0_11] : memref<1x128xf32, #tpu.memory_space<vmem>>, vector<1x128xf32>
    %21 = vector.broadcast %20 : vector<1x128xf32> to vector<8x128xf32>
    %22 = arith.addf %19, %21 : vector<8x128xf32>
    %c0_12 = arith.constant 0 : index
    %c0_13 = arith.constant 0 : index
    %23 = vector.load %arg7[%c0_12, %c0_13] : memref<1x128xf32, #tpu.memory_space<vmem>>, vector<1x128xf32>
    %c0_14 = arith.constant 0 : index
    %c0_15 = arith.constant 0 : index
    %24 = vector.load %arg8[%c0_14, %c0_15] : memref<1x128xf32, #tpu.memory_space<vmem>>, vector<1x128xf32>
    %cst_16 = arith.constant dense<0.000000e+00> : vector<8xf32>
    %25 = vector.multi_reduction <add>, %22, %cst_16 [1] : vector<8x128xf32> to vector<8xf32>
    %26 = vector.shape_cast %25 : vector<8xf32> to vector<8x1xf32>
    %cst_17 = arith.constant 1.280000e+02 : f32
    %27 = vector.broadcast %cst_17 : f32 to vector<8x1xf32>
    %28 = arith.divf %26, %27 : vector<8x1xf32>
    %29 = vector.broadcast %28 : vector<8x1xf32> to vector<8x128xf32>
    %30 = arith.subf %22, %29 : vector<8x128xf32>
    %31 = arith.mulf %30, %30 : vector<8x128xf32>
    %cst_18 = arith.constant dense<0.000000e+00> : vector<8xf32>
    %32 = vector.multi_reduction <add>, %31, %cst_18 [1] : vector<8x128xf32> to vector<8xf32>
    %33 = vector.shape_cast %32 : vector<8xf32> to vector<8x1xf32>
    %cst_19 = arith.constant 1.280000e+02 : f32
    %34 = vector.broadcast %cst_19 : f32 to vector<8x1xf32>
    %35 = arith.divf %33, %34 : vector<8x1xf32>
    %36 = vector.broadcast %28 : vector<8x1xf32> to vector<8x128xf32>
    %37 = arith.subf %22, %36 : vector<8x128xf32>
    %cst_20 = arith.constant 9.99999974E-6 : f32
    %38 = vector.broadcast %cst_20 : f32 to vector<8x1xf32>
    %39 = arith.addf %35, %38 : vector<8x1xf32>
    %40 = math.rsqrt %39 : vector<8x1xf32>
    %41 = vector.broadcast %40 : vector<8x1xf32> to vector<8x128xf32>
    %42 = arith.mulf %37, %41 : vector<8x128xf32>
    %43 = vector.broadcast %23 : vector<1x128xf32> to vector<8x128xf32>
    %44 = arith.mulf %42, %43 : vector<8x128xf32>
    %45 = vector.broadcast %24 : vector<1x128xf32> to vector<8x128xf32>
    %46 = arith.addf %44, %45 : vector<8x128xf32>
    %c0_21 = arith.constant 0 : index
    %c0_22 = arith.constant 0 : index
    %c0_23 = arith.constant 0 : index
    %47 = vector.load %arg3[%c0_21, %c0_22, %c0_23] : memref<1x1x8xi32, #tpu.memory_space<vmem>>, vector<1x1x8xi32>
    %48 = vector.shape_cast %47 : vector<1x1x8xi32> to vector<1x8xi32>
    %c0_i32 = arith.constant 0 : i32
    %49 = vector.broadcast %c0_i32 : i32 to vector<1x8xi32>
    %50 = arith.cmpi eq, %48, %49 : vector<1x8xi32>
    %cst_24 = arith.constant -1.000000e+09 : f32
    %cst_25 = arith.constant 0.000000e+00 : f32
    %51 = vector.broadcast %cst_24 : f32 to vector<1x8xf32>
    %52 = vector.broadcast %cst_25 : f32 to vector<1x8xf32>
    %53 = arith.select %50, %51, %52 : vector<1x8xi1>, vector<1x8xf32>
    %54 = arith.truncf %46 : vector<8x128xf32> to vector<8x128xbf16>
    %c0_26 = arith.constant 0 : index
    %c0_27 = arith.constant 0 : index
    %c0_28 = arith.constant 0 : index
    %55 = vector.load %arg9[%c0_26, %c0_27, %c0_28] : memref<2x128x384xbf16, #tpu.memory_space<vmem>>, vector<1x128x384xbf16>
    %56 = vector.shape_cast %55 : vector<1x128x384xbf16> to vector<128x384xbf16>
    %cst_29 = arith.constant dense<0.000000e+00> : vector<8x384xf32>
    %57 = tpu.matmul %54, %56, %cst_29 {dimension_numbers = #tpu.dot_dimension_numbers<[1], [0], [0], [1], [0, 0, 1, 1], [], []>} : vector<8x128xbf16>, vector<128x384xbf16>, vector<8x384xf32> -> vector<8x384xf32>
    %c0_30 = arith.constant 0 : index
    %c0_31 = arith.constant 0 : index
    %c0_32 = arith.constant 0 : index
    %58 = vector.load %arg10[%c0_30, %c0_31, %c0_32] : memref<2x1x384xf32, #tpu.memory_space<vmem>>, vector<1x1x384xf32>
    %59 = vector.shape_cast %58 : vector<1x1x384xf32> to vector<1x384xf32>
    %60 = vector.broadcast %59 : vector<1x384xf32> to vector<8x384xf32>
    %61 = arith.addf %57, %60 : vector<8x384xf32>
    %cst_33 = arith.constant 0.000000e+00 : f32
    %62 = vector.broadcast %cst_33 : f32 to vector<8x128xf32>
    %63 = vector.extract_strided_slice %61 {offsets = [0, 0], sizes = [8, 32], strides = [1, 1]} : vector<8x384xf32> to vector<8x32xf32>
    %64 = vector.extract_strided_slice %61 {offsets = [0, 128], sizes = [8, 32], strides = [1, 1]} : vector<8x384xf32> to vector<8x32xf32>
    %65 = vector.extract_strided_slice %61 {offsets = [0, 256], sizes = [8, 32], strides = [1, 1]} : vector<8x384xf32> to vector<8x32xf32>
    %66 = tpu.transpose %64, [1, 0] : vector<8x32xf32> -> vector<32x8xf32>
    %cst_34 = arith.constant dense<0.000000e+00> : vector<8x8xf32>
    %67 = tpu.matmul %63, %66, %cst_34 {dimension_numbers = #tpu.dot_dimension_numbers<[1], [0], [0], [1], [0, 0, 1, 1], [], []>} : vector<8x32xf32>, vector<32x8xf32>, vector<8x8xf32> -> vector<8x8xf32>
    %cst_35 = arith.constant 0.176776692 : f32
    %68 = vector.broadcast %cst_35 : f32 to vector<8x8xf32>
    %69 = arith.mulf %67, %68 : vector<8x8xf32>
    %70 = vector.broadcast %53 : vector<1x8xf32> to vector<8x8xf32>
    %71 = arith.addf %69, %70 : vector<8x8xf32>
    %cst_36 = arith.constant dense<0xFF800000> : vector<8xf32>
    %72 = vector.multi_reduction <maximumf>, %71, %cst_36 [1] : vector<8x8xf32> to vector<8xf32>
    %73 = vector.shape_cast %72 : vector<8xf32> to vector<8x1xf32>
    %74 = vector.broadcast %73 : vector<8x1xf32> to vector<8x8xf32>
    %75 = arith.subf %71, %74 : vector<8x8xf32>
    %76 = math.exp %75 : vector<8x8xf32>
    %cst_37 = arith.constant dense<0.000000e+00> : vector<8xf32>
    %77 = vector.multi_reduction <add>, %76, %cst_37 [1] : vector<8x8xf32> to vector<8xf32>
    %78 = vector.shape_cast %77 : vector<8xf32> to vector<8x1xf32>
    %79 = tpu.reciprocal %78 {approx = true} : vector<8x1xf32> -> vector<8x1xf32>
    %80 = vector.broadcast %79 : vector<8x1xf32> to vector<8x8xf32>
    %81 = arith.mulf %76, %80 : vector<8x8xf32>
    %cst_38 = arith.constant dense<0.000000e+00> : vector<8x32xf32>
    %82 = tpu.matmul %81, %65, %cst_38 {dimension_numbers = #tpu.dot_dimension_numbers<[1], [0], [0], [1], [0, 0, 1, 1], [], []>} : vector<8x8xf32>, vector<8x32xf32>, vector<8x32xf32> -> vector<8x32xf32>
    %83 = arith.truncf %82 : vector<8x32xf32> to vector<8x32xbf16>
    %c0_39 = arith.constant 0 : index
    %c0_40 = arith.constant 0 : index
    %c0_41 = arith.constant 0 : index
    %84 = vector.load %arg11[%c0_39, %c0_40, %c0_41] : memref<8x32x128xbf16, #tpu.memory_space<vmem>>, vector<1x32x128xbf16>
    %85 = vector.shape_cast %84 : vector<1x32x128xbf16> to vector<32x128xbf16>
    %cst_42 = arith.constant dense<0.000000e+00> : vector<8x128xf32>
    %86 = tpu.matmul %83, %85, %cst_42 {dimension_numbers = #tpu.dot_dimension_numbers<[1], [0], [0], [1], [0, 0, 1, 1], [], []>} : vector<8x32xbf16>, vector<32x128xbf16>, vector<8x128xf32> -> vector<8x128xf32>
    %87 = arith.addf %62, %86 : vector<8x128xf32>
    %88 = vector.extract_strided_slice %61 {offsets = [0, 32], sizes = [8, 32], strides = [1, 1]} : vector<8x384xf32> to vector<8x32xf32>
    %89 = vector.extract_strided_slice %61 {offsets = [0, 160], sizes = [8, 32], strides = [1, 1]} : vector<8x384xf32> to vector<8x32xf32>
    %90 = vector.extract_strided_slice %61 {offsets = [0, 288], sizes = [8, 32], strides = [1, 1]} : vector<8x384xf32> to vector<8x32xf32>
    %91 = tpu.transpose %89, [1, 0] : vector<8x32xf32> -> vector<32x8xf32>
    %cst_43 = arith.constant dense<0.000000e+00> : vector<8x8xf32>
    %92 = tpu.matmul %88, %91, %cst_43 {dimension_numbers = #tpu.dot_dimension_numbers<[1], [0], [0], [1], [0, 0, 1, 1], [], []>} : vector<8x32xf32>, vector<32x8xf32>, vector<8x8xf32> -> vector<8x8xf32>
    %cst_44 = arith.constant 0.176776692 : f32
    %93 = vector.broadcast %cst_44 : f32 to vector<8x8xf32>
    %94 = arith.mulf %92, %93 : vector<8x8xf32>
    %95 = vector.broadcast %53 : vector<1x8xf32> to vector<8x8xf32>
    %96 = arith.addf %94, %95 : vector<8x8xf32>
    %cst_45 = arith.constant dense<0xFF800000> : vector<8xf32>
    %97 = vector.multi_reduction <maximumf>, %96, %cst_45 [1] : vector<8x8xf32> to vector<8xf32>
    %98 = vector.shape_cast %97 : vector<8xf32> to vector<8x1xf32>
    %99 = vector.broadcast %98 : vector<8x1xf32> to vector<8x8xf32>
    %100 = arith.subf %96, %99 : vector<8x8xf32>
    %101 = math.exp %100 : vector<8x8xf32>
    %cst_46 = arith.constant dense<0.000000e+00> : vector<8xf32>
    %102 = vector.multi_reduction <add>, %101, %cst_46 [1] : vector<8x8xf32> to vector<8xf32>
    %103 = vector.shape_cast %102 : vector<8xf32> to vector<8x1xf32>
    %104 = tpu.reciprocal %103 {approx = true} : vector<8x1xf32> -> vector<8x1xf32>
    %105 = vector.broadcast %104 : vector<8x1xf32> to vector<8x8xf32>
    %106 = arith.mulf %101, %105 : vector<8x8xf32>
    %cst_47 = arith.constant dense<0.000000e+00> : vector<8x32xf32>
    %107 = tpu.matmul %106, %90, %cst_47 {dimension_numbers = #tpu.dot_dimension_numbers<[1], [0], [0], [1], [0, 0, 1, 1], [], []>} : vector<8x8xf32>, vector<8x32xf32>, vector<8x32xf32> -> vector<8x32xf32>
    %108 = arith.truncf %107 : vector<8x32xf32> to vector<8x32xbf16>
    %c1 = arith.constant 1 : index
    %c0_48 = arith.constant 0 : index
    %c0_49 = arith.constant 0 : index
    %109 = vector.load %arg11[%c1, %c0_48, %c0_49] : memref<8x32x128xbf16, #tpu.memory_space<vmem>>, vector<1x32x128xbf16>
    %110 = vector.shape_cast %109 : vector<1x32x128xbf16> to vector<32x128xbf16>
    %cst_50 = arith.constant dense<0.000000e+00> : vector<8x128xf32>
    %111 = tpu.matmul %108, %110, %cst_50 {dimension_numbers = #tpu.dot_dimension_numbers<[1], [0], [0], [1], [0, 0, 1, 1], [], []>} : vector<8x32xbf16>, vector<32x128xbf16>, vector<8x128xf32> -> vector<8x128xf32>
    %112 = arith.addf %87, %111 : vector<8x128xf32>
    %113 = vector.extract_strided_slice %61 {offsets = [0, 64], sizes = [8, 32], strides = [1, 1]} : vector<8x384xf32> to vector<8x32xf32>
    %114 = vector.extract_strided_slice %61 {offsets = [0, 192], sizes = [8, 32], strides = [1, 1]} : vector<8x384xf32> to vector<8x32xf32>
    %115 = vector.extract_strided_slice %61 {offsets = [0, 320], sizes = [8, 32], strides = [1, 1]} : vector<8x384xf32> to vector<8x32xf32>
    %116 = tpu.transpose %114, [1, 0] : vector<8x32xf32> -> vector<32x8xf32>
    %cst_51 = arith.constant dense<0.000000e+00> : vector<8x8xf32>
    %117 = tpu.matmul %113, %116, %cst_51 {dimension_numbers = #tpu.dot_dimension_numbers<[1], [0], [0], [1], [0, 0, 1, 1], [], []>} : vector<8x32xf32>, vector<32x8xf32>, vector<8x8xf32> -> vector<8x8xf32>
    %cst_52 = arith.constant 0.176776692 : f32
    %118 = vector.broadcast %cst_52 : f32 to vector<8x8xf32>
    %119 = arith.mulf %117, %118 : vector<8x8xf32>
    %120 = vector.broadcast %53 : vector<1x8xf32> to vector<8x8xf32>
    %121 = arith.addf %119, %120 : vector<8x8xf32>
    %cst_53 = arith.constant dense<0xFF800000> : vector<8xf32>
    %122 = vector.multi_reduction <maximumf>, %121, %cst_53 [1] : vector<8x8xf32> to vector<8xf32>
    %123 = vector.shape_cast %122 : vector<8xf32> to vector<8x1xf32>
    %124 = vector.broadcast %123 : vector<8x1xf32> to vector<8x8xf32>
    %125 = arith.subf %121, %124 : vector<8x8xf32>
    %126 = math.exp %125 : vector<8x8xf32>
    %cst_54 = arith.constant dense<0.000000e+00> : vector<8xf32>
    %127 = vector.multi_reduction <add>, %126, %cst_54 [1] : vector<8x8xf32> to vector<8xf32>
    %128 = vector.shape_cast %127 : vector<8xf32> to vector<8x1xf32>
    %129 = tpu.reciprocal %128 {approx = true} : vector<8x1xf32> -> vector<8x1xf32>
    %130 = vector.broadcast %129 : vector<8x1xf32> to vector<8x8xf32>
    %131 = arith.mulf %126, %130 : vector<8x8xf32>
    %cst_55 = arith.constant dense<0.000000e+00> : vector<8x32xf32>
    %132 = tpu.matmul %131, %115, %cst_55 {dimension_numbers = #tpu.dot_dimension_numbers<[1], [0], [0], [1], [0, 0, 1, 1], [], []>} : vector<8x8xf32>, vector<8x32xf32>, vector<8x32xf32> -> vector<8x32xf32>
    %133 = arith.truncf %132 : vector<8x32xf32> to vector<8x32xbf16>
    %c2 = arith.constant 2 : index
    %c0_56 = arith.constant 0 : index
    %c0_57 = arith.constant 0 : index
    %134 = vector.load %arg11[%c2, %c0_56, %c0_57] : memref<8x32x128xbf16, #tpu.memory_space<vmem>>, vector<1x32x128xbf16>
    %135 = vector.shape_cast %134 : vector<1x32x128xbf16> to vector<32x128xbf16>
    %cst_58 = arith.constant dense<0.000000e+00> : vector<8x128xf32>
    %136 = tpu.matmul %133, %135, %cst_58 {dimension_numbers = #tpu.dot_dimension_numbers<[1], [0], [0], [1], [0, 0, 1, 1], [], []>} : vector<8x32xbf16>, vector<32x128xbf16>, vector<8x128xf32> -> vector<8x128xf32>
    %137 = arith.addf %112, %136 : vector<8x128xf32>
    %138 = vector.extract_strided_slice %61 {offsets = [0, 96], sizes = [8, 32], strides = [1, 1]} : vector<8x384xf32> to vector<8x32xf32>
    %139 = vector.extract_strided_slice %61 {offsets = [0, 224], sizes = [8, 32], strides = [1, 1]} : vector<8x384xf32> to vector<8x32xf32>
    %140 = vector.extract_strided_slice %61 {offsets = [0, 352], sizes = [8, 32], strides = [1, 1]} : vector<8x384xf32> to vector<8x32xf32>
    %141 = tpu.transpose %139, [1, 0] : vector<8x32xf32> -> vector<32x8xf32>
    %cst_59 = arith.constant dense<0.000000e+00> : vector<8x8xf32>
    %142 = tpu.matmul %138, %141, %cst_59 {dimension_numbers = #tpu.dot_dimension_numbers<[1], [0], [0], [1], [0, 0, 1, 1], [], []>} : vector<8x32xf32>, vector<32x8xf32>, vector<8x8xf32> -> vector<8x8xf32>
    %cst_60 = arith.constant 0.176776692 : f32
    %143 = vector.broadcast %cst_60 : f32 to vector<8x8xf32>
    %144 = arith.mulf %142, %143 : vector<8x8xf32>
    %145 = vector.broadcast %53 : vector<1x8xf32> to vector<8x8xf32>
    %146 = arith.addf %144, %145 : vector<8x8xf32>
    %cst_61 = arith.constant dense<0xFF800000> : vector<8xf32>
    %147 = vector.multi_reduction <maximumf>, %146, %cst_61 [1] : vector<8x8xf32> to vector<8xf32>
    %148 = vector.shape_cast %147 : vector<8xf32> to vector<8x1xf32>
    %149 = vector.broadcast %148 : vector<8x1xf32> to vector<8x8xf32>
    %150 = arith.subf %146, %149 : vector<8x8xf32>
    %151 = math.exp %150 : vector<8x8xf32>
    %cst_62 = arith.constant dense<0.000000e+00> : vector<8xf32>
    %152 = vector.multi_reduction <add>, %151, %cst_62 [1] : vector<8x8xf32> to vector<8xf32>
    %153 = vector.shape_cast %152 : vector<8xf32> to vector<8x1xf32>
    %154 = tpu.reciprocal %153 {approx = true} : vector<8x1xf32> -> vector<8x1xf32>
    %155 = vector.broadcast %154 : vector<8x1xf32> to vector<8x8xf32>
    %156 = arith.mulf %151, %155 : vector<8x8xf32>
    %cst_63 = arith.constant dense<0.000000e+00> : vector<8x32xf32>
    %157 = tpu.matmul %156, %140, %cst_63 {dimension_numbers = #tpu.dot_dimension_numbers<[1], [0], [0], [1], [0, 0, 1, 1], [], []>} : vector<8x8xf32>, vector<8x32xf32>, vector<8x32xf32> -> vector<8x32xf32>
    %158 = arith.truncf %157 : vector<8x32xf32> to vector<8x32xbf16>
    %c3 = arith.constant 3 : index
    %c0_64 = arith.constant 0 : index
    %c0_65 = arith.constant 0 : index
    %159 = vector.load %arg11[%c3, %c0_64, %c0_65] : memref<8x32x128xbf16, #tpu.memory_space<vmem>>, vector<1x32x128xbf16>
    %160 = vector.shape_cast %159 : vector<1x32x128xbf16> to vector<32x128xbf16>
    %cst_66 = arith.constant dense<0.000000e+00> : vector<8x128xf32>
    %161 = tpu.matmul %158, %160, %cst_66 {dimension_numbers = #tpu.dot_dimension_numbers<[1], [0], [0], [1], [0, 0, 1, 1], [], []>} : vector<8x32xbf16>, vector<32x128xbf16>, vector<8x128xf32> -> vector<8x128xf32>
    %162 = arith.addf %137, %161 : vector<8x128xf32>
    %163 = arith.addf %46, %162 : vector<8x128xf32>
    %c0_67 = arith.constant 0 : index
    %c0_68 = arith.constant 0 : index
    %c0_69 = arith.constant 0 : index
    %164 = vector.load %arg12[%c0_67, %c0_68, %c0_69] : memref<2x1x128xf32, #tpu.memory_space<vmem>>, vector<1x1x128xf32>
    %165 = vector.shape_cast %164 : vector<1x1x128xf32> to vector<1x128xf32>
    %166 = vector.broadcast %165 : vector<1x128xf32> to vector<8x128xf32>
    %167 = arith.addf %163, %166 : vector<8x128xf32>
    %c0_70 = arith.constant 0 : index
    %c0_71 = arith.constant 0 : index
    %c0_72 = arith.constant 0 : index
    %168 = vector.load %arg13[%c0_70, %c0_71, %c0_72] : memref<2x1x128xf32, #tpu.memory_space<vmem>>, vector<1x1x128xf32>
    %169 = vector.shape_cast %168 : vector<1x1x128xf32> to vector<1x128xf32>
    %c0_73 = arith.constant 0 : index
    %c0_74 = arith.constant 0 : index
    %c0_75 = arith.constant 0 : index
    %170 = vector.load %arg14[%c0_73, %c0_74, %c0_75] : memref<2x1x128xf32, #tpu.memory_space<vmem>>, vector<1x1x128xf32>
    %171 = vector.shape_cast %170 : vector<1x1x128xf32> to vector<1x128xf32>
    %cst_76 = arith.constant dense<0.000000e+00> : vector<8xf32>
    %172 = vector.multi_reduction <add>, %167, %cst_76 [1] : vector<8x128xf32> to vector<8xf32>
    %173 = vector.shape_cast %172 : vector<8xf32> to vector<8x1xf32>
    %cst_77 = arith.constant 1.280000e+02 : f32
    %174 = vector.broadcast %cst_77 : f32 to vector<8x1xf32>
    %175 = arith.divf %173, %174 : vector<8x1xf32>
    %176 = vector.broadcast %175 : vector<8x1xf32> to vector<8x128xf32>
    %177 = arith.subf %167, %176 : vector<8x128xf32>
    %178 = arith.mulf %177, %177 : vector<8x128xf32>
    %cst_78 = arith.constant dense<0.000000e+00> : vector<8xf32>
    %179 = vector.multi_reduction <add>, %178, %cst_78 [1] : vector<8x128xf32> to vector<8xf32>
    %180 = vector.shape_cast %179 : vector<8xf32> to vector<8x1xf32>
    %cst_79 = arith.constant 1.280000e+02 : f32
    %181 = vector.broadcast %cst_79 : f32 to vector<8x1xf32>
    %182 = arith.divf %180, %181 : vector<8x1xf32>
    %183 = vector.broadcast %175 : vector<8x1xf32> to vector<8x128xf32>
    %184 = arith.subf %167, %183 : vector<8x128xf32>
    %cst_80 = arith.constant 9.99999974E-6 : f32
    %185 = vector.broadcast %cst_80 : f32 to vector<8x1xf32>
    %186 = arith.addf %182, %185 : vector<8x1xf32>
    %187 = math.rsqrt %186 : vector<8x1xf32>
    %188 = vector.broadcast %187 : vector<8x1xf32> to vector<8x128xf32>
    %189 = arith.mulf %184, %188 : vector<8x128xf32>
    %190 = vector.broadcast %169 : vector<1x128xf32> to vector<8x128xf32>
    %191 = arith.mulf %189, %190 : vector<8x128xf32>
    %192 = vector.broadcast %171 : vector<1x128xf32> to vector<8x128xf32>
    %193 = arith.addf %191, %192 : vector<8x128xf32>
    %194 = arith.truncf %193 : vector<8x128xf32> to vector<8x128xbf16>
    %c0_81 = arith.constant 0 : index
    %c0_82 = arith.constant 0 : index
    %c0_83 = arith.constant 0 : index
    %195 = vector.load %arg15[%c0_81, %c0_82, %c0_83] : memref<2x128x256xbf16, #tpu.memory_space<vmem>>, vector<1x128x256xbf16>
    %196 = vector.shape_cast %195 : vector<1x128x256xbf16> to vector<128x256xbf16>
    %cst_84 = arith.constant dense<0.000000e+00> : vector<8x256xf32>
    %197 = tpu.matmul %194, %196, %cst_84 {dimension_numbers = #tpu.dot_dimension_numbers<[1], [0], [0], [1], [0, 0, 1, 1], [], []>} : vector<8x128xbf16>, vector<128x256xbf16>, vector<8x256xf32> -> vector<8x256xf32>
    %c0_85 = arith.constant 0 : index
    %c0_86 = arith.constant 0 : index
    %c0_87 = arith.constant 0 : index
    %198 = vector.load %arg16[%c0_85, %c0_86, %c0_87] : memref<2x1x256xf32, #tpu.memory_space<vmem>>, vector<1x1x256xf32>
    %199 = vector.shape_cast %198 : vector<1x1x256xf32> to vector<1x256xf32>
    %200 = vector.broadcast %199 : vector<1x256xf32> to vector<8x256xf32>
    %201 = arith.addf %197, %200 : vector<8x256xf32>
    %cst_88 = arith.constant 5.000000e-01 : f32
    %202 = vector.broadcast %cst_88 : f32 to vector<8x256xf32>
    %203 = arith.mulf %202, %201 : vector<8x256xf32>
    %cst_89 = arith.constant 4.471500e-02 : f32
    %204 = vector.broadcast %cst_89 : f32 to vector<8x256xf32>
    %205 = arith.mulf %204, %201 : vector<8x256xf32>
    %206 = arith.mulf %205, %201 : vector<8x256xf32>
    %207 = arith.mulf %206, %201 : vector<8x256xf32>
    %208 = arith.addf %201, %207 : vector<8x256xf32>
    %cst_90 = arith.constant 0.797884583 : f32
    %209 = vector.broadcast %cst_90 : f32 to vector<8x256xf32>
    %210 = arith.mulf %209, %208 : vector<8x256xf32>
    %211 = math.tanh %210 : vector<8x256xf32>
    %cst_91 = arith.constant 1.000000e+00 : f32
    %212 = vector.broadcast %cst_91 : f32 to vector<8x256xf32>
    %213 = arith.addf %212, %211 : vector<8x256xf32>
    %214 = arith.mulf %203, %213 : vector<8x256xf32>
    %215 = arith.truncf %214 : vector<8x256xf32> to vector<8x256xbf16>
    %c0_92 = arith.constant 0 : index
    %c0_93 = arith.constant 0 : index
    %c0_94 = arith.constant 0 : index
    %216 = vector.load %arg17[%c0_92, %c0_93, %c0_94] : memref<2x256x128xbf16, #tpu.memory_space<vmem>>, vector<1x256x128xbf16>
    %217 = vector.shape_cast %216 : vector<1x256x128xbf16> to vector<256x128xbf16>
    %cst_95 = arith.constant dense<0.000000e+00> : vector<8x128xf32>
    %218 = tpu.matmul %215, %217, %cst_95 {dimension_numbers = #tpu.dot_dimension_numbers<[1], [0], [0], [1], [0, 0, 1, 1], [], []>} : vector<8x256xbf16>, vector<256x128xbf16>, vector<8x128xf32> -> vector<8x128xf32>
    %c0_96 = arith.constant 0 : index
    %c0_97 = arith.constant 0 : index
    %c0_98 = arith.constant 0 : index
    %219 = vector.load %arg18[%c0_96, %c0_97, %c0_98] : memref<2x1x128xf32, #tpu.memory_space<vmem>>, vector<1x1x128xf32>
    %220 = vector.shape_cast %219 : vector<1x1x128xf32> to vector<1x128xf32>
    %221 = vector.broadcast %220 : vector<1x128xf32> to vector<8x128xf32>
    %222 = arith.addf %218, %221 : vector<8x128xf32>
    %223 = arith.addf %193, %222 : vector<8x128xf32>
    %c0_99 = arith.constant 0 : index
    %c0_100 = arith.constant 0 : index
    %c0_101 = arith.constant 0 : index
    %224 = vector.load %arg19[%c0_99, %c0_100, %c0_101] : memref<2x1x128xf32, #tpu.memory_space<vmem>>, vector<1x1x128xf32>
    %225 = vector.shape_cast %224 : vector<1x1x128xf32> to vector<1x128xf32>
    %c0_102 = arith.constant 0 : index
    %c0_103 = arith.constant 0 : index
    %c0_104 = arith.constant 0 : index
    %226 = vector.load %arg20[%c0_102, %c0_103, %c0_104] : memref<2x1x128xf32, #tpu.memory_space<vmem>>, vector<1x1x128xf32>
    %227 = vector.shape_cast %226 : vector<1x1x128xf32> to vector<1x128xf32>
    %cst_105 = arith.constant dense<0.000000e+00> : vector<8xf32>
    %228 = vector.multi_reduction <add>, %223, %cst_105 [1] : vector<8x128xf32> to vector<8xf32>
    %229 = vector.shape_cast %228 : vector<8xf32> to vector<8x1xf32>
    %cst_106 = arith.constant 1.280000e+02 : f32
    %230 = vector.broadcast %cst_106 : f32 to vector<8x1xf32>
    %231 = arith.divf %229, %230 : vector<8x1xf32>
    %232 = vector.broadcast %231 : vector<8x1xf32> to vector<8x128xf32>
    %233 = arith.subf %223, %232 : vector<8x128xf32>
    %234 = arith.mulf %233, %233 : vector<8x128xf32>
    %cst_107 = arith.constant dense<0.000000e+00> : vector<8xf32>
    %235 = vector.multi_reduction <add>, %234, %cst_107 [1] : vector<8x128xf32> to vector<8xf32>
    %236 = vector.shape_cast %235 : vector<8xf32> to vector<8x1xf32>
    %cst_108 = arith.constant 1.280000e+02 : f32
    %237 = vector.broadcast %cst_108 : f32 to vector<8x1xf32>
    %238 = arith.divf %236, %237 : vector<8x1xf32>
    %239 = vector.broadcast %231 : vector<8x1xf32> to vector<8x128xf32>
    %240 = arith.subf %223, %239 : vector<8x128xf32>
    %cst_109 = arith.constant 9.99999974E-6 : f32
    %241 = vector.broadcast %cst_109 : f32 to vector<8x1xf32>
    %242 = arith.addf %238, %241 : vector<8x1xf32>
    %243 = math.rsqrt %242 : vector<8x1xf32>
    %244 = vector.broadcast %243 : vector<8x1xf32> to vector<8x128xf32>
    %245 = arith.mulf %240, %244 : vector<8x128xf32>
    %246 = vector.broadcast %225 : vector<1x128xf32> to vector<8x128xf32>
    %247 = arith.mulf %245, %246 : vector<8x128xf32>
    %248 = vector.broadcast %227 : vector<1x128xf32> to vector<8x128xf32>
    %249 = arith.addf %247, %248 : vector<8x128xf32>
    %250 = arith.truncf %249 : vector<8x128xf32> to vector<8x128xbf16>
    %c1_110 = arith.constant 1 : index
    %c0_111 = arith.constant 0 : index
    %c0_112 = arith.constant 0 : index
    %251 = vector.load %arg9[%c1_110, %c0_111, %c0_112] : memref<2x128x384xbf16, #tpu.memory_space<vmem>>, vector<1x128x384xbf16>
    %252 = vector.shape_cast %251 : vector<1x128x384xbf16> to vector<128x384xbf16>
    %cst_113 = arith.constant dense<0.000000e+00> : vector<8x384xf32>
    %253 = tpu.matmul %250, %252, %cst_113 {dimension_numbers = #tpu.dot_dimension_numbers<[1], [0], [0], [1], [0, 0, 1, 1], [], []>} : vector<8x128xbf16>, vector<128x384xbf16>, vector<8x384xf32> -> vector<8x384xf32>
    %c1_114 = arith.constant 1 : index
    %c0_115 = arith.constant 0 : index
    %c0_116 = arith.constant 0 : index
    %254 = vector.load %arg10[%c1_114, %c0_115, %c0_116] : memref<2x1x384xf32, #tpu.memory_space<vmem>>, vector<1x1x384xf32>
    %255 = vector.shape_cast %254 : vector<1x1x384xf32> to vector<1x384xf32>
    %256 = vector.broadcast %255 : vector<1x384xf32> to vector<8x384xf32>
    %257 = arith.addf %253, %256 : vector<8x384xf32>
    %cst_117 = arith.constant 0.000000e+00 : f32
    %258 = vector.broadcast %cst_117 : f32 to vector<8x128xf32>
    %259 = vector.extract_strided_slice %257 {offsets = [0, 0], sizes = [8, 32], strides = [1, 1]} : vector<8x384xf32> to vector<8x32xf32>
    %260 = vector.extract_strided_slice %257 {offsets = [0, 128], sizes = [8, 32], strides = [1, 1]} : vector<8x384xf32> to vector<8x32xf32>
    %261 = vector.extract_strided_slice %257 {offsets = [0, 256], sizes = [8, 32], strides = [1, 1]} : vector<8x384xf32> to vector<8x32xf32>
    %262 = tpu.transpose %260, [1, 0] : vector<8x32xf32> -> vector<32x8xf32>
    %cst_118 = arith.constant dense<0.000000e+00> : vector<8x8xf32>
    %263 = tpu.matmul %259, %262, %cst_118 {dimension_numbers = #tpu.dot_dimension_numbers<[1], [0], [0], [1], [0, 0, 1, 1], [], []>} : vector<8x32xf32>, vector<32x8xf32>, vector<8x8xf32> -> vector<8x8xf32>
    %cst_119 = arith.constant 0.176776692 : f32
    %264 = vector.broadcast %cst_119 : f32 to vector<8x8xf32>
    %265 = arith.mulf %263, %264 : vector<8x8xf32>
    %266 = vector.broadcast %53 : vector<1x8xf32> to vector<8x8xf32>
    %267 = arith.addf %265, %266 : vector<8x8xf32>
    %cst_120 = arith.constant dense<0xFF800000> : vector<8xf32>
    %268 = vector.multi_reduction <maximumf>, %267, %cst_120 [1] : vector<8x8xf32> to vector<8xf32>
    %269 = vector.shape_cast %268 : vector<8xf32> to vector<8x1xf32>
    %270 = vector.broadcast %269 : vector<8x1xf32> to vector<8x8xf32>
    %271 = arith.subf %267, %270 : vector<8x8xf32>
    %272 = math.exp %271 : vector<8x8xf32>
    %cst_121 = arith.constant dense<0.000000e+00> : vector<8xf32>
    %273 = vector.multi_reduction <add>, %272, %cst_121 [1] : vector<8x8xf32> to vector<8xf32>
    %274 = vector.shape_cast %273 : vector<8xf32> to vector<8x1xf32>
    %275 = tpu.reciprocal %274 {approx = true} : vector<8x1xf32> -> vector<8x1xf32>
    %276 = vector.broadcast %275 : vector<8x1xf32> to vector<8x8xf32>
    %277 = arith.mulf %272, %276 : vector<8x8xf32>
    %cst_122 = arith.constant dense<0.000000e+00> : vector<8x32xf32>
    %278 = tpu.matmul %277, %261, %cst_122 {dimension_numbers = #tpu.dot_dimension_numbers<[1], [0], [0], [1], [0, 0, 1, 1], [], []>} : vector<8x8xf32>, vector<8x32xf32>, vector<8x32xf32> -> vector<8x32xf32>
    %279 = arith.truncf %278 : vector<8x32xf32> to vector<8x32xbf16>
    %c4 = arith.constant 4 : index
    %c0_123 = arith.constant 0 : index
    %c0_124 = arith.constant 0 : index
    %280 = vector.load %arg11[%c4, %c0_123, %c0_124] : memref<8x32x128xbf16, #tpu.memory_space<vmem>>, vector<1x32x128xbf16>
    %281 = vector.shape_cast %280 : vector<1x32x128xbf16> to vector<32x128xbf16>
    %cst_125 = arith.constant dense<0.000000e+00> : vector<8x128xf32>
    %282 = tpu.matmul %279, %281, %cst_125 {dimension_numbers = #tpu.dot_dimension_numbers<[1], [0], [0], [1], [0, 0, 1, 1], [], []>} : vector<8x32xbf16>, vector<32x128xbf16>, vector<8x128xf32> -> vector<8x128xf32>
    %283 = arith.addf %258, %282 : vector<8x128xf32>
    %284 = vector.extract_strided_slice %257 {offsets = [0, 32], sizes = [8, 32], strides = [1, 1]} : vector<8x384xf32> to vector<8x32xf32>
    %285 = vector.extract_strided_slice %257 {offsets = [0, 160], sizes = [8, 32], strides = [1, 1]} : vector<8x384xf32> to vector<8x32xf32>
    %286 = vector.extract_strided_slice %257 {offsets = [0, 288], sizes = [8, 32], strides = [1, 1]} : vector<8x384xf32> to vector<8x32xf32>
    %287 = tpu.transpose %285, [1, 0] : vector<8x32xf32> -> vector<32x8xf32>
    %cst_126 = arith.constant dense<0.000000e+00> : vector<8x8xf32>
    %288 = tpu.matmul %284, %287, %cst_126 {dimension_numbers = #tpu.dot_dimension_numbers<[1], [0], [0], [1], [0, 0, 1, 1], [], []>} : vector<8x32xf32>, vector<32x8xf32>, vector<8x8xf32> -> vector<8x8xf32>
    %cst_127 = arith.constant 0.176776692 : f32
    %289 = vector.broadcast %cst_127 : f32 to vector<8x8xf32>
    %290 = arith.mulf %288, %289 : vector<8x8xf32>
    %291 = vector.broadcast %53 : vector<1x8xf32> to vector<8x8xf32>
    %292 = arith.addf %290, %291 : vector<8x8xf32>
    %cst_128 = arith.constant dense<0xFF800000> : vector<8xf32>
    %293 = vector.multi_reduction <maximumf>, %292, %cst_128 [1] : vector<8x8xf32> to vector<8xf32>
    %294 = vector.shape_cast %293 : vector<8xf32> to vector<8x1xf32>
    %295 = vector.broadcast %294 : vector<8x1xf32> to vector<8x8xf32>
    %296 = arith.subf %292, %295 : vector<8x8xf32>
    %297 = math.exp %296 : vector<8x8xf32>
    %cst_129 = arith.constant dense<0.000000e+00> : vector<8xf32>
    %298 = vector.multi_reduction <add>, %297, %cst_129 [1] : vector<8x8xf32> to vector<8xf32>
    %299 = vector.shape_cast %298 : vector<8xf32> to vector<8x1xf32>
    %300 = tpu.reciprocal %299 {approx = true} : vector<8x1xf32> -> vector<8x1xf32>
    %301 = vector.broadcast %300 : vector<8x1xf32> to vector<8x8xf32>
    %302 = arith.mulf %297, %301 : vector<8x8xf32>
    %cst_130 = arith.constant dense<0.000000e+00> : vector<8x32xf32>
    %303 = tpu.matmul %302, %286, %cst_130 {dimension_numbers = #tpu.dot_dimension_numbers<[1], [0], [0], [1], [0, 0, 1, 1], [], []>} : vector<8x8xf32>, vector<8x32xf32>, vector<8x32xf32> -> vector<8x32xf32>
    %304 = arith.truncf %303 : vector<8x32xf32> to vector<8x32xbf16>
    %c5 = arith.constant 5 : index
    %c0_131 = arith.constant 0 : index
    %c0_132 = arith.constant 0 : index
    %305 = vector.load %arg11[%c5, %c0_131, %c0_132] : memref<8x32x128xbf16, #tpu.memory_space<vmem>>, vector<1x32x128xbf16>
    %306 = vector.shape_cast %305 : vector<1x32x128xbf16> to vector<32x128xbf16>
    %cst_133 = arith.constant dense<0.000000e+00> : vector<8x128xf32>
    %307 = tpu.matmul %304, %306, %cst_133 {dimension_numbers = #tpu.dot_dimension_numbers<[1], [0], [0], [1], [0, 0, 1, 1], [], []>} : vector<8x32xbf16>, vector<32x128xbf16>, vector<8x128xf32> -> vector<8x128xf32>
    %308 = arith.addf %283, %307 : vector<8x128xf32>
    %309 = vector.extract_strided_slice %257 {offsets = [0, 64], sizes = [8, 32], strides = [1, 1]} : vector<8x384xf32> to vector<8x32xf32>
    %310 = vector.extract_strided_slice %257 {offsets = [0, 192], sizes = [8, 32], strides = [1, 1]} : vector<8x384xf32> to vector<8x32xf32>
    %311 = vector.extract_strided_slice %257 {offsets = [0, 320], sizes = [8, 32], strides = [1, 1]} : vector<8x384xf32> to vector<8x32xf32>
    %312 = tpu.transpose %310, [1, 0] : vector<8x32xf32> -> vector<32x8xf32>
    %cst_134 = arith.constant dense<0.000000e+00> : vector<8x8xf32>
    %313 = tpu.matmul %309, %312, %cst_134 {dimension_numbers = #tpu.dot_dimension_numbers<[1], [0], [0], [1], [0, 0, 1, 1], [], []>} : vector<8x32xf32>, vector<32x8xf32>, vector<8x8xf32> -> vector<8x8xf32>
    %cst_135 = arith.constant 0.176776692 : f32
    %314 = vector.broadcast %cst_135 : f32 to vector<8x8xf32>
    %315 = arith.mulf %313, %314 : vector<8x8xf32>
    %316 = vector.broadcast %53 : vector<1x8xf32> to vector<8x8xf32>
    %317 = arith.addf %315, %316 : vector<8x8xf32>
    %cst_136 = arith.constant dense<0xFF800000> : vector<8xf32>
    %318 = vector.multi_reduction <maximumf>, %317, %cst_136 [1] : vector<8x8xf32> to vector<8xf32>
    %319 = vector.shape_cast %318 : vector<8xf32> to vector<8x1xf32>
    %320 = vector.broadcast %319 : vector<8x1xf32> to vector<8x8xf32>
    %321 = arith.subf %317, %320 : vector<8x8xf32>
    %322 = math.exp %321 : vector<8x8xf32>
    %cst_137 = arith.constant dense<0.000000e+00> : vector<8xf32>
    %323 = vector.multi_reduction <add>, %322, %cst_137 [1] : vector<8x8xf32> to vector<8xf32>
    %324 = vector.shape_cast %323 : vector<8xf32> to vector<8x1xf32>
    %325 = tpu.reciprocal %324 {approx = true} : vector<8x1xf32> -> vector<8x1xf32>
    %326 = vector.broadcast %325 : vector<8x1xf32> to vector<8x8xf32>
    %327 = arith.mulf %322, %326 : vector<8x8xf32>
    %cst_138 = arith.constant dense<0.000000e+00> : vector<8x32xf32>
    %328 = tpu.matmul %327, %311, %cst_138 {dimension_numbers = #tpu.dot_dimension_numbers<[1], [0], [0], [1], [0, 0, 1, 1], [], []>} : vector<8x8xf32>, vector<8x32xf32>, vector<8x32xf32> -> vector<8x32xf32>
    %329 = arith.truncf %328 : vector<8x32xf32> to vector<8x32xbf16>
    %c6 = arith.constant 6 : index
    %c0_139 = arith.constant 0 : index
    %c0_140 = arith.constant 0 : index
    %330 = vector.load %arg11[%c6, %c0_139, %c0_140] : memref<8x32x128xbf16, #tpu.memory_space<vmem>>, vector<1x32x128xbf16>
    %331 = vector.shape_cast %330 : vector<1x32x128xbf16> to vector<32x128xbf16>
    %cst_141 = arith.constant dense<0.000000e+00> : vector<8x128xf32>
    %332 = tpu.matmul %329, %331, %cst_141 {dimension_numbers = #tpu.dot_dimension_numbers<[1], [0], [0], [1], [0, 0, 1, 1], [], []>} : vector<8x32xbf16>, vector<32x128xbf16>, vector<8x128xf32> -> vector<8x128xf32>
    %333 = arith.addf %308, %332 : vector<8x128xf32>
    %334 = vector.extract_strided_slice %257 {offsets = [0, 96], sizes = [8, 32], strides = [1, 1]} : vector<8x384xf32> to vector<8x32xf32>
    %335 = vector.extract_strided_slice %257 {offsets = [0, 224], sizes = [8, 32], strides = [1, 1]} : vector<8x384xf32> to vector<8x32xf32>
    %336 = vector.extract_strided_slice %257 {offsets = [0, 352], sizes = [8, 32], strides = [1, 1]} : vector<8x384xf32> to vector<8x32xf32>
    %337 = tpu.transpose %335, [1, 0] : vector<8x32xf32> -> vector<32x8xf32>
    %cst_142 = arith.constant dense<0.000000e+00> : vector<8x8xf32>
    %338 = tpu.matmul %334, %337, %cst_142 {dimension_numbers = #tpu.dot_dimension_numbers<[1], [0], [0], [1], [0, 0, 1, 1], [], []>} : vector<8x32xf32>, vector<32x8xf32>, vector<8x8xf32> -> vector<8x8xf32>
    %cst_143 = arith.constant 0.176776692 : f32
    %339 = vector.broadcast %cst_143 : f32 to vector<8x8xf32>
    %340 = arith.mulf %338, %339 : vector<8x8xf32>
    %341 = vector.broadcast %53 : vector<1x8xf32> to vector<8x8xf32>
    %342 = arith.addf %340, %341 : vector<8x8xf32>
    %cst_144 = arith.constant dense<0xFF800000> : vector<8xf32>
    %343 = vector.multi_reduction <maximumf>, %342, %cst_144 [1] : vector<8x8xf32> to vector<8xf32>
    %344 = vector.shape_cast %343 : vector<8xf32> to vector<8x1xf32>
    %345 = vector.broadcast %344 : vector<8x1xf32> to vector<8x8xf32>
    %346 = arith.subf %342, %345 : vector<8x8xf32>
    %347 = math.exp %346 : vector<8x8xf32>
    %cst_145 = arith.constant dense<0.000000e+00> : vector<8xf32>
    %348 = vector.multi_reduction <add>, %347, %cst_145 [1] : vector<8x8xf32> to vector<8xf32>
    %349 = vector.shape_cast %348 : vector<8xf32> to vector<8x1xf32>
    %350 = tpu.reciprocal %349 {approx = true} : vector<8x1xf32> -> vector<8x1xf32>
    %351 = vector.broadcast %350 : vector<8x1xf32> to vector<8x8xf32>
    %352 = arith.mulf %347, %351 : vector<8x8xf32>
    %cst_146 = arith.constant dense<0.000000e+00> : vector<8x32xf32>
    %353 = tpu.matmul %352, %336, %cst_146 {dimension_numbers = #tpu.dot_dimension_numbers<[1], [0], [0], [1], [0, 0, 1, 1], [], []>} : vector<8x8xf32>, vector<8x32xf32>, vector<8x32xf32> -> vector<8x32xf32>
    %354 = arith.truncf %353 : vector<8x32xf32> to vector<8x32xbf16>
    %c7 = arith.constant 7 : index
    %c0_147 = arith.constant 0 : index
    %c0_148 = arith.constant 0 : index
    %355 = vector.load %arg11[%c7, %c0_147, %c0_148] : memref<8x32x128xbf16, #tpu.memory_space<vmem>>, vector<1x32x128xbf16>
    %356 = vector.shape_cast %355 : vector<1x32x128xbf16> to vector<32x128xbf16>
    %cst_149 = arith.constant dense<0.000000e+00> : vector<8x128xf32>
    %357 = tpu.matmul %354, %356, %cst_149 {dimension_numbers = #tpu.dot_dimension_numbers<[1], [0], [0], [1], [0, 0, 1, 1], [], []>} : vector<8x32xbf16>, vector<32x128xbf16>, vector<8x128xf32> -> vector<8x128xf32>
    %358 = arith.addf %333, %357 : vector<8x128xf32>
    %359 = arith.addf %249, %358 : vector<8x128xf32>
    %c1_150 = arith.constant 1 : index
    %c0_151 = arith.constant 0 : index
    %c0_152 = arith.constant 0 : index
    %360 = vector.load %arg12[%c1_150, %c0_151, %c0_152] : memref<2x1x128xf32, #tpu.memory_space<vmem>>, vector<1x1x128xf32>
    %361 = vector.shape_cast %360 : vector<1x1x128xf32> to vector<1x128xf32>
    %362 = vector.broadcast %361 : vector<1x128xf32> to vector<8x128xf32>
    %363 = arith.addf %359, %362 : vector<8x128xf32>
    %c1_153 = arith.constant 1 : index
    %c0_154 = arith.constant 0 : index
    %c0_155 = arith.constant 0 : index
    %364 = vector.load %arg13[%c1_153, %c0_154, %c0_155] : memref<2x1x128xf32, #tpu.memory_space<vmem>>, vector<1x1x128xf32>
    %365 = vector.shape_cast %364 : vector<1x1x128xf32> to vector<1x128xf32>
    %c1_156 = arith.constant 1 : index
    %c0_157 = arith.constant 0 : index
    %c0_158 = arith.constant 0 : index
    %366 = vector.load %arg14[%c1_156, %c0_157, %c0_158] : memref<2x1x128xf32, #tpu.memory_space<vmem>>, vector<1x1x128xf32>
    %367 = vector.shape_cast %366 : vector<1x1x128xf32> to vector<1x128xf32>
    %cst_159 = arith.constant dense<0.000000e+00> : vector<8xf32>
    %368 = vector.multi_reduction <add>, %363, %cst_159 [1] : vector<8x128xf32> to vector<8xf32>
    %369 = vector.shape_cast %368 : vector<8xf32> to vector<8x1xf32>
    %cst_160 = arith.constant 1.280000e+02 : f32
    %370 = vector.broadcast %cst_160 : f32 to vector<8x1xf32>
    %371 = arith.divf %369, %370 : vector<8x1xf32>
    %372 = vector.broadcast %371 : vector<8x1xf32> to vector<8x128xf32>
    %373 = arith.subf %363, %372 : vector<8x128xf32>
    %374 = arith.mulf %373, %373 : vector<8x128xf32>
    %cst_161 = arith.constant dense<0.000000e+00> : vector<8xf32>
    %375 = vector.multi_reduction <add>, %374, %cst_161 [1] : vector<8x128xf32> to vector<8xf32>
    %376 = vector.shape_cast %375 : vector<8xf32> to vector<8x1xf32>
    %cst_162 = arith.constant 1.280000e+02 : f32
    %377 = vector.broadcast %cst_162 : f32 to vector<8x1xf32>
    %378 = arith.divf %376, %377 : vector<8x1xf32>
    %379 = vector.broadcast %371 : vector<8x1xf32> to vector<8x128xf32>
    %380 = arith.subf %363, %379 : vector<8x128xf32>
    %cst_163 = arith.constant 9.99999974E-6 : f32
    %381 = vector.broadcast %cst_163 : f32 to vector<8x1xf32>
    %382 = arith.addf %378, %381 : vector<8x1xf32>
    %383 = math.rsqrt %382 : vector<8x1xf32>
    %384 = vector.broadcast %383 : vector<8x1xf32> to vector<8x128xf32>
    %385 = arith.mulf %380, %384 : vector<8x128xf32>
    %386 = vector.broadcast %365 : vector<1x128xf32> to vector<8x128xf32>
    %387 = arith.mulf %385, %386 : vector<8x128xf32>
    %388 = vector.broadcast %367 : vector<1x128xf32> to vector<8x128xf32>
    %389 = arith.addf %387, %388 : vector<8x128xf32>
    %390 = arith.truncf %389 : vector<8x128xf32> to vector<8x128xbf16>
    %c1_164 = arith.constant 1 : index
    %c0_165 = arith.constant 0 : index
    %c0_166 = arith.constant 0 : index
    %391 = vector.load %arg15[%c1_164, %c0_165, %c0_166] : memref<2x128x256xbf16, #tpu.memory_space<vmem>>, vector<1x128x256xbf16>
    %392 = vector.shape_cast %391 : vector<1x128x256xbf16> to vector<128x256xbf16>
    %cst_167 = arith.constant dense<0.000000e+00> : vector<8x256xf32>
    %393 = tpu.matmul %390, %392, %cst_167 {dimension_numbers = #tpu.dot_dimension_numbers<[1], [0], [0], [1], [0, 0, 1, 1], [], []>} : vector<8x128xbf16>, vector<128x256xbf16>, vector<8x256xf32> -> vector<8x256xf32>
    %c1_168 = arith.constant 1 : index
    %c0_169 = arith.constant 0 : index
    %c0_170 = arith.constant 0 : index
    %394 = vector.load %arg16[%c1_168, %c0_169, %c0_170] : memref<2x1x256xf32, #tpu.memory_space<vmem>>, vector<1x1x256xf32>
    %395 = vector.shape_cast %394 : vector<1x1x256xf32> to vector<1x256xf32>
    %396 = vector.broadcast %395 : vector<1x256xf32> to vector<8x256xf32>
    %397 = arith.addf %393, %396 : vector<8x256xf32>
    %cst_171 = arith.constant 5.000000e-01 : f32
    %398 = vector.broadcast %cst_171 : f32 to vector<8x256xf32>
    %399 = arith.mulf %398, %397 : vector<8x256xf32>
    %cst_172 = arith.constant 4.471500e-02 : f32
    %400 = vector.broadcast %cst_172 : f32 to vector<8x256xf32>
    %401 = arith.mulf %400, %397 : vector<8x256xf32>
    %402 = arith.mulf %401, %397 : vector<8x256xf32>
    %403 = arith.mulf %402, %397 : vector<8x256xf32>
    %404 = arith.addf %397, %403 : vector<8x256xf32>
    %cst_173 = arith.constant 0.797884583 : f32
    %405 = vector.broadcast %cst_173 : f32 to vector<8x256xf32>
    %406 = arith.mulf %405, %404 : vector<8x256xf32>
    %407 = math.tanh %406 : vector<8x256xf32>
    %cst_174 = arith.constant 1.000000e+00 : f32
    %408 = vector.broadcast %cst_174 : f32 to vector<8x256xf32>
    %409 = arith.addf %408, %407 : vector<8x256xf32>
    %410 = arith.mulf %399, %409 : vector<8x256xf32>
    %411 = arith.truncf %410 : vector<8x256xf32> to vector<8x256xbf16>
    %c1_175 = arith.constant 1 : index
    %c0_176 = arith.constant 0 : index
    %c0_177 = arith.constant 0 : index
    %412 = vector.load %arg17[%c1_175, %c0_176, %c0_177] : memref<2x256x128xbf16, #tpu.memory_space<vmem>>, vector<1x256x128xbf16>
    %413 = vector.shape_cast %412 : vector<1x256x128xbf16> to vector<256x128xbf16>
    %cst_178 = arith.constant dense<0.000000e+00> : vector<8x128xf32>
    %414 = tpu.matmul %411, %413, %cst_178 {dimension_numbers = #tpu.dot_dimension_numbers<[1], [0], [0], [1], [0, 0, 1, 1], [], []>} : vector<8x256xbf16>, vector<256x128xbf16>, vector<8x128xf32> -> vector<8x128xf32>
    %c1_179 = arith.constant 1 : index
    %c0_180 = arith.constant 0 : index
    %c0_181 = arith.constant 0 : index
    %415 = vector.load %arg18[%c1_179, %c0_180, %c0_181] : memref<2x1x128xf32, #tpu.memory_space<vmem>>, vector<1x1x128xf32>
    %416 = vector.shape_cast %415 : vector<1x1x128xf32> to vector<1x128xf32>
    %417 = vector.broadcast %416 : vector<1x128xf32> to vector<8x128xf32>
    %418 = arith.addf %414, %417 : vector<8x128xf32>
    %419 = arith.addf %389, %418 : vector<8x128xf32>
    %c1_182 = arith.constant 1 : index
    %c0_183 = arith.constant 0 : index
    %c0_184 = arith.constant 0 : index
    %420 = vector.load %arg19[%c1_182, %c0_183, %c0_184] : memref<2x1x128xf32, #tpu.memory_space<vmem>>, vector<1x1x128xf32>
    %421 = vector.shape_cast %420 : vector<1x1x128xf32> to vector<1x128xf32>
    %c1_185 = arith.constant 1 : index
    %c0_186 = arith.constant 0 : index
    %c0_187 = arith.constant 0 : index
    %422 = vector.load %arg20[%c1_185, %c0_186, %c0_187] : memref<2x1x128xf32, #tpu.memory_space<vmem>>, vector<1x1x128xf32>
    %423 = vector.shape_cast %422 : vector<1x1x128xf32> to vector<1x128xf32>
    %cst_188 = arith.constant dense<0.000000e+00> : vector<8xf32>
    %424 = vector.multi_reduction <add>, %419, %cst_188 [1] : vector<8x128xf32> to vector<8xf32>
    %425 = vector.shape_cast %424 : vector<8xf32> to vector<8x1xf32>
    %cst_189 = arith.constant 1.280000e+02 : f32
    %426 = vector.broadcast %cst_189 : f32 to vector<8x1xf32>
    %427 = arith.divf %425, %426 : vector<8x1xf32>
    %428 = vector.broadcast %427 : vector<8x1xf32> to vector<8x128xf32>
    %429 = arith.subf %419, %428 : vector<8x128xf32>
    %430 = arith.mulf %429, %429 : vector<8x128xf32>
    %cst_190 = arith.constant dense<0.000000e+00> : vector<8xf32>
    %431 = vector.multi_reduction <add>, %430, %cst_190 [1] : vector<8x128xf32> to vector<8xf32>
    %432 = vector.shape_cast %431 : vector<8xf32> to vector<8x1xf32>
    %cst_191 = arith.constant 1.280000e+02 : f32
    %433 = vector.broadcast %cst_191 : f32 to vector<8x1xf32>
    %434 = arith.divf %432, %433 : vector<8x1xf32>
    %435 = vector.broadcast %427 : vector<8x1xf32> to vector<8x128xf32>
    %436 = arith.subf %419, %435 : vector<8x128xf32>
    %cst_192 = arith.constant 9.99999974E-6 : f32
    %437 = vector.broadcast %cst_192 : f32 to vector<8x1xf32>
    %438 = arith.addf %434, %437 : vector<8x1xf32>
    %439 = math.rsqrt %438 : vector<8x1xf32>
    %440 = vector.broadcast %439 : vector<8x1xf32> to vector<8x128xf32>
    %441 = arith.mulf %436, %440 : vector<8x128xf32>
    %442 = vector.broadcast %421 : vector<1x128xf32> to vector<8x128xf32>
    %443 = arith.mulf %441, %442 : vector<8x128xf32>
    %444 = vector.broadcast %423 : vector<1x128xf32> to vector<8x128xf32>
    %445 = arith.addf %443, %444 : vector<8x128xf32>
    %cst_193 = arith.constant dense<0xFF800000> : vector<128xf32>
    %446 = vector.multi_reduction <maximumf>, %445, %cst_193 [0] : vector<8x128xf32> to vector<128xf32>
    %447 = vector.shape_cast %446 : vector<128xf32> to vector<1x128xf32>
    %448 = arith.truncf %447 : vector<1x128xf32> to vector<1x128xbf16>
    %c0_194 = arith.constant 0 : index
    %c0_195 = arith.constant 0 : index
    %449 = vector.load %arg21[%c0_194, %c0_195] : memref<128x2xbf16, #tpu.memory_space<vmem>>, vector<128x2xbf16>
    %cst_196 = arith.constant dense<0.000000e+00> : vector<1x2xf32>
    %450 = tpu.matmul %448, %449, %cst_196 {dimension_numbers = #tpu.dot_dimension_numbers<[1], [0], [0], [1], [0, 0, 1, 1], [], []>} : vector<1x128xbf16>, vector<128x2xbf16>, vector<1x2xf32> -> vector<1x2xf32>
    %c0_197 = arith.constant 0 : index
    %c0_198 = arith.constant 0 : index
    %451 = vector.load %arg22[%c0_197, %c0_198] : memref<1x2xf32, #tpu.memory_space<vmem>>, vector<1x2xf32>
    %452 = arith.addf %450, %451 : vector<1x2xf32>
    %cst_199 = arith.constant dense<0xFF800000> : vector<1xf32>
    %453 = vector.multi_reduction <maximumf>, %452, %cst_199 [1] : vector<1x2xf32> to vector<1xf32>
    %454 = vector.shape_cast %453 : vector<1xf32> to vector<1x1xf32>
    %455 = vector.broadcast %454 : vector<1x1xf32> to vector<1x2xf32>
    %456 = arith.subf %452, %455 : vector<1x2xf32>
    %457 = math.exp %456 : vector<1x2xf32>
    %cst_200 = arith.constant dense<0.000000e+00> : vector<1xf32>
    %458 = vector.multi_reduction <add>, %457, %cst_200 [1] : vector<1x2xf32> to vector<1xf32>
    %459 = vector.shape_cast %458 : vector<1xf32> to vector<1x1xf32>
    %460 = math.log %459 : vector<1x1xf32>
    %461 = vector.broadcast %460 : vector<1x1xf32> to vector<1x2xf32>
    %462 = arith.subf %456, %461 : vector<1x2xf32>
    %c0_201 = arith.constant 0 : index
    %c0_202 = arith.constant 0 : index
    %c0_203 = arith.constant 0 : index
    %463 = vector.load %arg23[%c0_201, %c0_202, %c0_203] : memref<1x1x2xf32, #tpu.memory_space<vmem>>, vector<1x1x2xf32>
    %464 = vector.shape_cast %463 : vector<1x1x2xf32> to vector<1x2xf32>
    %465 = vector.shape_cast %462 : vector<1x2xf32> to vector<1x1x2xf32>
    tpu.vector_store %arg23[%c0_201, %c0_202, %c0_203], %465 {strides = array<i32>} : memref<1x1x2xf32, #tpu.memory_space<vmem>>, vector<1x1x2xf32>,
    return
  }
  func.func @transform_0(%arg0: i32) -> (i32, i32, i32) {
    %c0_i32 = arith.constant 0 : i32
    %c0_i32_0 = arith.constant 0 : i32
    %c0_i32_1 = arith.constant 0 : i32
    return %arg0, %c0_i32, %c0_i32_0 : i32, i32, i32
  }
  func.func @transform_1(%arg0: i32) -> (i32, i32, i32) {
    %c0_i32 = arith.constant 0 : i32
    %c0_i32_0 = arith.constant 0 : i32
    %c0_i32_1 = arith.constant 0 : i32
    return %arg0, %c0_i32, %c0_i32_0 : i32, i32, i32
  }
  func.func @transform_2(%arg0: i32) -> (i32, i32, i32) {
    %c0_i32 = arith.constant 0 : i32
    %c0_i32_0 = arith.constant 0 : i32
    %c0_i32_1 = arith.constant 0 : i32
    return %arg0, %c0_i32, %c0_i32_0 : i32, i32, i32
  }
  func.func @transform_3(%arg0: i32) -> (i32, i32) {
    %c0_i32 = arith.constant 0 : i32
    %c0_i32_0 = arith.constant 0 : i32
    %c0_i32_1 = arith.constant 0 : i32
    return %c0_i32, %c0_i32_0 : i32, i32
  }
  func.func @transform_4(%arg0: i32) -> (i32, i32) {
    %c0_i32 = arith.constant 0 : i32
    %c0_i32_0 = arith.constant 0 : i32
    %c0_i32_1 = arith.constant 0 : i32
    return %c0_i32, %c0_i32_0 : i32, i32
  }
  func.func @transform_5(%arg0: i32) -> (i32, i32) {
    %c0_i32 = arith.constant 0 : i32
    %c0_i32_0 = arith.constant 0 : i32
    %c0_i32_1 = arith.constant 0 : i32
    return %c0_i32, %c0_i32_0 : i32, i32
  }
  func.func @transform_6(%arg0: i32) -> (i32, i32) {
    %c0_i32 = arith.constant 0 : i32
    %c0_i32_0 = arith.constant 0 : i32
    %c0_i32_1 = arith.constant 0 : i32
    return %c0_i32, %c0_i32_0 : i32, i32
  }
  func.func @transform_7(%arg0: i32) -> (i32, i32) {
    %c0_i32 = arith.constant 0 : i32
    %c0_i32_0 = arith.constant 0 : i32
    %c0_i32_1 = arith.constant 0 : i32
    return %c0_i32, %c0_i32_0 : i32, i32
  }
  func.func @transform_8(%arg0: i32) -> (i32, i32, i32) {
    %c0_i32 = arith.constant 0 : i32
    %c0_i32_0 = arith.constant 0 : i32
    %c0_i32_1 = arith.constant 0 : i32
    %c0_i32_2 = arith.constant 0 : i32
    return %c0_i32, %c0_i32_0, %c0_i32_1 : i32, i32, i32
  }
  func.func @transform_9(%arg0: i32) -> (i32, i32, i32) {
    %c0_i32 = arith.constant 0 : i32
    %c0_i32_0 = arith.constant 0 : i32
    %c0_i32_1 = arith.constant 0 : i32
    %c0_i32_2 = arith.constant 0 : i32
    return %c0_i32, %c0_i32_0, %c0_i32_1 : i32, i32, i32
  }
  func.func @transform_10(%arg0: i32) -> (i32, i32, i32) {
    %c0_i32 = arith.constant 0 : i32
    %c0_i32_0 = arith.constant 0 : i32
    %c0_i32_1 = arith.constant 0 : i32
    %c0_i32_2 = arith.constant 0 : i32
    return %c0_i32, %c0_i32_0, %c0_i32_1 : i32, i32, i32
  }
  func.func @transform_11(%arg0: i32) -> (i32, i32, i32) {
    %c0_i32 = arith.constant 0 : i32
    %c0_i32_0 = arith.constant 0 : i32
    %c0_i32_1 = arith.constant 0 : i32
    %c0_i32_2 = arith.constant 0 : i32
    return %c0_i32, %c0_i32_0, %c0_i32_1 : i32, i32, i32
  }
  func.func @transform_12(%arg0: i32) -> (i32, i32, i32) {
    %c0_i32 = arith.constant 0 : i32
    %c0_i32_0 = arith.constant 0 : i32
    %c0_i32_1 = arith.constant 0 : i32
    %c0_i32_2 = arith.constant 0 : i32
    return %c0_i32, %c0_i32_0, %c0_i32_1 : i32, i32, i32
  }
  func.func @transform_13(%arg0: i32) -> (i32, i32, i32) {
    %c0_i32 = arith.constant 0 : i32
    %c0_i32_0 = arith.constant 0 : i32
    %c0_i32_1 = arith.constant 0 : i32
    %c0_i32_2 = arith.constant 0 : i32
    return %c0_i32, %c0_i32_0, %c0_i32_1 : i32, i32, i32
  }
  func.func @transform_14(%arg0: i32) -> (i32, i32, i32) {
    %c0_i32 = arith.constant 0 : i32
    %c0_i32_0 = arith.constant 0 : i32
    %c0_i32_1 = arith.constant 0 : i32
    %c0_i32_2 = arith.constant 0 : i32
    return %c0_i32, %c0_i32_0, %c0_i32_1 : i32, i32, i32
  }
  func.func @transform_15(%arg0: i32) -> (i32, i32, i32) {
    %c0_i32 = arith.constant 0 : i32
    %c0_i32_0 = arith.constant 0 : i32
    %c0_i32_1 = arith.constant 0 : i32
    %c0_i32_2 = arith.constant 0 : i32
    return %c0_i32, %c0_i32_0, %c0_i32_1 : i32, i32, i32
  }
  func.func @transform_16(%arg0: i32) -> (i32, i32, i32) {
    %c0_i32 = arith.constant 0 : i32
    %c0_i32_0 = arith.constant 0 : i32
    %c0_i32_1 = arith.constant 0 : i32
    %c0_i32_2 = arith.constant 0 : i32
    return %c0_i32, %c0_i32_0, %c0_i32_1 : i32, i32, i32
  }
  func.func @transform_17(%arg0: i32) -> (i32, i32, i32) {
    %c0_i32 = arith.constant 0 : i32
    %c0_i32_0 = arith.constant 0 : i32
    %c0_i32_1 = arith.constant 0 : i32
    %c0_i32_2 = arith.constant 0 : i32
    return %c0_i32, %c0_i32_0, %c0_i32_1 : i32, i32, i32
  }
  func.func @transform_18(%arg0: i32) -> (i32, i32, i32) {
    %c0_i32 = arith.constant 0 : i32
    %c0_i32_0 = arith.constant 0 : i32
    %c0_i32_1 = arith.constant 0 : i32
    %c0_i32_2 = arith.constant 0 : i32
    return %c0_i32, %c0_i32_0, %c0_i32_1 : i32, i32, i32
  }
  func.func @transform_19(%arg0: i32) -> (i32, i32, i32) {
    %c0_i32 = arith.constant 0 : i32
    %c0_i32_0 = arith.constant 0 : i32
    %c0_i32_1 = arith.constant 0 : i32
    %c0_i32_2 = arith.constant 0 : i32
    return %c0_i32, %c0_i32_0, %c0_i32_1 : i32, i32, i32
  }
  func.func @transform_20(%arg0: i32) -> (i32, i32) {
    %c0_i32 = arith.constant 0 : i32
    %c0_i32_0 = arith.constant 0 : i32
    %c0_i32_1 = arith.constant 0 : i32
    return %c0_i32, %c0_i32_0 : i32, i32
  }
  func.func @transform_21(%arg0: i32) -> (i32, i32) {
    %c0_i32 = arith.constant 0 : i32
    %c0_i32_0 = arith.constant 0 : i32
    %c0_i32_1 = arith.constant 0 : i32
    return %c0_i32, %c0_i32_0 : i32, i32
  }
  func.func @transform_22(%arg0: i32) -> (i32, i32, i32) {
    %c0_i32 = arith.constant 0 : i32
    %c0_i32_0 = arith.constant 0 : i32
    %c0_i32_1 = arith.constant 0 : i32
    return %arg0, %c0_i32, %c0_i32_0 : i32, i32, i32
  }
}

</mosaic_0001>

<llo_original>
// kernel: transformer_classifier.1
$region0: #{transformer_classifier.1}
  #allocation0 [shape = 'u32[]', space=smem, size = 0x4, offset = 0x4, fixed_abs, tag = 'smem constant byte address 0x4 - core index']
  #allocation1 [shape = 'u32[144,128]{1,0:T(1,128)}', space=vmem, size = 0x12000, scoped, tag = 'internal scratch']
  %s0 = inlined_call_operand.vmem [shape: s32[2,8,1], index: 0, kind: input, shape index: {}]
  %s1 = inlined_call_operand.vmem [shape: s32[2,8,1], index: 1, kind: input, shape index: {}]
  %s2 = inlined_call_operand.vmem [shape: s32[2,1,8], index: 2, kind: input, shape index: {}]
  %s3 = inlined_call_operand.hbm [shape: bf16[128,128], index: 3, kind: input, shape index: {}]
  %s4 = inlined_call_operand.hbm [shape: bf16[128,128], index: 4, kind: input, shape index: {}]
  %s5 = inlined_call_operand.vmem [shape: f32[1,128], index: 5, kind: input, shape index: {}]
  %s6 = inlined_call_operand.vmem [shape: f32[1,128], index: 6, kind: input, shape index: {}]
  %s7 = inlined_call_operand.vmem [shape: f32[1,128], index: 7, kind: input, shape index: {}]
  %s8 = inlined_call_operand.hbm [shape: bf16[2,128,384], index: 8, kind: input, shape index: {}]
  %s9 = inlined_call_operand.vmem [shape: f32[2,1,384], index: 9, kind: input, shape index: {}]
  %s10 = inlined_call_operand.vmem [shape: bf16[8,32,128], index: 10, kind: input, shape index: {}]
  %s11 = inlined_call_operand.vmem [shape: f32[2,1,128], index: 11, kind: input, shape index: {}]
  %s12 = inlined_call_operand.vmem [shape: f32[2,1,128], index: 12, kind: input, shape index: {}]
  %s13 = inlined_call_operand.vmem [shape: f32[2,1,128], index: 13, kind: input, shape index: {}]
  %s14 = inlined_call_operand.hbm [shape: bf16[2,128,256], index: 14, kind: input, shape index: {}]
  %s15 = inlined_call_operand.vmem [shape: f32[2,1,256], index: 15, kind: input, shape index: {}]
  %s16 = inlined_call_operand.hbm [shape: bf16[2,256,128], index: 16, kind: input, shape index: {}]
  %s17 = inlined_call_operand.vmem [shape: f32[2,1,128], index: 17, kind: input, shape index: {}]
  %s18 = inlined_call_operand.vmem [shape: f32[2,1,128], index: 18, kind: input, shape index: {}]
  %s19 = inlined_call_operand.vmem [shape: f32[2,1,128], index: 19, kind: input, shape index: {}]
  %s20 = inlined_call_operand.vmem [shape: bf16[128,2], index: 20, kind: input, shape index: {}]
  %s21 = inlined_call_operand.vmem [shape: f32[1,2], index: 21, kind: input, shape index: {}]
  %s22 = inlined_call_operand.hbm [shape: f32[2,1,2], index: 22, kind: output, shape index: {}]
  %s23 = sld [smem:[#allocation0]]
  $region141: #{transformer_classifier.1} parent=0
    _
  %s25 = ssub.s32 1, %s23
  %s26 = scalar_select 0, %s25, %s23
  $region1: #{transformer_classifier.1} parent=0
    #allocation2 [shape = 'u8[32768]{0}', space=vmem, size = 0x8000, scoped, tag = 'input window, operand 3, single buffered']
    #allocation3 [shape = 's32[2]{0}', space=sflag, size = 0x8, scoped, tag = 'scoped memory for transformer_classifier.1']
    #allocation4 [shape = 's32[2]{0}', space=sflag, size = 0x8, scoped, tag = 'scoped memory for transformer_classifier.1']
    #allocation5 [shape = 'u8[32768]{0}', space=vmem, size = 0x8000, scoped, tag = 'input window, operand 4, single buffered']
    #allocation6 [shape = 's32[1]{0}', space=sflag, size = 0x4, scoped, tag = 'scoped memory for transformer_classifier.1']
    #allocation7 [shape = 'u8[196608]{0}', space=vmem, size = 0x30000, scoped, tag = 'input window, operand 8, single buffered']
    #allocation8 [shape = 'u8[131072]{0}', space=vmem, size = 0x20000, scoped, tag = 'input window, operand 14, single buffered']
    #allocation9 [shape = 's32[1]{0}', space=sflag, size = 0x4, scoped, tag = 'scoped memory for transformer_classifier.1']
    #allocation10 [shape = 'u8[131072]{0}', space=vmem, size = 0x20000, scoped, tag = 'input window, operand 16, single buffered']
    #allocation11 [shape = 'u8[1024]{0}', space=vmem, size = 0x400, scoped, tag = 'output window, operand 0']
    %27 = vsyncpa [#allocation3], 0
    %28 = vsyncpa [#allocation6], 0
    %29 = vsyncpa [#allocation9], 0
    %30 = vsyncpa [#allocation4], 0
    %s31 = scalar_lea.sflag [#allocation4], 1
    %32 = vsyncpa %s31, 0
    loop: start=0, step=1, limit=4
    $region2: #{transformer_classifier.1} parent=1 // loop_pre_header
      _
    $region3: #{transformer_classifier.1} parent=1 // loop_header
      %s34 = sphi 0, %s38
      %p35 = scmp.ge.s32.totalorder %s34, 4
      %s44 = sphi 0, %s46
      %s47 = sphi 0, %s44
      %s48 = sphi 0, %s47
      %s64 = sphi 0, %s48
      %s70 = sphi 0, %s72
      %s73 = sphi 0, %s70
      %s74 = sphi 0, %s73
      %s90 = sphi 0, %s74
      %s96 = sphi 0, %s98
      %s99 = sphi 0, %s96
      %s100 = sphi 0, %s99
      %s116 = sphi 0, %s100
      %s120 = sphi 0, %s120
      %s122 = sphi 0, %s120
      %s123 = sphi 0, %s122
      %s137 = sphi 0, %s123
      %s141 = sphi 0, %s141
      %s143 = sphi 0, %s141
      %s144 = sphi 0, %s143
      %s158 = sphi 0, %s144
      %s162 = sphi 0, %s162
      %s164 = sphi 0, %s162
      %s165 = sphi 0, %s164
      %s179 = sphi 0, %s165
      %s183 = sphi 0, %s183
      %s185 = sphi 0, %s183
      %s186 = sphi 0, %s185
      %s200 = sphi 0, %s186
      %s204 = sphi 0, %s204
      %s206 = sphi 0, %s204
      %s207 = sphi 0, %s206
      %s221 = sphi 0, %s207
      %s225 = sphi 0, %s225
      %s227 = sphi 0, %s225
      %s228 = sphi 0, %s227
      %s242 = sphi 0, %s228
      %s246 = sphi 0, %s246
      %s248 = sphi 0, %s246
      %s249 = sphi 0, %s248
      %s263 = sphi 0, %s249
      %s267 = sphi 0, %s267
      %s269 = sphi 0, %s267
      %s270 = sphi 0, %s269
      %s284 = sphi 0, %s270
      %s288 = sphi 0, %s288
      %s290 = sphi 0, %s288
      %s291 = sphi 0, %s290
      %s305 = sphi 0, %s291
      %s309 = sphi 0, %s309
      %s311 = sphi 0, %s309
      %s312 = sphi 0, %s311
      %s326 = sphi 0, %s312
      %s330 = sphi 0, %s330
      %s332 = sphi 0, %s330
      %s333 = sphi 0, %s332
      %s347 = sphi 0, %s333
      %s351 = sphi 0, %s351
      %s353 = sphi 0, %s351
      %s354 = sphi 0, %s353
      %s368 = sphi 0, %s354
      %s372 = sphi 0, %s372
      %s374 = sphi 0, %s372
      %s375 = sphi 0, %s374
      %s389 = sphi 0, %s375
      %s393 = sphi 0, %s393
      %s395 = sphi 0, %s393
      %s396 = sphi 0, %s395
      %s410 = sphi 0, %s396
      %s414 = sphi 0, %s414
      %s416 = sphi 0, %s414
      %s417 = sphi 0, %s416
      %s431 = sphi 0, %s417
      %s435 = sphi 0, %s435
      %s437 = sphi 0, %s435
      %s438 = sphi 0, %s437
      %s452 = sphi 0, %s438
      %s456 = sphi 0, %s456
      %s458 = sphi 0, %s456
      %s459 = sphi 0, %s458
      %s473 = sphi 0, %s459
      %s477 = sphi 0, %s477
      %s479 = sphi 0, %s477
      %s480 = sphi 0, %s479
      %s494 = sphi 0, %s480
      %s498 = sphi 0, %s498
      %s500 = sphi 0, %s498
      %s501 = sphi 0, %s500
      %s515 = sphi 0, %s501
      %s521 = sphi 0, %s523
      %s524 = sphi 0, %s521
      %s525 = sphi 0, %s524
      %s541 = sphi 0, %s525
    $region4: #{transformer_classifier.1} parent=1 // loop_header_branch
      %37 = sbr.rel (%p35) target = $region8
    $region5: #{transformer_classifier.1} parent=1 // loop_body
      %s39 = ssub.s32 %s34, 1
      %s40 = ssub.s32 %s34, 2
      %s41 = sadd.s32 %s34, 1
      %s42 = ssub.s32 %s34, %s41
      %p43 = scmp.eq.s32.totalorder %s42, 0
      %s45 = sadd.s32 %s44, 1
      %s46 = scalar_select %p43, %s44, %s45
      %p49 = pneg %p43
      %p50 = scmp.eq.s32.totalorder %s34, 1
      %p51 = por %p49, %p50
      %p52 = scmp.ne.s32.totalorder %s44, %s47
      %p53 = scmp.eq.s32.totalorder %s34, 0
      %p54 = por %p52, %p53
      %p55 = scmp.ne.s32.totalorder %s44, %s47
      %p56 = scmp.eq.s32.totalorder %s39, 1
      %p57 = por %p55, %p56
      %p58 = scmp.ne.s32.totalorder %s47, %s48
      %p59 = scmp.eq.s32.totalorder %s39, 0
      %p60 = por %p58, %p59
      %p61 = scmp.ne.s32.totalorder %s47, %s48
      %p62 = scmp.eq.s32.totalorder %s40, 1
      %p63 = por %p61, %p62
      %p65 = scmp.ne.s32.totalorder %s48, %s64
      %p66 = scmp.eq.s32.totalorder %s40, 0
      %p67 = por %p65, %p66
      %s68 = ssub.s32 %s34, %s41
      %p69 = scmp.eq.s32.totalorder %s68, 0
      %s71 = sadd.s32 %s70, 1
      %s72 = scalar_select %p69, %s70, %s71
      %p75 = pneg %p69
      %p76 = scmp.eq.s32.totalorder %s34, 1
      %p77 = por %p75, %p76
      %p78 = scmp.ne.s32.totalorder %s70, %s73
      %p79 = scmp.eq.s32.totalorder %s34, 0
      %p80 = por %p78, %p79
      %p81 = scmp.ne.s32.totalorder %s70, %s73
      %p82 = scmp.eq.s32.totalorder %s39, 1
      %p83 = por %p81, %p82
      %p84 = scmp.ne.s32.totalorder %s73, %s74
      %p85 = scmp.eq.s32.totalorder %s39, 0
      %p86 = por %p84, %p85
      %p87 = scmp.ne.s32.totalorder %s73, %s74
      %p88 = scmp.eq.s32.totalorder %s40, 1
      %p89 = por %p87, %p88
      %p91 = scmp.ne.s32.totalorder %s74, %s90
      %p92 = scmp.eq.s32.totalorder %s40, 0
      %p93 = por %p91, %p92
      %s94 = ssub.s32 %s34, %s41
      %p95 = scmp.eq.s32.totalorder %s94, 0
      %s97 = sadd.s32 %s96, 1
      %s98 = scalar_select %p95, %s96, %s97
      %p101 = pneg %p95
      %p102 = scmp.eq.s32.totalorder %s34, 1
      %p103 = por %p101, %p102
      %p104 = scmp.ne.s32.totalorder %s96, %s99
      %p105 = scmp.eq.s32.totalorder %s34, 0
      %p106 = por %p104, %p105
      %p107 = scmp.ne.s32.totalorder %s96, %s99
      %p108 = scmp.eq.s32.totalorder %s39, 1
      %p109 = por %p107, %p108
      %p110 = scmp.ne.s32.totalorder %s99, %s100
      %p111 = scmp.eq.s32.totalorder %s39, 0
      %p112 = por %p110, %p111
      %p113 = scmp.ne.s32.totalorder %s99, %s100
      %p114 = scmp.eq.s32.totalorder %s40, 1
      %p115 = por %p113, %p114
      %p117 = scmp.ne.s32.totalorder %s100, %s116
      %p118 = scmp.eq.s32.totalorder %s40, 0
      %p119 = por %p117, %p118
      %s121 = sadd.s32 %s120, 1
      %p124 = scmp.eq.s32.totalorder %s34, 1
      %p125 = scmp.ne.s32.totalorder %s120, %s122
      %p126 = scmp.eq.s32.totalorder %s34, 0
      %p127 = por %p125, %p126
      %p128 = scmp.ne.s32.totalorder %s120, %s122
      %p129 = scmp.eq.s32.totalorder %s39, 1
      %p130 = por %p128, %p129
      %p131 = scmp.ne.s32.totalorder %s122, %s123
      %p132 = scmp.eq.s32.totalorder %s39, 0
      %p133 = por %p131, %p132
      %p134 = scmp.ne.s32.totalorder %s122, %s123
      %p135 = scmp.eq.s32.totalorder %s40, 1
      %p136 = por %p134, %p135
      %p138 = scmp.ne.s32.totalorder %s123, %s137
      %p139 = scmp.eq.s32.totalorder %s40, 0
      %p140 = por %p138, %p139
      %s142 = sadd.s32 %s141, 1
      %p145 = scmp.eq.s32.totalorder %s34, 1
      %p146 = scmp.ne.s32.totalorder %s141, %s143
      %p147 = scmp.eq.s32.totalorder %s34, 0
      %p148 = por %p146, %p147
      %p149 = scmp.ne.s32.totalorder %s141, %s143
      %p150 = scmp.eq.s32.totalorder %s39, 1
      %p151 = por %p149, %p150
      %p152 = scmp.ne.s32.totalorder %s143, %s144
      %p153 = scmp.eq.s32.totalorder %s39, 0
      %p154 = por %p152, %p153
      %p155 = scmp.ne.s32.totalorder %s143, %s144
      %p156 = scmp.eq.s32.totalorder %s40, 1
      %p157 = por %p155, %p156
      %p159 = scmp.ne.s32.totalorder %s144, %s158
      %p160 = scmp.eq.s32.totalorder %s40, 0
      %p161 = por %p159, %p160
      %s163 = sadd.s32 %s162, 1
      %p166 = scmp.eq.s32.totalorder %s34, 1
      %p167 = scmp.ne.s32.totalorder %s162, %s164
      %p168 = scmp.eq.s32.totalorder %s34, 0
      %p169 = por %p167, %p168
      %p170 = scmp.ne.s32.totalorder %s162, %s164
      %p171 = scmp.eq.s32.totalorder %s39, 1
      %p172 = por %p170, %p171
      %p173 = scmp.ne.s32.totalorder %s164, %s165
      %p174 = scmp.eq.s32.totalorder %s39, 0
      %p175 = por %p173, %p174
      %p176 = scmp.ne.s32.totalorder %s164, %s165
      %p177 = scmp.eq.s32.totalorder %s40, 1
      %p178 = por %p176, %p177
      %p180 = scmp.ne.s32.totalorder %s165, %s179
      %p181 = scmp.eq.s32.totalorder %s40, 0
      %p182 = por %p180, %p181
      %s184 = sadd.s32 %s183, 1
      %p187 = scmp.eq.s32.totalorder %s34, 1
      %p188 = scmp.ne.s32.totalorder %s183, %s185
      %p189 = scmp.eq.s32.totalorder %s34, 0
      %p190 = por %p188, %p189
      %p191 = scmp.ne.s32.totalorder %s183, %s185
      %p192 = scmp.eq.s32.totalorder %s39, 1
      %p193 = por %p191, %p192
      %p194 = scmp.ne.s32.totalorder %s185, %s186
      %p195 = scmp.eq.s32.totalorder %s39, 0
      %p196 = por %p194, %p195
      %p197 = scmp.ne.s32.totalorder %s185, %s186
      %p198 = scmp.eq.s32.totalorder %s40, 1
      %p199 = por %p197, %p198
      %p201 = scmp.ne.s32.totalorder %s186, %s200
      %p202 = scmp.eq.s32.totalorder %s40, 0
      %p203 = por %p201, %p202
      %s205 = sadd.s32 %s204, 1
      %p208 = scmp.eq.s32.totalorder %s34, 1
      %p209 = scmp.ne.s32.totalorder %s204, %s206
      %p210 = scmp.eq.s32.totalorder %s34, 0
      %p211 = por %p209, %p210
      %p212 = scmp.ne.s32.totalorder %s204, %s206
      %p213 = scmp.eq.s32.totalorder %s39, 1
      %p214 = por %p212, %p213
      %p215 = scmp.ne.s32.totalorder %s206, %s207
      %p216 = scmp.eq.s32.totalorder %s39, 0
      %p217 = por %p215, %p216
      %p218 = scmp.ne.s32.totalorder %s206, %s207
      %p219 = scmp.eq.s32.totalorder %s40, 1
      %p220 = por %p218, %p219
      %p222 = scmp.ne.s32.totalorder %s207, %s221
      %p223 = scmp.eq.s32.totalorder %s40, 0
      %p224 = por %p222, %p223
      %s226 = sadd.s32 %s225, 1
      %p229 = scmp.eq.s32.totalorder %s34, 1
      %p230 = scmp.ne.s32.totalorder %s225, %s227
      %p231 = scmp.eq.s32.totalorder %s34, 0
      %p232 = por %p230, %p231
      %p233 = scmp.ne.s32.totalorder %s225, %s227
      %p234 = scmp.eq.s32.totalorder %s39, 1
      %p235 = por %p233, %p234
      %p236 = scmp.ne.s32.totalorder %s227, %s228
      %p237 = scmp.eq.s32.totalorder %s39, 0
      %p238 = por %p236, %p237
      %p239 = scmp.ne.s32.totalorder %s227, %s228
      %p240 = scmp.eq.s32.totalorder %s40, 1
      %p241 = por %p239, %p240
      %p243 = scmp.ne.s32.totalorder %s228, %s242
      %p244 = scmp.eq.s32.totalorder %s40, 0
      %p245 = por %p243, %p244
      %s247 = sadd.s32 %s246, 1
      %p250 = scmp.eq.s32.totalorder %s34, 1
      %p251 = scmp.ne.s32.totalorder %s246, %s248
      %p252 = scmp.eq.s32.totalorder %s34, 0
      %p253 = por %p251, %p252
      %p254 = scmp.ne.s32.totalorder %s246, %s248
      %p255 = scmp.eq.s32.totalorder %s39, 1
      %p256 = por %p254, %p255
      %p257 = scmp.ne.s32.totalorder %s248, %s249
      %p258 = scmp.eq.s32.totalorder %s39, 0
      %p259 = por %p257, %p258
      %p260 = scmp.ne.s32.totalorder %s248, %s249
      %p261 = scmp.eq.s32.totalorder %s40, 1
      %p262 = por %p260, %p261
      %p264 = scmp.ne.s32.totalorder %s249, %s263
      %p265 = scmp.eq.s32.totalorder %s40, 0
      %p266 = por %p264, %p265
      %s268 = sadd.s32 %s267, 1
      %p271 = scmp.eq.s32.totalorder %s34, 1
      %p272 = scmp.ne.s32.totalorder %s267, %s269
      %p273 = scmp.eq.s32.totalorder %s34, 0
      %p274 = por %p272, %p273
      %p275 = scmp.ne.s32.totalorder %s267, %s269
      %p276 = scmp.eq.s32.totalorder %s39, 1
      %p277 = por %p275, %p276
      %p278 = scmp.ne.s32.totalorder %s269, %s270
      %p279 = scmp.eq.s32.totalorder %s39, 0
      %p280 = por %p278, %p279
      %p281 = scmp.ne.s32.totalorder %s269, %s270
      %p282 = scmp.eq.s32.totalorder %s40, 1
      %p283 = por %p281, %p282
      %p285 = scmp.ne.s32.totalorder %s270, %s284
      %p286 = scmp.eq.s32.totalorder %s40, 0
      %p287 = por %p285, %p286
      %s289 = sadd.s32 %s288, 1
      %p292 = scmp.eq.s32.totalorder %s34, 1
      %p293 = scmp.ne.s32.totalorder %s288, %s290
      %p294 = scmp.eq.s32.totalorder %s34, 0
      %p295 = por %p293, %p294
      %p296 = scmp.ne.s32.totalorder %s288, %s290
      %p297 = scmp.eq.s32.totalorder %s39, 1
      %p298 = por %p296, %p297
      %p299 = scmp.ne.s32.totalorder %s290, %s291
      %p300 = scmp.eq.s32.totalorder %s39, 0
      %p301 = por %p299, %p300
      %p302 = scmp.ne.s32.totalorder %s290, %s291
      %p303 = scmp.eq.s32.totalorder %s40, 1
      %p304 = por %p302, %p303
      %p306 = scmp.ne.s32.totalorder %s291, %s305
      %p307 = scmp.eq.s32.totalorder %s40, 0
      %p308 = por %p306, %p307
      %s310 = sadd.s32 %s309, 1
      %p313 = scmp.eq.s32.totalorder %s34, 1
      %p314 = scmp.ne.s32.totalorder %s309, %s311
      %p315 = scmp.eq.s32.totalorder %s34, 0
      %p316 = por %p314, %p315
      %p317 = scmp.ne.s32.totalorder %s309, %s311
      %p318 = scmp.eq.s32.totalorder %s39, 1
      %p319 = por %p317, %p318
      %p320 = scmp.ne.s32.totalorder %s311, %s312
      %p321 = scmp.eq.s32.totalorder %s39, 0
      %p322 = por %p320, %p321
      %p323 = scmp.ne.s32.totalorder %s311, %s312
      %p324 = scmp.eq.s32.totalorder %s40, 1
      %p325 = por %p323, %p324
      %p327 = scmp.ne.s32.totalorder %s312, %s326
      %p328 = scmp.eq.s32.totalorder %s40, 0
      %p329 = por %p327, %p328
      %s331 = sadd.s32 %s330, 1
      %p334 = scmp.eq.s32.totalorder %s34, 1
      %p335 = scmp.ne.s32.totalorder %s330, %s332
      %p336 = scmp.eq.s32.totalorder %s34, 0
      %p337 = por %p335, %p336
      %p338 = scmp.ne.s32.totalorder %s330, %s332
      %p339 = scmp.eq.s32.totalorder %s39, 1
      %p340 = por %p338, %p339
      %p341 = scmp.ne.s32.totalorder %s332, %s333
      %p342 = scmp.eq.s32.totalorder %s39, 0
      %p343 = por %p341, %p342
      %p344 = scmp.ne.s32.totalorder %s332, %s333
      %p345 = scmp.eq.s32.totalorder %s40, 1
      %p346 = por %p344, %p345
      %p348 = scmp.ne.s32.totalorder %s333, %s347
      %p349 = scmp.eq.s32.totalorder %s40, 0
      %p350 = por %p348, %p349
      %s352 = sadd.s32 %s351, 1
      %p355 = scmp.eq.s32.totalorder %s34, 1
      %p356 = scmp.ne.s32.totalorder %s351, %s353
      %p357 = scmp.eq.s32.totalorder %s34, 0
      %p358 = por %p356, %p357
      %p359 = scmp.ne.s32.totalorder %s351, %s353
      %p360 = scmp.eq.s32.totalorder %s39, 1
      %p361 = por %p359, %p360
      %p362 = scmp.ne.s32.totalorder %s353, %s354
      %p363 = scmp.eq.s32.totalorder %s39, 0
      %p364 = por %p362, %p363
      %p365 = scmp.ne.s32.totalorder %s353, %s354
      %p366 = scmp.eq.s32.totalorder %s40, 1
      %p367 = por %p365, %p366
      %p369 = scmp.ne.s32.totalorder %s354, %s368
      %p370 = scmp.eq.s32.totalorder %s40, 0
      %p371 = por %p369, %p370
      %s373 = sadd.s32 %s372, 1
      %p376 = scmp.eq.s32.totalorder %s34, 1
      %p377 = scmp.ne.s32.totalorder %s372, %s374
      %p378 = scmp.eq.s32.totalorder %s34, 0
      %p379 = por %p377, %p378
      %p380 = scmp.ne.s32.totalorder %s372, %s374
      %p381 = scmp.eq.s32.totalorder %s39, 1
      %p382 = por %p380, %p381
      %p383 = scmp.ne.s32.totalorder %s374, %s375
      %p384 = scmp.eq.s32.totalorder %s39, 0
      %p385 = por %p383, %p384
      %p386 = scmp.ne.s32.totalorder %s374, %s375
      %p387 = scmp.eq.s32.totalorder %s40, 1
      %p388 = por %p386, %p387
      %p390 = scmp.ne.s32.totalorder %s375, %s389
      %p391 = scmp.eq.s32.totalorder %s40, 0
      %p392 = por %p390, %p391
      %s394 = sadd.s32 %s393, 1
      %p397 = scmp.eq.s32.totalorder %s34, 1
      %p398 = scmp.ne.s32.totalorder %s393, %s395
      %p399 = scmp.eq.s32.totalorder %s34, 0
      %p400 = por %p398, %p399
      %p401 = scmp.ne.s32.totalorder %s393, %s395
      %p402 = scmp.eq.s32.totalorder %s39, 1
      %p403 = por %p401, %p402
      %p404 = scmp.ne.s32.totalorder %s395, %s396
      %p405 = scmp.eq.s32.totalorder %s39, 0
      %p406 = por %p404, %p405
      %p407 = scmp.ne.s32.totalorder %s395, %s396
      %p408 = scmp.eq.s32.totalorder %s40, 1
      %p409 = por %p407, %p408
      %p411 = scmp.ne.s32.totalorder %s396, %s410
      %p412 = scmp.eq.s32.totalorder %s40, 0
      %p413 = por %p411, %p412
      %s415 = sadd.s32 %s414, 1
      %p418 = scmp.eq.s32.totalorder %s34, 1
      %p419 = scmp.ne.s32.totalorder %s414, %s416
      %p420 = scmp.eq.s32.totalorder %s34, 0
      %p421 = por %p419, %p420
      %p422 = scmp.ne.s32.totalorder %s414, %s416
      %p423 = scmp.eq.s32.totalorder %s39, 1
      %p424 = por %p422, %p423
      %p425 = scmp.ne.s32.totalorder %s416, %s417
      %p426 = scmp.eq.s32.totalorder %s39, 0
      %p427 = por %p425, %p426
      %p428 = scmp.ne.s32.totalorder %s416, %s417
      %p429 = scmp.eq.s32.totalorder %s40, 1
      %p430 = por %p428, %p429
      %p432 = scmp.ne.s32.totalorder %s417, %s431
      %p433 = scmp.eq.s32.totalorder %s40, 0
      %p434 = por %p432, %p433
      %s436 = sadd.s32 %s435, 1
      %p439 = scmp.eq.s32.totalorder %s34, 1
      %p440 = scmp.ne.s32.totalorder %s435, %s437
      %p441 = scmp.eq.s32.totalorder %s34, 0
      %p442 = por %p440, %p441
      %p443 = scmp.ne.s32.totalorder %s435, %s437
      %p444 = scmp.eq.s32.totalorder %s39, 1
      %p445 = por %p443, %p444
      %p446 = scmp.ne.s32.totalorder %s437, %s438
      %p447 = scmp.eq.s32.totalorder %s39, 0
      %p448 = por %p446, %p447
      %p449 = scmp.ne.s32.totalorder %s437, %s438
      %p450 = scmp.eq.s32.totalorder %s40, 1
      %p451 = por %p449, %p450
      %p453 = scmp.ne.s32.totalorder %s438, %s452
      %p454 = scmp.eq.s32.totalorder %s40, 0
      %p455 = por %p453, %p454
      %s457 = sadd.s32 %s456, 1
      %p460 = scmp.eq.s32.totalorder %s34, 1
      %p461 = scmp.ne.s32.totalorder %s456, %s458
      %p462 = scmp.eq.s32.totalorder %s34, 0
      %p463 = por %p461, %p462
      %p464 = scmp.ne.s32.totalorder %s456, %s458
      %p465 = scmp.eq.s32.totalorder %s39, 1
      %p466 = por %p464, %p465
      %p467 = scmp.ne.s32.totalorder %s458, %s459
      %p468 = scmp.eq.s32.totalorder %s39, 0
      %p469 = por %p467, %p468
      %p470 = scmp.ne.s32.totalorder %s458, %s459
      %p471 = scmp.eq.s32.totalorder %s40, 1
      %p472 = por %p470, %p471
      %p474 = scmp.ne.s32.totalorder %s459, %s473
      %p475 = scmp.eq.s32.totalorder %s40, 0
      %p476 = por %p474, %p475
      %s478 = sadd.s32 %s477, 1
      %p481 = scmp.eq.s32.totalorder %s34, 1
      %p482 = scmp.ne.s32.totalorder %s477, %s479
      %p483 = scmp.eq.s32.totalorder %s34, 0
      %p484 = por %p482, %p483
      %p485 = scmp.ne.s32.totalorder %s477, %s479
      %p486 = scmp.eq.s32.totalorder %s39, 1
      %p487 = por %p485, %p486
      %p488 = scmp.ne.s32.totalorder %s479, %s480
      %p489 = scmp.eq.s32.totalorder %s39, 0
      %p490 = por %p488, %p489
      %p491 = scmp.ne.s32.totalorder %s479, %s480
      %p492 = scmp.eq.s32.totalorder %s40, 1
      %p493 = por %p491, %p492
      %p495 = scmp.ne.s32.totalorder %s480, %s494
      %p496 = scmp.eq.s32.totalorder %s40, 0
      %p497 = por %p495, %p496
      %s499 = sadd.s32 %s498, 1
      %p502 = scmp.eq.s32.totalorder %s34, 1
      %p503 = scmp.ne.s32.totalorder %s498, %s500
      %p504 = scmp.eq.s32.totalorder %s34, 0
      %p505 = por %p503, %p504
      %p506 = scmp.ne.s32.totalorder %s498, %s500
      %p507 = scmp.eq.s32.totalorder %s39, 1
      %p508 = por %p506, %p507
      %p509 = scmp.ne.s32.totalorder %s500, %s501
      %p510 = scmp.eq.s32.totalorder %s39, 0
      %p511 = por %p509, %p510
      %p512 = scmp.ne.s32.totalorder %s500, %s501
      %p513 = scmp.eq.s32.totalorder %s40, 1
      %p514 = por %p512, %p513
      %p516 = scmp.ne.s32.totalorder %s501, %s515
      %p517 = scmp.eq.s32.totalorder %s40, 0
      %p518 = por %p516, %p517
      %s519 = ssub.s32 %s34, %s41
      %p520 = scmp.eq.s32.totalorder %s519, 0
      %s522 = sadd.s32 %s521, 1
      %s523 = scalar_select %p520, %s521, %s522
      %p526 = pneg %p520
      %p527 = scmp.eq.s32.totalorder %s34, 1
      %p528 = por %p526, %p527
      %p529 = scmp.ne.s32.totalorder %s521, %s524
      %p530 = scmp.eq.s32.totalorder %s34, 0
      %p531 = por %p529, %p530
      %p532 = scmp.ne.s32.totalorder %s521, %s524
      %p533 = scmp.eq.s32.totalorder %s39, 1
      %p534 = por %p532, %p533
      %p535 = scmp.ne.s32.totalorder %s524, %s525
      %p536 = scmp.eq.s32.totalorder %s39, 0
      %p537 = por %p535, %p536
      %p538 = scmp.ne.s32.totalorder %s524, %s525
      %p539 = scmp.eq.s32.totalorder %s40, 1
      %p540 = por %p538, %p539
      %p542 = scmp.ne.s32.totalorder %s525, %s541
      %p543 = scmp.eq.s32.totalorder %s40, 0
      %p544 = por %p542, %p543
      %p545 = scmp.le.s32.totalorder 1, %s34
      %p546 = scmp.lt.s32.totalorder %s34, 3
      %p547 = pnand %p545, %p546
      %p548 = pneg %p547
      // Predicated region
      $region9: #{transformer_classifier.1} parent=5 // pred_check
        _
      $region10: #{transformer_classifier.1} parent=5 // pred_check_branch
        %550 = sbr.rel (%p547) target = $region12
      $region11: #{transformer_classifier.1} parent=5 // pred_region
        %s551 = ssub.s32 %s34, 1
        // Predicated region
        $region13: #{transformer_classifier.1} parent=11 // pred_check
          %p552 = pneg %p133
        $region14: #{transformer_classifier.1} parent=11 // pred_check_branch
          %554 = sbr.rel (%p552) target = $region16
        $region15: #{transformer_classifier.1} parent=11 // pred_region
          %s556 = ssub.s32 1024, 1024
          %557 = vsyncadd [#allocation3], %s556
          %s558 = sshll.u32 [#allocation2], 4
          %s559 = int_to_ptr.vmem [resolvable:$true] %s558
          %564 = dma.hbm_to_vmem [thread:$0]  %s3, 1024, %s559, [#allocation3], 64, 64, 4
        $region16: #{transformer_classifier.1} parent=11 // pred_fallthru
          _
        // Predicated region
        $region17: #{transformer_classifier.1} parent=11 // pred_check
          %p565 = pneg %p154
        $region18: #{transformer_classifier.1} parent=11 // pred_check_branch
          %567 = sbr.rel (%p565) target = $region20
        $region19: #{transformer_classifier.1} parent=11 // pred_region
          %s569 = ssub.s32 1024, 1024
          %570 = vsyncadd [#allocation6], %s569
          %s571 = sshll.u32 [#allocation5], 4
          %s572 = int_to_ptr.vmem [resolvable:$true] %s571
          %577 = dma.hbm_to_vmem [thread:$0]  %s4, 1024, %s572, [#allocation6], 64, 64, 4
        $region20: #{transformer_classifier.1} parent=11 // pred_fallthru
          _
        // Predicated region
        $region21: #{transformer_classifier.1} parent=11 // pred_check
          %p578 = pneg %p175
        $region22: #{transformer_classifier.1} parent=11 // pred_check_branch
          %580 = sbr.rel (%p578) target = $region24
        $region23: #{transformer_classifier.1} parent=11 // pred_region
          _
        $region24: #{transformer_classifier.1} parent=11 // pred_fallthru
          _
        // Predicated region
        $region25: #{transformer_classifier.1} parent=11 // pred_check
          %p581 = pneg %p196
        $region26: #{transformer_classifier.1} parent=11 // pred_check_branch
          %583 = sbr.rel (%p581) target = $region28
        $region27: #{transformer_classifier.1} parent=11 // pred_region
          _
        $region28: #{transformer_classifier.1} parent=11 // pred_fallthru
          _
        // Predicated region
        $region29: #{transformer_classifier.1} parent=11 // pred_check
          %p584 = pneg %p217
        $region30: #{transformer_classifier.1} parent=11 // pred_check_branch
          %586 = sbr.rel (%p584) target = $region32
        $region31: #{transformer_classifier.1} parent=11 // pred_region
          _
        $region32: #{transformer_classifier.1} parent=11 // pred_fallthru
          _
        // Predicated region
        $region33: #{transformer_classifier.1} parent=11 // pred_check
          %p587 = pneg %p238
        $region34: #{transformer_classifier.1} parent=11 // pred_check_branch
          %589 = sbr.rel (%p587) target = $region36
        $region35: #{transformer_classifier.1} parent=11 // pred_region
          %s591 = ssub.s32 6144, 6144
          %592 = vsyncadd [#allocation6], %s591
          %s593 = sshll.u32 [#allocation7], 4
          %s594 = int_to_ptr.vmem [resolvable:$true] %s593
          %599 = dma.hbm_to_vmem [thread:$0]  %s8, 6144, %s594, [#allocation6], 192, 192, 12
        $region36: #{transformer_classifier.1} parent=11 // pred_fallthru
          _
        // Predicated region
        $region37: #{transformer_classifier.1} parent=11 // pred_check
          %p600 = pneg %p259
        $region38: #{transformer_classifier.1} parent=11 // pred_check_branch
          %602 = sbr.rel (%p600) target = $region40
        $region39: #{transformer_classifier.1} parent=11 // pred_region
          _
        $region40: #{transformer_classifier.1} parent=11 // pred_fallthru
          _
        // Predicated region
        $region41: #{transformer_classifier.1} parent=11 // pred_check
          %p603 = pneg %p280
        $region42: #{transformer_classifier.1} parent=11 // pred_check_branch
          %605 = sbr.rel (%p603) target = $region44
        $region43: #{transformer_classifier.1} parent=11 // pred_region
          _
        $region44: #{transformer_classifier.1} parent=11 // pred_fallthru
          _
        // Predicated region
        $region45: #{transformer_classifier.1} parent=11 // pred_check
          %p606 = pneg %p301
        $region46: #{transformer_classifier.1} parent=11 // pred_check_branch
          %608 = sbr.rel (%p606) target = $region48
        $region47: #{transformer_classifier.1} parent=11 // pred_region
          _
        $region48: #{transformer_classifier.1} parent=11 // pred_fallthru
          _
        // Predicated region
        $region49: #{transformer_classifier.1} parent=11 // pred_check
          %p609 = pneg %p322
        $region50: #{transformer_classifier.1} parent=11 // pred_check_branch
          %611 = sbr.rel (%p609) target = $region52
        $region51: #{transformer_classifier.1} parent=11 // pred_region
          _
        $region52: #{transformer_classifier.1} parent=11 // pred_fallthru
          _
        // Predicated region
        $region53: #{transformer_classifier.1} parent=11 // pred_check
          %p612 = pneg %p343
        $region54: #{transformer_classifier.1} parent=11 // pred_check_branch
          %614 = sbr.rel (%p612) target = $region56
        $region55: #{transformer_classifier.1} parent=11 // pred_region
          _
        $region56: #{transformer_classifier.1} parent=11 // pred_fallthru
          _
        // Predicated region
        $region57: #{transformer_classifier.1} parent=11 // pred_check
          %p615 = pneg %p364
        $region58: #{transformer_classifier.1} parent=11 // pred_check_branch
          %617 = sbr.rel (%p615) target = $region60
        $region59: #{transformer_classifier.1} parent=11 // pred_region
          %s619 = ssub.s32 4096, 4096
          %620 = vsyncadd [#allocation9], %s619
          %s621 = sshll.u32 [#allocation8], 4
          %s622 = int_to_ptr.vmem [resolvable:$true] %s621
          %627 = dma.hbm_to_vmem [thread:$0]  %s14, 4096, %s622, [#allocation9], 128, 128, 8
        $region60: #{transformer_classifier.1} parent=11 // pred_fallthru
          _
        // Predicated region
        $region61: #{transformer_classifier.1} parent=11 // pred_check
          %p628 = pneg %p385
        $region62: #{transformer_classifier.1} parent=11 // pred_check_branch
          %630 = sbr.rel (%p628) target = $region64
        $region63: #{transformer_classifier.1} parent=11 // pred_region
          _
        $region64: #{transformer_classifier.1} parent=11 // pred_fallthru
          _
        // Predicated region
        $region65: #{transformer_classifier.1} parent=11 // pred_check
          %p631 = pneg %p406
        $region66: #{transformer_classifier.1} parent=11 // pred_check_branch
          %633 = sbr.rel (%p631) target = $region68
        $region67: #{transformer_classifier.1} parent=11 // pred_region
          %s635 = ssub.s32 4096, 4096
          %636 = vsyncadd [#allocation9], %s635
          %s637 = sshll.u32 [#allocation10], 4
          %s638 = int_to_ptr.vmem [resolvable:$true] %s637
          %643 = dma.hbm_to_vmem [thread:$0]  %s16, 4096, %s638, [#allocation9], 64, 64, 4
        $region68: #{transformer_classifier.1} parent=11 // pred_fallthru
          _
        // Predicated region
        $region69: #{transformer_classifier.1} parent=11 // pred_check
          %p644 = pneg %p427
        $region70: #{transformer_classifier.1} parent=11 // pred_check_branch
          %646 = sbr.rel (%p644) target = $region72
        $region71: #{transformer_classifier.1} parent=11 // pred_region
          _
        $region72: #{transformer_classifier.1} parent=11 // pred_fallthru
          _
        // Predicated region
        $region73: #{transformer_classifier.1} parent=11 // pred_check
          %p647 = pneg %p448
        $region74: #{transformer_classifier.1} parent=11 // pred_check_branch
          %649 = sbr.rel (%p647) target = $region76
        $region75: #{transformer_classifier.1} parent=11 // pred_region
          _
        $region76: #{transformer_classifier.1} parent=11 // pred_fallthru
          _
        // Predicated region
        $region77: #{transformer_classifier.1} parent=11 // pred_check
          %p650 = pneg %p469
        $region78: #{transformer_classifier.1} parent=11 // pred_check_branch
          %652 = sbr.rel (%p650) target = $region80
        $region79: #{transformer_classifier.1} parent=11 // pred_region
          _
        $region80: #{transformer_classifier.1} parent=11 // pred_fallthru
          _
        // Predicated region
        $region81: #{transformer_classifier.1} parent=11 // pred_check
          %p653 = pneg %p490
        $region82: #{transformer_classifier.1} parent=11 // pred_check_branch
          %655 = sbr.rel (%p653) target = $region84
        $region83: #{transformer_classifier.1} parent=11 // pred_region
          _
        $region84: #{transformer_classifier.1} parent=11 // pred_fallthru
          _
        // Predicated region
        $region85: #{transformer_classifier.1} parent=11 // pred_check
          %p656 = pneg %p511
        $region86: #{transformer_classifier.1} parent=11 // pred_check_branch
          %658 = sbr.rel (%p656) target = $region88
        $region87: #{transformer_classifier.1} parent=11 // pred_region
          _
        $region88: #{transformer_classifier.1} parent=11 // pred_fallthru
          _
      $region12: #{transformer_classifier.1} parent=5 // pred_fallthru
        _
      %p659 = scmp.lt.s32.totalorder %s34, 2
      // Predicated region
      $region89: #{transformer_classifier.1} parent=5 // pred_check
        %p660 = pneg %p659
      $region90: #{transformer_classifier.1} parent=5 // pred_check_branch
        %662 = sbr.rel (%p660) target = $region92
      $region91: #{transformer_classifier.1} parent=5 // pred_region
        // Predicated region
        $region93: #{transformer_classifier.1} parent=91 // pred_check
          %p663 = pneg %p54
        $region94: #{transformer_classifier.1} parent=91 // pred_check_branch
          %665 = sbr.rel (%p663) target = $region96
        $region95: #{transformer_classifier.1} parent=91 // pred_region
          %p666 = scmp.lt.s32.totalorder %s34, 1
          %s667 = scalar_select %p666, %s34, 1
          %s668 = smul.addr %s667, 8
          %s669 = scalar_lea.vmem %s0, %s668
        $region96: #{transformer_classifier.1} parent=91 // pred_fallthru
          _
        // Predicated region
        $region97: #{transformer_classifier.1} parent=91 // pred_check
          %p670 = pneg %p80
        $region98: #{transformer_classifier.1} parent=91 // pred_check_branch
          %672 = sbr.rel (%p670) target = $region100
        $region99: #{transformer_classifier.1} parent=91 // pred_region
          %p673 = scmp.lt.s32.totalorder %s34, 1
          %s674 = scalar_select %p673, %s34, 1
          %s675 = smul.addr %s674, 8
          %s676 = scalar_lea.vmem %s1, %s675
        $region100: #{transformer_classifier.1} parent=91 // pred_fallthru
          _
        // Predicated region
        $region101: #{transformer_classifier.1} parent=91 // pred_check
          %p677 = pneg %p106
        $region102: #{transformer_classifier.1} parent=91 // pred_check_branch
          %679 = sbr.rel (%p677) target = $region104
        $region103: #{transformer_classifier.1} parent=91 // pred_region
          %p680 = scmp.lt.s32.totalorder %s34, 1
          %s681 = scalar_select %p680, %s34, 1
          %s682 = scalar_lea.vmem %s2, %s681
        $region104: #{transformer_classifier.1} parent=91 // pred_fallthru
          _
      $region92: #{transformer_classifier.1} parent=5 // pred_fallthru
        _
      %p683 = scmp.le.s32.totalorder 1, %s34
      %p684 = scmp.lt.s32.totalorder %s34, 3
      %p685 = pnand %p683, %p684
      %p686 = pneg %p685
      // Predicated region
      $region105: #{transformer_classifier.1} parent=5 // pred_check
        _
      $region106: #{transformer_classifier.1} parent=5 // pred_check_branch
        %688 = sbr.rel (%p685) target = $region108
      $region107: #{transformer_classifier.1} parent=5 // pred_region
        %s689 = ssub.s32 %s34, 1
        // Predicated region
        $region109: #{transformer_classifier.1} parent=107 // pred_check
          %p690 = pneg %p133
        $region110: #{transformer_classifier.1} parent=107 // pred_check_branch
          %692 = sbr.rel (%p690) target = $region112
        $region111: #{transformer_classifier.1} parent=107 // pred_region
          %693 = dma.done [#allocation3], 1024
        $region112: #{transformer_classifier.1} parent=107 // pred_fallthru
          _
        // Predicated region
        $region113: #{transformer_classifier.1} parent=107 // pred_check
          %p694 = pneg %p154
        $region114: #{transformer_classifier.1} parent=107 // pred_check_branch
          %696 = sbr.rel (%p694) target = $region116
        $region115: #{transformer_classifier.1} parent=107 // pred_region
          %697 = dma.done [#allocation6], 1024
        $region116: #{transformer_classifier.1} parent=107 // pred_fallthru
          _
        // Predicated region
        $region117: #{transformer_classifier.1} parent=107 // pred_check
          %p698 = pneg %p238
        $region118: #{transformer_classifier.1} parent=107 // pred_check_branch
          %700 = sbr.rel (%p698) target = $region120
        $region119: #{transformer_classifier.1} parent=107 // pred_region
          %701 = dma.done [#allocation6], 6144
        $region120: #{transformer_classifier.1} parent=107 // pred_fallthru
          _
        // Predicated region
        $region121: #{transformer_classifier.1} parent=107 // pred_check
          %p702 = pneg %p364
        $region122: #{transformer_classifier.1} parent=107 // pred_check_branch
          %704 = sbr.rel (%p702) target = $region124
        $region123: #{transformer_classifier.1} parent=107 // pred_region
          %705 = dma.done [#allocation9], 4096
        $region124: #{transformer_classifier.1} parent=107 // pred_fallthru
          _
        // Predicated region
        $region125: #{transformer_classifier.1} parent=107 // pred_check
          %p706 = pneg %p406
        $region126: #{transformer_classifier.1} parent=107 // pred_check_branch
          %708 = sbr.rel (%p706) target = $region128
        $region127: #{transformer_classifier.1} parent=107 // pred_region
          %709 = dma.done [#allocation9], 4096
        $region128: #{transformer_classifier.1} parent=107 // pred_fallthru
          _
        %p710 = scmp.lt.s32.totalorder %s39, 1
        %s711 = scalar_select %p710, %s39, 1
        %s712 = smul.addr %s711, 8
        %s713 = scalar_lea.vmem %s0, %s712
        %p714 = pneg %p60
        %p715 = pneg %p57
        %p716 = scmp.lt.s32.totalorder %s39, 1
        %s717 = scalar_select %p716, %s39, 1
        %s718 = smul.addr %s717, 8
        %s719 = scalar_lea.vmem %s1, %s718
        %p720 = pneg %p86
        %p721 = pneg %p83
        %p722 = scmp.lt.s32.totalorder %s39, 1
        %s723 = scalar_select %p722, %s39, 1
        %s724 = scalar_lea.vmem %s2, %s723
        %p725 = pneg %p112
        %p726 = pneg %p109
        %p727 = pneg %p133
        %p728 = pneg %p130
        %p729 = pneg %p154
        %p730 = pneg %p151
        %p731 = pneg %p175
        %p732 = pneg %p172
        %p733 = pneg %p196
        %p734 = pneg %p193
        %p735 = pneg %p217
        %p736 = pneg %p214
        %p737 = pneg %p238
        %p738 = pneg %p235
        %p739 = pneg %p259
        %p740 = pneg %p256
        %p741 = pneg %p280
        %p742 = pneg %p277
        %p743 = pneg %p301
        %p744 = pneg %p298
        %p745 = pneg %p322
        %p746 = pneg %p319
        %p747 = pneg %p343
        %p748 = pneg %p340
        %p749 = pneg %p364
        %p750 = pneg %p361
        %p751 = pneg %p385
        %p752 = pneg %p382
        %p753 = pneg %p406
        %p754 = pneg %p403
        %p755 = pneg %p427
        %p756 = pneg %p424
        %p757 = pneg %p448
        %p758 = pneg %p445
        %p759 = pneg %p469
        %p760 = pneg %p466
        %p761 = pneg %p490
        %p762 = pneg %p487
        %p763 = pneg %p511
        %p764 = pneg %p508
        %p765 = pneg %p537
        %p766 = pneg %p534
        %s767 = sand.u32 %s524, 1
        %s768 = scalar_lea.sflag [#allocation4], %s767
        %s769 = sand.u32 %s524, 1
        %s770 = scalar_lea.vmem [#allocation11], %s769
        %p771 = scmp.lt.s32.totalorder %s39, 1
        %s772 = scalar_select %p771, %s39, 1
        %s773 = smul.addr %s772, 8
        %s774 = scalar_lea.vmem %s0, %s773
        %p775 = scmp.lt.s32.totalorder %s39, 1
        %s776 = scalar_select %p775, %s39, 1
        %s777 = smul.addr %s776, 8
        %s778 = scalar_lea.vmem %s1, %s777
        %p779 = scmp.lt.s32.totalorder %s39, 1
        %s780 = scalar_select %p779, %s39, 1
        %s781 = scalar_lea.vmem %s2, %s780
        %v783 = vld [vmem:[%s774] sm:$0xff]
        %v784 = vld [vmem:[%s778] sm:$0xff]
        %v785 = vlaneseq
        %v786 = vand.u32 %v785, 127
        %787 = vset.pattern.permute.xlu0 0
        %788 = vperm.xlu0 %787, %v783
        %v789 = vpop.permute.xlu0 %788
        %vm790 = vcmp.eq.s32.totalorder %v786, %v789
        %v791 = vsel %vm790, 1, 0
        %v792 = vcvt.s32.f32 %v791
        %v793 = vpack.c.bf16 %v792, %v792
        %794 = vset.pattern.permute.xlu0 0
        %795 = vperm.xlu0 %794, %v784
        %v796 = vpop.permute.xlu0 %795
        %vm797 = vcmp.eq.s32.totalorder %v786, %v796
        %v798 = vsel %vm797, 1, 0
        %v799 = vcvt.s32.f32 %v798
        %v800 = vpack.c.bf16 %v799, %v799
        %v801 = vld [vmem:[#allocation2] sm:$0xf]
        %v802 = vld [vmem:[#allocation2 + $0x4] sm:$0xf]
        %v803 = vld [vmem:[#allocation2 + $0x8] sm:$0xf]
        %v804 = vld [vmem:[#allocation2 + $0xc] sm:$0xf]
        %v805 = vld [vmem:[#allocation2 + $0x10] sm:$0xf]
        %v806 = vld [vmem:[#allocation2 + $0x14] sm:$0xf]
        %v807 = vld [vmem:[#allocation2 + $0x18] sm:$0xf]
        %v808 = vld [vmem:[#allocation2 + $0x1c] sm:$0xf]
        %v809 = vld [vmem:[#allocation2 + $0x20] sm:$0xf]
        %v810 = vld [vmem:[#allocation2 + $0x24] sm:$0xf]
        %v811 = vld [vmem:[#allocation2 + $0x28] sm:$0xf]
        %v812 = vld [vmem:[#allocation2 + $0x2c] sm:$0xf]
        %v813 = vld [vmem:[#allocation2 + $0x30] sm:$0xf]
        %v814 = vld [vmem:[#allocation2 + $0x34] sm:$0xf]
        %v815 = vld [vmem:[#allocation2 + $0x38] sm:$0xf]
        %v816 = vld [vmem:[#allocation2 + $0x3c] sm:$0xf]
        %v817 = vld [vmem:[#allocation5] sm:$0xf]
        %v818 = vld [vmem:[#allocation5 + $0x4] sm:$0xf]
        %v819 = vld [vmem:[#allocation5 + $0x8] sm:$0xf]
        %v820 = vld [vmem:[#allocation5 + $0xc] sm:$0xf]
        %v821 = vld [vmem:[#allocation5 + $0x10] sm:$0xf]
        %v822 = vld [vmem:[#allocation5 + $0x14] sm:$0xf]
        %v823 = vld [vmem:[#allocation5 + $0x18] sm:$0xf]
        %v824 = vld [vmem:[#allocation5 + $0x1c] sm:$0xf]
        %v825 = vld [vmem:[#allocation5 + $0x20] sm:$0xf]
        %v826 = vld [vmem:[#allocation5 + $0x24] sm:$0xf]
        %v827 = vld [vmem:[#allocation5 + $0x28] sm:$0xf]
        %v828 = vld [vmem:[#allocation5 + $0x2c] sm:$0xf]
        %v829 = vld [vmem:[#allocation5 + $0x30] sm:$0xf]
        %v830 = vld [vmem:[#allocation5 + $0x34] sm:$0xf]
        %v831 = vld [vmem:[#allocation5 + $0x38] sm:$0xf]
        %v832 = vld [vmem:[#allocation5 + $0x3c] sm:$0xf]
        %v849 = vunpack.c.l.b16 %v817
        %v850 = vunpack.c.l.b16 %v818
        %v851 = vunpack.c.l.b16 %v819
        %v852 = vunpack.c.l.b16 %v820
        %v853 = vunpack.c.l.b16 %v821
        %v854 = vunpack.c.l.b16 %v822
        %v855 = vunpack.c.l.b16 %v823
        %v856 = vunpack.c.l.b16 %v824
        %v857 = vunpack.c.l.b16 %v825
        %v858 = vunpack.c.l.b16 %v826
        %v859 = vunpack.c.l.b16 %v827
        %v860 = vunpack.c.l.b16 %v828
        %v861 = vunpack.c.l.b16 %v829
        %v862 = vunpack.c.l.b16 %v830
        %v863 = vunpack.c.l.b16 %v831
        %v864 = vunpack.c.l.b16 %v832
        %v865 = vpack.c.b16 %v850, %v849
        %v866 = vpack.c.b16 %v852, %v851
        %v867 = vpack.c.b16 %v854, %v853
        %v868 = vpack.c.b16 %v856, %v855
        %v869 = vpack.c.b16 %v858, %v857
        %v870 = vpack.c.b16 %v860, %v859
        %v871 = vpack.c.b16 %v862, %v861
        %v872 = vpack.c.b16 %v864, %v863
        %881 = vmatprep.subr.bf16.mxu0 0
        %882 = vmatpush1.bf16.msra.mxu0 %v865
        %883 = vmatprep.subr.bf16.mxu0 0
        %884 = vmatpush1.bf16.msra.mxu0 %v866
        %885 = vmatprep.subr.bf16.mxu0 0
        %886 = vmatpush1.bf16.msra.mxu0 %v867
        %887 = vmatprep.subr.bf16.mxu0 0
        %888 = vmatpush1.bf16.msra.mxu0 %v868
        %889 = vmatprep.subr.bf16.mxu0 0
        %890 = vmatpush1.bf16.msra.mxu0 %v869
        %891 = vmatprep.subr.bf16.mxu0 0
        %892 = vmatpush1.bf16.msra.mxu0 %v870
        %893 = vmatprep.subr.bf16.mxu0 0
        %894 = vmatpush1.bf16.msra.mxu0 %v871
        %895 = vmatprep.subr.bf16.mxu0 0
        %896 = vmatpush1.bf16.msra.mxu0 %v872
        %897 = vmatprep.subr.bf16.mxu0 0
        %898 = vmatpush1.bf16.msra.mxu0 0
        %899 = vmatprep.subr.bf16.mxu0 0
        %900 = vmatpush1.bf16.msra.mxu0 0
        %901 = vmatprep.subr.bf16.mxu0 0
        %902 = vmatpush1.bf16.msra.mxu0 0
        %903 = vmatprep.subr.bf16.mxu0 0
        %904 = vmatpush1.bf16.msra.mxu0 0
        %905 = vmatprep.subr.bf16.mxu0 0
        %906 = vmatpush1.bf16.msra.mxu0 0
        %907 = vmatprep.subr.bf16.mxu0 0
        %908 = vmatpush1.bf16.msra.mxu0 0
        %909 = vmatprep.subr.bf16.mxu0 0
        %910 = vmatpush1.bf16.msra.mxu0 0
        %911 = vmatprep.subr.bf16.mxu0 0
        %912 = vmatpush1.bf16.msra.mxu0 0
        %913 = vmatprep.mubr.bf16.mxu0 0
        %914 = vmatmul.mubr.bf16.gmra.mrb[0].mxu0 %v800
        %v915 = vpop.f32.mrb[0].mxu0
        %v916 = vadd.f32 0.0, %v915
        %v917 = vpop.f32.mrb[0].mxu0
        %v918 = vpop.f32.mrb[0].mxu0
        %v919 = vpop.f32.mrb[0].mxu0
        %920 = vdwg.mxu0
        %v937 = vunpack.c.l.b16 %v801
        %v938 = vunpack.c.l.b16 %v802
        %v939 = vunpack.c.l.b16 %v803
        %v940 = vunpack.c.l.b16 %v804
        %v941 = vunpack.c.l.b16 %v805
        %v942 = vunpack.c.l.b16 %v806
        %v943 = vunpack.c.l.b16 %v807
        %v944 = vunpack.c.l.b16 %v808
        %v945 = vunpack.c.l.b16 %v809
        %v946 = vunpack.c.l.b16 %v810
        %v947 = vunpack.c.l.b16 %v811
        %v948 = vunpack.c.l.b16 %v812
        %v949 = vunpack.c.l.b16 %v813
        %v950 = vunpack.c.l.b16 %v814
        %v951 = vunpack.c.l.b16 %v815
        %v952 = vunpack.c.l.b16 %v816
        %v953 = vpack.c.b16 %v938, %v937
        %v954 = vpack.c.b16 %v940, %v939
        %v955 = vpack.c.b16 %v942, %v941
        %v956 = vpack.c.b16 %v944, %v943
        %v957 = vpack.c.b16 %v946, %v945
        %v958 = vpack.c.b16 %v948, %v947
        %v959 = vpack.c.b16 %v950, %v949
        %v960 = vpack.c.b16 %v952, %v951
        %969 = vmatprep.subr.bf16.mxu0 0
        %970 = vmatpush1.bf16.msra.mxu0 %v953
        %971 = vmatprep.subr.bf16.mxu0 0
        %972 = vmatpush1.bf16.msra.mxu0 %v954
        %973 = vmatprep.subr.bf16.mxu0 0
        %974 = vmatpush1.bf16.msra.mxu0 %v955
        %975 = vmatprep.subr.bf16.mxu0 0
        %976 = vmatpush1.bf16.msra.mxu0 %v956
        %977 = vmatprep.subr.bf16.mxu0 0
        %978 = vmatpush1.bf16.msra.mxu0 %v957
        %979 = vmatprep.subr.bf16.mxu0 0
        %980 = vmatpush1.bf16.msra.mxu0 %v958
        %981 = vmatprep.subr.bf16.mxu0 0
        %982 = vmatpush1.bf16.msra.mxu0 %v959
        %983 = vmatprep.subr.bf16.mxu0 0
        %984 = vmatpush1.bf16.msra.mxu0 %v960
        %985 = vmatprep.subr.bf16.mxu0 0
        %986 = vmatpush1.bf16.msra.mxu0 0
        %987 = vmatprep.subr.bf16.mxu0 0
        %988 = vmatpush1.bf16.msra.mxu0 0
        %989 = vmatprep.subr.bf16.mxu0 0
        %990 = vmatpush1.bf16.msra.mxu0 0
        %991 = vmatprep.subr.bf16.mxu0 0
        %992 = vmatpush1.bf16.msra.mxu0 0
        %993 = vmatprep.subr.bf16.mxu0 0
        %994 = vmatpush1.bf16.msra.mxu0 0
        %995 = vmatprep.subr.bf16.mxu0 0
        %996 = vmatpush1.bf16.msra.mxu0 0
        %997 = vmatprep.subr.bf16.mxu0 0
        %998 = vmatpush1.bf16.msra.mxu0 0
        %999 = vmatprep.subr.bf16.mxu0 0
        %1000 = vmatpush1.bf16.msra.mxu0 0
        %1001 = vmatprep.mubr.bf16.mxu0 0
        %1002 = vmatmul.mubr.bf16.gmra.mrb[0].mxu0 %v793
        %v1003 = vpop.f32.mrb[0].mxu0
        %v1004 = vadd.f32 %v916, %v1003
        %v1005 = vpop.f32.mrb[0].mxu0
        %v1006 = vpop.f32.mrb[0].mxu0
        %v1007 = vpop.f32.mrb[0].mxu0
        %1008 = vdwg.mxu0
        %v1009 = vld [vmem:[%s5] sm:$0x1]
        %v1011 = vlaneseq
        %v1012 = vshrl.u32 %v1011, 7
        %v1013 = vsub.s32 0, %v1012
        %v1014 = vrot.slane %v1009, %v1013
        %v1016 = vadd.f32 %v1004, %v1014
        %v1017 = vld [vmem:[%s6] sm:$0x1]
        %v1018 = vld [vmem:[%s7] sm:$0x1]
        %1019 = vadd.xlane.f32.xlu0 %v1016
        %v1020 = vpop.xlane.xlu0 %1019
        %v1021 = vrcp.pop 128.0
        %v1022 = vmul.f32 %v1020, %v1021
        %v1023 = vsub.f32 %v1016, %v1022
        %v1024 = vmul.f32 %v1023, %v1023
        %1025 = vadd.xlane.f32.xlu0 %v1024
        %v1026 = vpop.xlane.xlu0 %1025
        %v1027 = vmul.f32 %v1026, %v1021
        %v1028 = vadd.f32 %v1027, 1e-05
        %v1029 = vrsqrt.pop %v1028
        %v1030 = vmul.f32 %v1023, %v1029
        %v1032 = vlaneseq
        %v1033 = vshrl.u32 %v1032, 7
        %v1034 = vsub.s32 0, %v1033
        %v1035 = vrot.slane %v1017, %v1034
        %v1037 = vmul.f32 %v1030, %v1035
        %v1039 = vlaneseq
        %v1040 = vshrl.u32 %v1039, 7
        %v1041 = vsub.s32 0, %v1040
        %v1042 = vrot.slane %v1018, %v1041
        %v1044 = vadd.f32 %v1037, %v1042
        %v1045 = vld [vmem:[%s781] sm:$0x1]
        %vm1046 = vcmp.eq.s32.totalorder %v1045, 0
        %v1047 = vsel %vm1046, -1e+09, 0.0
        %v1048 = vpack.c.bf16 %v1044, %v1044
        %v1049 = vld [vmem:[#allocation7] sm:$0xff]
        %v1050 = vld [vmem:[#allocation7 + $0x8] sm:$0xf]
        %v1051 = vld [vmem:[#allocation7 + $0xc] sm:$0xff]
        %v1052 = vld [vmem:[#allocation7 + $0x14] sm:$0xf]
        %v1053 = vld [vmem:[#allocation7 + $0x18] sm:$0xff]
        %v1054 = vld [vmem:[#allocation7 + $0x20] sm:$0xf]
        %v1055 = vld [vmem:[#allocation7 + $0x24] sm:$0xff]
        %v1056 = vld [vmem:[#allocation7 + $0x2c] sm:$0xf]
        %v1057 = vld [vmem:[#allocation7 + $0x30] sm:$0xff]
        %v1058 = vld [vmem:[#allocation7 + $0x38] sm:$0xf]
        %v1059 = vld [vmem:[#allocation7 + $0x3c] sm:$0xff]
        %v1060 = vld [vmem:[#allocation7 + $0x44] sm:$0xf]
        %v1061 = vld [vmem:[#allocation7 + $0x48] sm:$0xff]
        %v1062 = vld [vmem:[#allocation7 + $0x50] sm:$0xf]
        %v1063 = vld [vmem:[#allocation7 + $0x54] sm:$0xff]
        %v1064 = vld [vmem:[#allocation7 + $0x5c] sm:$0xf]
        %v1065 = vld [vmem:[#allocation7 + $0x60] sm:$0xff]
        %v1066 = vld [vmem:[#allocation7 + $0x68] sm:$0xf]
        %v1067 = vld [vmem:[#allocation7 + $0x6c] sm:$0xff]
        %v1068 = vld [vmem:[#allocation7 + $0x74] sm:$0xf]
        %v1069 = vld [vmem:[#allocation7 + $0x78] sm:$0xff]
        %v1070 = vld [vmem:[#allocation7 + $0x80] sm:$0xf]
        %v1071 = vld [vmem:[#allocation7 + $0x84] sm:$0xff]
        %v1072 = vld [vmem:[#allocation7 + $0x8c] sm:$0xf]
        %v1073 = vld [vmem:[#allocation7 + $0x90] sm:$0xff]
        %v1074 = vld [vmem:[#allocation7 + $0x98] sm:$0xf]
        %v1075 = vld [vmem:[#allocation7 + $0x9c] sm:$0xff]
        %v1076 = vld [vmem:[#allocation7 + $0xa4] sm:$0xf]
        %v1077 = vld [vmem:[#allocation7 + $0xa8] sm:$0xff]
        %v1078 = vld [vmem:[#allocation7 + $0xb0] sm:$0xf]
        %v1079 = vld [vmem:[#allocation7 + $0xb4] sm:$0xff]
        %v1080 = vld [vmem:[#allocation7 + $0xbc] sm:$0xf]
        %v1081 = vld [vmem:[%s9] sm:$0x7]
        %v1083 = vlaneseq
        %v1084 = vshrl.u32 %v1083, 7
        %v1085 = vsub.s32 0, %v1084
        %v1086 = vrot.slane %v1081, %v1085
        %v1087 = vlaneseq
        %v1088 = vshrl.u32 %v1087, 7
        %v1089 = vsub.s32 1, %v1088
        %v1090 = vrot.slane %v1081, %v1089
        %v1091 = vlaneseq
        %v1092 = vshrl.u32 %v1091, 7
        %v1093 = vsub.s32 2, %v1092
        %v1094 = vrot.slane %v1081, %v1093
        %v1130 = vunpack.c.l.b16 %v1049
        %v1131 = vunpack.c.h.b16 %v1049
        %v1132 = vunpack.c.l.b16 %v1050
        %v1133 = vunpack.c.l.b16 %v1051
        %v1134 = vunpack.c.h.b16 %v1051
        %v1135 = vunpack.c.l.b16 %v1052
        %v1136 = vunpack.c.l.b16 %v1053
        %v1137 = vunpack.c.h.b16 %v1053
        %v1138 = vunpack.c.l.b16 %v1054
        %v1139 = vunpack.c.l.b16 %v1055
        %v1140 = vunpack.c.h.b16 %v1055
        %v1141 = vunpack.c.l.b16 %v1056
        %v1142 = vunpack.c.l.b16 %v1057
        %v1143 = vunpack.c.h.b16 %v1057
        %v1144 = vunpack.c.l.b16 %v1058
        %v1145 = vunpack.c.l.b16 %v1059
        %v1146 = vunpack.c.h.b16 %v1059
        %v1147 = vunpack.c.l.b16 %v1060
        %v1148 = vunpack.c.l.b16 %v1061
        %v1149 = vunpack.c.h.b16 %v1061
        %v1150 = vunpack.c.l.b16 %v1062
        %v1151 = vunpack.c.l.b16 %v1063
        %v1152 = vunpack.c.h.b16 %v1063
        %v1153 = vunpack.c.l.b16 %v1064
        %v1154 = vunpack.c.l.b16 %v1065
        %v1155 = vunpack.c.h.b16 %v1065
        %v1156 = vunpack.c.l.b16 %v1066
        %v1157 = vunpack.c.l.b16 %v1067
        %v1158 = vunpack.c.h.b16 %v1067
        %v1159 = vunpack.c.l.b16 %v1068
        %v1160 = vunpack.c.l.b16 %v1069
        %v1161 = vunpack.c.h.b16 %v1069
        %v1162 = vunpack.c.l.b16 %v1070
        %v1163 = vunpack.c.l.b16 %v1071
        %v1164 = vunpack.c.h.b16 %v1071
        %v1165 = vunpack.c.l.b16 %v1072
        %v1166 = vunpack.c.l.b16 %v1073
        %v1167 = vunpack.c.h.b16 %v1073
        %v1168 = vunpack.c.l.b16 %v1074
        %v1169 = vunpack.c.l.b16 %v1075
        %v1170 = vunpack.c.h.b16 %v1075
        %v1171 = vunpack.c.l.b16 %v1076
        %v1172 = vunpack.c.l.b16 %v1077
        %v1173 = vunpack.c.h.b16 %v1077
        %v1174 = vunpack.c.l.b16 %v1078
        %v1175 = vunpack.c.l.b16 %v1079
        %v1176 = vunpack.c.h.b16 %v1079
        %v1177 = vunpack.c.l.b16 %v1080
        %v1178 = vpack.c.b16 %v1133, %v1130
        %v1179 = vpack.c.b16 %v1134, %v1131
        %v1180 = vpack.c.b16 %v1135, %v1132
        %v1181 = vpack.c.b16 %v1139, %v1136
        %v1182 = vpack.c.b16 %v1140, %v1137
        %v1183 = vpack.c.b16 %v1141, %v1138
        %v1184 = vpack.c.b16 %v1145, %v1142
        %v1185 = vpack.c.b16 %v1146, %v1143
        %v1186 = vpack.c.b16 %v1147, %v1144
        %v1187 = vpack.c.b16 %v1151, %v1148
        %v1188 = vpack.c.b16 %v1152, %v1149
        %v1189 = vpack.c.b16 %v1153, %v1150
        %v1190 = vpack.c.b16 %v1157, %v1154
        %v1191 = vpack.c.b16 %v1158, %v1155
        %v1192 = vpack.c.b16 %v1159, %v1156
        %v1193 = vpack.c.b16 %v1163, %v1160
        %v1194 = vpack.c.b16 %v1164, %v1161
        %v1195 = vpack.c.b16 %v1165, %v1162
        %v1196 = vpack.c.b16 %v1169, %v1166
        %v1197 = vpack.c.b16 %v1170, %v1167
        %v1198 = vpack.c.b16 %v1171, %v1168
        %v1199 = vpack.c.b16 %v1175, %v1172
        %v1200 = vpack.c.b16 %v1176, %v1173
        %v1201 = vpack.c.b16 %v1177, %v1174
        %1226 = vmatprep.subr.bf16.mxu0 %v1179
        %1227 = vmatpush1.bf16.msra.mxu0 %v1178
        %1228 = vmatprep.subr.bf16.mxu0 %v1182
        %1229 = vmatpush1.bf16.msra.mxu0 %v1181
        %1230 = vmatprep.subr.bf16.mxu0 %v1185
        %1231 = vmatpush1.bf16.msra.mxu0 %v1184
        %1232 = vmatprep.subr.bf16.mxu0 %v1188
        %1233 = vmatpush1.bf16.msra.mxu0 %v1187
        %1234 = vmatprep.subr.bf16.mxu0 %v1191
        %1235 = vmatpush1.bf16.msra.mxu0 %v1190
        %1236 = vmatprep.subr.bf16.mxu0 %v1194
        %1237 = vmatpush1.bf16.msra.mxu0 %v1193
        %1238 = vmatprep.subr.bf16.mxu0 %v1197
        %1239 = vmatpush1.bf16.msra.mxu0 %v1196
        %1240 = vmatprep.subr.bf16.mxu0 %v1200
        %1241 = vmatpush1.bf16.msra.mxu0 %v1199
        %1242 = vmatprep.subr.bf16.mxu0 0
        %1243 = vmatpush1.bf16.msra.mxu0 0
        %1244 = vmatprep.subr.bf16.mxu0 0
        %1245 = vmatpush1.bf16.msra.mxu0 0
        %1246 = vmatprep.subr.bf16.mxu0 0
        %1247 = vmatpush1.bf16.msra.mxu0 0
        %1248 = vmatprep.subr.bf16.mxu0 0
        %1249 = vmatpush1.bf16.msra.mxu0 0
        %1250 = vmatprep.subr.bf16.mxu0 0
        %1251 = vmatpush1.bf16.msra.mxu0 0
        %1252 = vmatprep.subr.bf16.mxu0 0
        %1253 = vmatpush1.bf16.msra.mxu0 0
        %1254 = vmatprep.subr.bf16.mxu0 0
        %1255 = vmatpush1.bf16.msra.mxu0 0
        %1256 = vmatprep.subr.bf16.mxu0 0
        %1257 = vmatpush1.bf16.msra.mxu0 0
        %1258 = vmatprep.mubr.bf16.mxu0 0
        %1259 = vmatmul.mubr.bf16.gmra.mrb[0].mxu0 %v1048
        %v1260 = vpop.f32.mrb[0].mxu0
        %v1261 = vadd.f32 %v1086, %v1260
        %v1262 = vpop.f32.mrb[0].mxu0
        %v1263 = vadd.f32 %v1090, %v1262
        %v1264 = vpop.f32.mrb[0].mxu0
        %v1265 = vpop.f32.mrb[0].mxu0
        %1266 = vdwg.mxu0
        %1267 = vmatprep.subr.bf16.mxu0 0
        %1268 = vmatpush1.bf16.msra.mxu0 %v1180
        %1269 = vmatprep.subr.bf16.mxu0 0
        %1270 = vmatpush1.bf16.msra.mxu0 %v1183
        %1271 = vmatprep.subr.bf16.mxu0 0
        %1272 = vmatpush1.bf16.msra.mxu0 %v1186
        %1273 = vmatprep.subr.bf16.mxu0 0
        %1274 = vmatpush1.bf16.msra.mxu0 %v1189
        %1275 = vmatprep.subr.bf16.mxu0 0
        %1276 = vmatpush1.bf16.msra.mxu0 %v1192
        %1277 = vmatprep.subr.bf16.mxu0 0
        %1278 = vmatpush1.bf16.msra.mxu0 %v1195
        %1279 = vmatprep.subr.bf16.mxu0 0
        %1280 = vmatpush1.bf16.msra.mxu0 %v1198
        %1281 = vmatprep.subr.bf16.mxu0 0
        %1282 = vmatpush1.bf16.msra.mxu0 %v1201
        %1283 = vmatprep.subr.bf16.mxu0 0
        %1284 = vmatpush1.bf16.msra.mxu0 0
        %1285 = vmatprep.subr.bf16.mxu0 0
        %1286 = vmatpush1.bf16.msra.mxu0 0
        %1287 = vmatprep.subr.bf16.mxu0 0
        %1288 = vmatpush1.bf16.msra.mxu0 0
        %1289 = vmatprep.subr.bf16.mxu0 0
        %1290 = vmatpush1.bf16.msra.mxu0 0
        %1291 = vmatprep.subr.bf16.mxu0 0
        %1292 = vmatpush1.bf16.msra.mxu0 0
        %1293 = vmatprep.subr.bf16.mxu0 0
        %1294 = vmatpush1.bf16.msra.mxu0 0
        %1295 = vmatprep.subr.bf16.mxu0 0
        %1296 = vmatpush1.bf16.msra.mxu0 0
        %1297 = vmatprep.subr.bf16.mxu0 0
        %1298 = vmatpush1.bf16.msra.mxu0 0
        %1299 = vmatprep.mubr.bf16.mxu0 0
        %1300 = vmatmul.mubr.bf16.gmra.mrb[0].mxu0 %v1048
        %v1301 = vpop.f32.mrb[0].mxu0
        %v1302 = vadd.f32 %v1094, %v1301
        %v1303 = vpop.f32.mrb[0].mxu0
        %v1304 = vpop.f32.mrb[0].mxu0
        %v1305 = vpop.f32.mrb[0].mxu0
        %1306 = vdwg.mxu0
        %vm1307 = vcmask 261120
        %v1309 = vsel %vm1307, %v1261, 0
        %v1312 = vsel %vm1307, %v1263, 0
        %1314 = vmatprep.subr.mxu0 0.0
        %1315 = vmatpush1.xpose.msra.mxu0 %v1312
        %1316 = vmatprep.subr.mxu0 0.0
        %1317 = vmatpush1.xpose.msra.mxu0 0.0
        %1318 = vmatprep.subr.mxu0 0.0
        %1319 = vmatpush1.xpose.msra.mxu0 0.0
        %1320 = vmatprep.subr.mxu0 0.0
        %1321 = vmatpush1.xpose.msra.mxu0 0.0
        %1322 = vmatprep.subr.mxu0 0.0
        %1323 = vmatpush1.xpose.msra.mxu0 0.0
        %1324 = vmatprep.subr.mxu0 0.0
        %1325 = vmatpush1.xpose.msra.mxu0 0.0
        %1326 = vmatprep.subr.mxu0 0.0
        %1327 = vmatpush1.xpose.msra.mxu0 0.0
        %1328 = vmatprep.subr.mxu0 0.0
        %1329 = vmatpush1.xpose.msra.mxu0 0.0
        %1330 = vmatprep.subr.mxu0 0.0
        %1331 = vmatpush1.xpose.msra.mxu0 0.0
        %1332 = vmatprep.subr.mxu0 0.0
        %1333 = vmatpush1.xpose.msra.mxu0 0.0
        %1334 = vmatprep.subr.mxu0 0.0
        %1335 = vmatpush1.xpose.msra.mxu0 0.0
        %1336 = vmatprep.subr.mxu0 0.0
        %1337 = vmatpush1.xpose.msra.mxu0 0.0
        %1338 = vmatprep.subr.mxu0 0.0
        %1339 = vmatpush1.xpose.msra.mxu0 0.0
        %1340 = vmatprep.subr.mxu0 0.0
        %1341 = vmatpush1.xpose.msra.mxu0 0.0
        %1342 = vmatprep.subr.mxu0 0.0
        %1343 = vmatpush1.xpose.msra.mxu0 0.0
        %1344 = vmatprep.subr.mxu0 0.0
        %1345 = vmatpush1.xpose.msra.mxu0 0.0
        %1346 = vmatprep.subr.mxu0 0.0
        %1347 = vmatpush1.xpose.msra.mxu0 0.0
        %1348 = vmatprep.subr.mxu0 0.0
        %1349 = vmatpush1.xpose.msra.mxu0 0.0
        %1350 = vmatprep.subr.mxu0 0.0
        %1351 = vmatpush1.xpose.msra.mxu0 0.0
        %1352 = vmatprep.subr.mxu0 0.0
        %1353 = vmatpush1.xpose.msra.mxu0 0.0
        %1354 = vmatprep.subr.mxu0 0.0
        %1355 = vmatpush1.xpose.msra.mxu0 0.0
        %1356 = vmatprep.subr.mxu0 0.0
        %1357 = vmatpush1.xpose.msra.mxu0 0.0
        %1358 = vmatprep.subr.mxu0 0.0
        %1359 = vmatpush1.xpose.msra.mxu0 0.0
        %1360 = vmatprep.subr.mxu0 0.0
        %1361 = vmatpush1.xpose.msra.mxu0 0.0
        %1362 = vmatprep.subr.mxu0 0.0
        %1363 = vmatpush1.xpose.msra.mxu0 0.0
        %1364 = vmatprep.subr.mxu0 0.0
        %1365 = vmatpush1.xpose.msra.mxu0 0.0
        %1366 = vmatprep.subr.mxu0 0.0
        %1367 = vmatpush1.xpose.msra.mxu0 0.0
        %1368 = vmatprep.subr.mxu0 0.0
        %1369 = vmatpush1.xpose.msra.mxu0 0.0
        %1370 = vmatprep.subr.mxu0 0.0
        %1371 = vmatpush1.xpose.msra.mxu0 0.0
        %1372 = vmatprep.subr.mxu0 0.0
        %1373 = vmatpush1.xpose.msra.mxu0 0.0
        %1374 = vmatprep.subr.mxu0 0.0
        %1375 = vmatpush1.xpose.msra.mxu0 0.0
        %1376 = vmatprep.subr.mxu0 0.0
        %1377 = vmatpush1.xpose.msra.mxu0 0.0
        %1378 = vmatprep.mubr.f32.mxu0 0.0
        %1379 = vmatmul.mubr.f32.gmra.mrb[0].mxu0 %v1309
        %v1380 = vpop.f32.mrb[0].mxu0
        %v1381 = vadd.f32 0.0, %v1380
        %v1382 = vpop.f32.mrb[0].mxu0
        %1383 = vdwg.mxu0
        %v1384 = vmul.f32 %v1381, 0.17677669
        %v1386 = vlaneseq
        %v1387 = vshrl.u32 %v1386, 7
        %v1388 = vsub.s32 0, %v1387
        %v1389 = vrot.slane %v1047, %v1388
        %v1391 = vadd.f32 %v1384, %v1389
        %vm1392 = vcmask 64512
        %v1393 = vsel %vm1392, %v1391, -inf
        %1394 = vmax.xlane.f32.xlu0 %v1393
        %v1395 = vpop.xlane.xlu0 %1394
        %v1396 = vsub.f32 %v1391, %v1395
        %v1397 = vmul.f32 %v1396, 1.442695
        %v1398 = vpow.pop %v1397
        %v1399 = vsel %vm1392, %v1398, 0.0
        %1400 = vadd.xlane.f32.xlu0 %v1399
        %v1401 = vpop.xlane.xlu0 %1400
        %v1402 = vrcp.pop %v1401
        %v1403 = vmul.f32 %v1398, %v1402
        %v1405 = vsel %vm1392, %v1403, 0
        %1407 = vmatprep.subr.mxu0 0.0
        %1408 = vmatpush1.msra.mxu0 %v1302
        %1409 = vmatprep.subr.mxu0 0.0
        %1410 = vmatpush1.msra.mxu0 0.0
        %1411 = vmatprep.subr.mxu0 0.0
        %1412 = vmatpush1.msra.mxu0 0.0
        %1413 = vmatprep.subr.mxu0 0.0
        %1414 = vmatpush1.msra.mxu0 0.0
        %1415 = vmatprep.subr.mxu0 0.0
        %1416 = vmatpush1.msra.mxu0 0.0
        %1417 = vmatprep.subr.mxu0 0.0
        %1418 = vmatpush1.msra.mxu0 0.0
        %1419 = vmatprep.subr.mxu0 0.0
        %1420 = vmatpush1.msra.mxu0 0.0
        %1421 = vmatprep.subr.mxu0 0.0
        %1422 = vmatpush1.msra.mxu0 0.0
        %1423 = vmatprep.subr.mxu0 0.0
        %1424 = vmatpush1.msra.mxu0 0.0
        %1425 = vmatprep.subr.mxu0 0.0
        %1426 = vmatpush1.msra.mxu0 0.0
        %1427 = vmatprep.subr.mxu0 0.0
        %1428 = vmatpush1.msra.mxu0 0.0
        %1429 = vmatprep.subr.mxu0 0.0
        %1430 = vmatpush1.msra.mxu0 0.0
        %1431 = vmatprep.subr.mxu0 0.0
        %1432 = vmatpush1.msra.mxu0 0.0
        %1433 = vmatprep.subr.mxu0 0.0
        %1434 = vmatpush1.msra.mxu0 0.0
        %1435 = vmatprep.subr.mxu0 0.0
        %1436 = vmatpush1.msra.mxu0 0.0
        %1437 = vmatprep.subr.mxu0 0.0
        %1438 = vmatpush1.msra.mxu0 0.0
        %1439 = vmatprep.subr.mxu0 0.0
        %1440 = vmatpush1.msra.mxu0 0.0
        %1441 = vmatprep.subr.mxu0 0.0
        %1442 = vmatpush1.msra.mxu0 0.0
        %1443 = vmatprep.subr.mxu0 0.0
        %1444 = vmatpush1.msra.mxu0 0.0
        %1445 = vmatprep.subr.mxu0 0.0
        %1446 = vmatpush1.msra.mxu0 0.0
        %1447 = vmatprep.subr.mxu0 0.0
        %1448 = vmatpush1.msra.mxu0 0.0
        %1449 = vmatprep.subr.mxu0 0.0
        %1450 = vmatpush1.msra.mxu0 0.0
        %1451 = vmatprep.subr.mxu0 0.0
        %1452 = vmatpush1.msra.mxu0 0.0
        %1453 = vmatprep.subr.mxu0 0.0
        %1454 = vmatpush1.msra.mxu0 0.0
        %1455 = vmatprep.subr.mxu0 0.0
        %1456 = vmatpush1.msra.mxu0 0.0
        %1457 = vmatprep.subr.mxu0 0.0
        %1458 = vmatpush1.msra.mxu0 0.0
        %1459 = vmatprep.subr.mxu0 0.0
        %1460 = vmatpush1.msra.mxu0 0.0
        %1461 = vmatprep.subr.mxu0 0.0
        %1462 = vmatpush1.msra.mxu0 0.0
        %1463 = vmatprep.subr.mxu0 0.0
        %1464 = vmatpush1.msra.mxu0 0.0
        %1465 = vmatprep.subr.mxu0 0.0
        %1466 = vmatpush1.msra.mxu0 0.0
        %1467 = vmatprep.subr.mxu0 0.0
        %1468 = vmatpush1.msra.mxu0 0.0
        %1469 = vmatprep.subr.mxu0 0.0
        %1470 = vmatpush1.msra.mxu0 0.0
        %1471 = vmatprep.mubr.f32.mxu0 0.0
        %1472 = vmatmul.mubr.f32.gmra.mrb[0].mxu0 %v1405
        %v1473 = vpop.f32.mrb[0].mxu0
        %v1474 = vadd.f32 0.0, %v1473
        %v1475 = vpop.f32.mrb[0].mxu0
        %1476 = vdwg.mxu0
        %v1477 = vpack.c.bf16 %v1474, %v1474
        %v1478 = vld [vmem:[%s10] sm:$0xf]
        %v1479 = vld [vmem:[%s10 + $0x4] sm:$0xf]
        %v1480 = vld [vmem:[%s10 + $0x8] sm:$0xf]
        %v1481 = vld [vmem:[%s10 + $0xc] sm:$0xf]
        %1482 = vrot.lane.b32.xlu0 %v1261, 96
        %v1483 = vpop.permute.xlu0 %1482
        %1484 = vrot.lane.b32.xlu0 %v1263, 96
        %v1485 = vpop.permute.xlu0 %1484
        %v1486 = vsel %vm1307, %v1483, 0
        %v1488 = vsel %vm1307, %v1485, 0
        %1490 = vmatprep.subr.mxu0 0.0
        %1491 = vmatpush1.xpose.msra.mxu0 %v1488
        %1492 = vmatprep.subr.mxu0 0.0
        %1493 = vmatpush1.xpose.msra.mxu0 0.0
        %1494 = vmatprep.subr.mxu0 0.0
        %1495 = vmatpush1.xpose.msra.mxu0 0.0
        %1496 = vmatprep.subr.mxu0 0.0
        %1497 = vmatpush1.xpose.msra.mxu0 0.0
        %1498 = vmatprep.subr.mxu0 0.0
        %1499 = vmatpush1.xpose.msra.mxu0 0.0
        %1500 = vmatprep.subr.mxu0 0.0
        %1501 = vmatpush1.xpose.msra.mxu0 0.0
        %1502 = vmatprep.subr.mxu0 0.0
        %1503 = vmatpush1.xpose.msra.mxu0 0.0
        %1504 = vmatprep.subr.mxu0 0.0
        %1505 = vmatpush1.xpose.msra.mxu0 0.0
        %1506 = vmatprep.subr.mxu0 0.0
        %1507 = vmatpush1.xpose.msra.mxu0 0.0
        %1508 = vmatprep.subr.mxu0 0.0
        %1509 = vmatpush1.xpose.msra.mxu0 0.0
        %1510 = vmatprep.subr.mxu0 0.0
        %1511 = vmatpush1.xpose.msra.mxu0 0.0
        %1512 = vmatprep.subr.mxu0 0.0
        %1513 = vmatpush1.xpose.msra.mxu0 0.0
        %1514 = vmatprep.subr.mxu0 0.0
        %1515 = vmatpush1.xpose.msra.mxu0 0.0
        %1516 = vmatprep.subr.mxu0 0.0
        %1517 = vmatpush1.xpose.msra.mxu0 0.0
        %1518 = vmatprep.subr.mxu0 0.0
        %1519 = vmatpush1.xpose.msra.mxu0 0.0
        %1520 = vmatprep.subr.mxu0 0.0
        %1521 = vmatpush1.xpose.msra.mxu0 0.0
        %1522 = vmatprep.subr.mxu0 0.0
        %1523 = vmatpush1.xpose.msra.mxu0 0.0
        %1524 = vmatprep.subr.mxu0 0.0
        %1525 = vmatpush1.xpose.msra.mxu0 0.0
        %1526 = vmatprep.subr.mxu0 0.0
        %1527 = vmatpush1.xpose.msra.mxu0 0.0
        %1528 = vmatprep.subr.mxu0 0.0
        %1529 = vmatpush1.xpose.msra.mxu0 0.0
        %1530 = vmatprep.subr.mxu0 0.0
        %1531 = vmatpush1.xpose.msra.mxu0 0.0
        %1532 = vmatprep.subr.mxu0 0.0
        %1533 = vmatpush1.xpose.msra.mxu0 0.0
        %1534 = vmatprep.subr.mxu0 0.0
        %1535 = vmatpush1.xpose.msra.mxu0 0.0
        %1536 = vmatprep.subr.mxu0 0.0
        %1537 = vmatpush1.xpose.msra.mxu0 0.0
        %1538 = vmatprep.subr.mxu0 0.0
        %1539 = vmatpush1.xpose.msra.mxu0 0.0
        %1540 = vmatprep.subr.mxu0 0.0
        %1541 = vmatpush1.xpose.msra.mxu0 0.0
        %1542 = vmatprep.subr.mxu0 0.0
        %1543 = vmatpush1.xpose.msra.mxu0 0.0
        %1544 = vmatprep.subr.mxu0 0.0
        %1545 = vmatpush1.xpose.msra.mxu0 0.0
        %1546 = vmatprep.subr.mxu0 0.0
        %1547 = vmatpush1.xpose.msra.mxu0 0.0
        %1548 = vmatprep.subr.mxu0 0.0
        %1549 = vmatpush1.xpose.msra.mxu0 0.0
        %1550 = vmatprep.subr.mxu0 0.0
        %1551 = vmatpush1.xpose.msra.mxu0 0.0
        %1552 = vmatprep.subr.mxu0 0.0
        %1553 = vmatpush1.xpose.msra.mxu0 0.0
        %1554 = vmatprep.mubr.f32.mxu0 0.0
        %1555 = vmatmul.mubr.f32.gmra.mrb[0].mxu0 %v1486
        %v1556 = vpop.f32.mrb[0].mxu0
        %v1557 = vadd.f32 0.0, %v1556
        %v1558 = vpop.f32.mrb[0].mxu0
        %1559 = vdwg.mxu0
        %v1560 = vmul.f32 %v1557, 0.17677669
        %v1561 = vadd.f32 %v1560, %v1389
        %v1562 = vsel %vm1392, %v1561, -inf
        %1563 = vmax.xlane.f32.xlu0 %v1562
        %v1564 = vpop.xlane.xlu0 %1563
        %v1565 = vsub.f32 %v1561, %v1564
        %v1566 = vmul.f32 %v1565, 1.442695
        %v1567 = vpow.pop %v1566
        %v1568 = vsel %vm1392, %v1567, 0.0
        %1569 = vadd.xlane.f32.xlu0 %v1568
        %v1570 = vpop.xlane.xlu0 %1569
        %v1571 = vrcp.pop %v1570
        %v1572 = vmul.f32 %v1567, %v1571
        %1574 = vrot.lane.b32.xlu0 %v1302, 96
        %v1575 = vpop.permute.xlu0 %1574
        %v1578 = vsel %vm1392, %v1572, 0
        %1580 = vmatprep.subr.mxu0 0.0
        %1581 = vmatpush1.msra.mxu0 %v1575
        %1582 = vmatprep.subr.mxu0 0.0
        %1583 = vmatpush1.msra.mxu0 0.0
        %1584 = vmatprep.subr.mxu0 0.0
        %1585 = vmatpush1.msra.mxu0 0.0
        %1586 = vmatprep.subr.mxu0 0.0
        %1587 = vmatpush1.msra.mxu0 0.0
        %1588 = vmatprep.subr.mxu0 0.0
        %1589 = vmatpush1.msra.mxu0 0.0
        %1590 = vmatprep.subr.mxu0 0.0
        %1591 = vmatpush1.msra.mxu0 0.0
        %1592 = vmatprep.subr.mxu0 0.0
        %1593 = vmatpush1.msra.mxu0 0.0
        %1594 = vmatprep.subr.mxu0 0.0
        %1595 = vmatpush1.msra.mxu0 0.0
        %1596 = vmatprep.subr.mxu0 0.0
        %1597 = vmatpush1.msra.mxu0 0.0
        %1598 = vmatprep.subr.mxu0 0.0
        %1599 = vmatpush1.msra.mxu0 0.0
        %1600 = vmatprep.subr.mxu0 0.0
        %1601 = vmatpush1.msra.mxu0 0.0
        %1602 = vmatprep.subr.mxu0 0.0
        %1603 = vmatpush1.msra.mxu0 0.0
        %1604 = vmatprep.subr.mxu0 0.0
        %1605 = vmatpush1.msra.mxu0 0.0
        %1606 = vmatprep.subr.mxu0 0.0
        %1607 = vmatpush1.msra.mxu0 0.0
        %1608 = vmatprep.subr.mxu0 0.0
        %1609 = vmatpush1.msra.mxu0 0.0
        %1610 = vmatprep.subr.mxu0 0.0
        %1611 = vmatpush1.msra.mxu0 0.0
        %1612 = vmatprep.subr.mxu0 0.0
        %1613 = vmatpush1.msra.mxu0 0.0
        %1614 = vmatprep.subr.mxu0 0.0
        %1615 = vmatpush1.msra.mxu0 0.0
        %1616 = vmatprep.subr.mxu0 0.0
        %1617 = vmatpush1.msra.mxu0 0.0
        %1618 = vmatprep.subr.mxu0 0.0
        %1619 = vmatpush1.msra.mxu0 0.0
        %1620 = vmatprep.subr.mxu0 0.0
        %1621 = vmatpush1.msra.mxu0 0.0
        %1622 = vmatprep.subr.mxu0 0.0
        %1623 = vmatpush1.msra.mxu0 0.0
        %1624 = vmatprep.subr.mxu0 0.0
        %1625 = vmatpush1.msra.mxu0 0.0
        %1626 = vmatprep.subr.mxu0 0.0
        %1627 = vmatpush1.msra.mxu0 0.0
        %1628 = vmatprep.subr.mxu0 0.0
        %1629 = vmatpush1.msra.mxu0 0.0
        %1630 = vmatprep.subr.mxu0 0.0
        %1631 = vmatpush1.msra.mxu0 0.0
        %1632 = vmatprep.subr.mxu0 0.0
        %1633 = vmatpush1.msra.mxu0 0.0
        %1634 = vmatprep.subr.mxu0 0.0
        %1635 = vmatpush1.msra.mxu0 0.0
        %1636 = vmatprep.subr.mxu0 0.0
        %1637 = vmatpush1.msra.mxu0 0.0
        %1638 = vmatprep.subr.mxu0 0.0
        %1639 = vmatpush1.msra.mxu0 0.0
        %1640 = vmatprep.subr.mxu0 0.0
        %1641 = vmatpush1.msra.mxu0 0.0
        %1642 = vmatprep.subr.mxu0 0.0
        %1643 = vmatpush1.msra.mxu0 0.0
        %1644 = vmatprep.mubr.f32.mxu0 0.0
        %1645 = vmatmul.mubr.f32.gmra.mrb[0].mxu0 %v1578
        %v1646 = vpop.f32.mrb[0].mxu0
        %v1647 = vadd.f32 0.0, %v1646
        %v1648 = vpop.f32.mrb[0].mxu0
        %1649 = vdwg.mxu0
        %v1650 = vpack.c.bf16 %v1647, %v1647
        %s1651 = scalar_lea.vmem %s10, 16
        %v1652 = vld [vmem:[%s1651] sm:$0xf]
        %v1653 = vld [vmem:[%s1651 + $0x4] sm:$0xf]
        %v1654 = vld [vmem:[%s1651 + $0x8] sm:$0xf]
        %v1655 = vld [vmem:[%s1651 + $0xc] sm:$0xf]
        %v1660 = vunpack.c.l.b16 %v1652
        %v1661 = vunpack.c.l.b16 %v1653
        %v1662 = vunpack.c.l.b16 %v1654
        %v1663 = vunpack.c.l.b16 %v1655
        %v1664 = vpack.c.b16 %v1661, %v1660
        %v1665 = vpack.c.b16 %v1663, %v1662
        %v1669 = vsel %vm1307, %v1650, 0
        %1671 = vmatprep.subr.bf16.mxu0 0
        %1672 = vmatpush1.bf16.msra.mxu0 %v1664
        %1673 = vmatprep.subr.bf16.mxu0 0
        %1674 = vmatpush1.bf16.msra.mxu0 %v1665
        %1675 = vmatprep.subr.bf16.mxu0 0
        %1676 = vmatpush1.bf16.msra.mxu0 0
        %1677 = vmatprep.subr.bf16.mxu0 0
        %1678 = vmatpush1.bf16.msra.mxu0 0
        %1679 = vmatprep.subr.bf16.mxu0 0
        %1680 = vmatpush1.bf16.msra.mxu0 0
        %1681 = vmatprep.subr.bf16.mxu0 0
        %1682 = vmatpush1.bf16.msra.mxu0 0
        %1683 = vmatprep.subr.bf16.mxu0 0
        %1684 = vmatpush1.bf16.msra.mxu0 0
        %1685 = vmatprep.subr.bf16.mxu0 0
        %1686 = vmatpush1.bf16.msra.mxu0 0
        %1687 = vmatprep.subr.bf16.mxu0 0
        %1688 = vmatpush1.bf16.msra.mxu0 0
        %1689 = vmatprep.subr.bf16.mxu0 0
        %1690 = vmatpush1.bf16.msra.mxu0 0
        %1691 = vmatprep.subr.bf16.mxu0 0
        %1692 = vmatpush1.bf16.msra.mxu0 0
        %1693 = vmatprep.subr.bf16.mxu0 0
        %1694 = vmatpush1.bf16.msra.mxu0 0
        %1695 = vmatprep.subr.bf16.mxu0 0
        %1696 = vmatpush1.bf16.msra.mxu0 0
        %1697 = vmatprep.subr.bf16.mxu0 0
        %1698 = vmatpush1.bf16.msra.mxu0 0
        %1699 = vmatprep.subr.bf16.mxu0 0
        %1700 = vmatpush1.bf16.msra.mxu0 0
        %1701 = vmatprep.subr.bf16.mxu0 0
        %1702 = vmatpush1.bf16.msra.mxu0 0
        %1703 = vmatprep.mubr.bf16.mxu0 0
        %1704 = vmatmul.mubr.bf16.gmra.mrb[0].mxu0 %v1669
        %v1705 = vpop.f32.mrb[0].mxu0
        %v1706 = vadd.f32 0.0, %v1705
        %v1707 = vpop.f32.mrb[0].mxu0
        %v1708 = vpop.f32.mrb[0].mxu0
        %v1709 = vpop.f32.mrb[0].mxu0
        %1710 = vdwg.mxu0
        %v1715 = vunpack.c.l.b16 %v1478
        %v1716 = vunpack.c.l.b16 %v1479
        %v1717 = vunpack.c.l.b16 %v1480
        %v1718 = vunpack.c.l.b16 %v1481
        %v1719 = vpack.c.b16 %v1716, %v1715
        %v1720 = vpack.c.b16 %v1718, %v1717
        %v1724 = vsel %vm1307, %v1477, 0
        %1726 = vmatprep.subr.bf16.mxu0 0
        %1727 = vmatpush1.bf16.msra.mxu0 %v1719
        %1728 = vmatprep.subr.bf16.mxu0 0
        %1729 = vmatpush1.bf16.msra.mxu0 %v1720
        %1730 = vmatprep.subr.bf16.mxu0 0
        %1731 = vmatpush1.bf16.msra.mxu0 0
        %1732 = vmatprep.subr.bf16.mxu0 0
        %1733 = vmatpush1.bf16.msra.mxu0 0
        %1734 = vmatprep.subr.bf16.mxu0 0
        %1735 = vmatpush1.bf16.msra.mxu0 0
        %1736 = vmatprep.subr.bf16.mxu0 0
        %1737 = vmatpush1.bf16.msra.mxu0 0
        %1738 = vmatprep.subr.bf16.mxu0 0
        %1739 = vmatpush1.bf16.msra.mxu0 0
        %1740 = vmatprep.subr.bf16.mxu0 0
        %1741 = vmatpush1.bf16.msra.mxu0 0
        %1742 = vmatprep.subr.bf16.mxu0 0
        %1743 = vmatpush1.bf16.msra.mxu0 0
        %1744 = vmatprep.subr.bf16.mxu0 0
        %1745 = vmatpush1.bf16.msra.mxu0 0
        %1746 = vmatprep.subr.bf16.mxu0 0
        %1747 = vmatpush1.bf16.msra.mxu0 0
        %1748 = vmatprep.subr.bf16.mxu0 0
        %1749 = vmatpush1.bf16.msra.mxu0 0
        %1750 = vmatprep.subr.bf16.mxu0 0
        %1751 = vmatpush1.bf16.msra.mxu0 0
        %1752 = vmatprep.subr.bf16.mxu0 0
        %1753 = vmatpush1.bf16.msra.mxu0 0
        %1754 = vmatprep.subr.bf16.mxu0 0
        %1755 = vmatpush1.bf16.msra.mxu0 0
        %1756 = vmatprep.subr.bf16.mxu0 0
        %1757 = vmatpush1.bf16.msra.mxu0 0
        %1758 = vmatprep.mubr.bf16.mxu0 0
        %1759 = vmatmul.mubr.bf16.gmra.mrb[0].mxu0 %v1724
        %v1760 = vpop.f32.mrb[0].mxu0
        %v1761 = vadd.f32 %v1706, %v1760
        %v1762 = vpop.f32.mrb[0].mxu0
        %v1763 = vpop.f32.mrb[0].mxu0
        %v1764 = vpop.f32.mrb[0].mxu0
        %1765 = vdwg.mxu0
        %1766 = vrot.lane.b32.xlu0 %v1261, 64
        %v1767 = vpop.permute.xlu0 %1766
        %1768 = vrot.lane.b32.xlu0 %v1263, 64
        %v1769 = vpop.permute.xlu0 %1768
        %v1770 = vsel %vm1307, %v1767, 0
        %v1772 = vsel %vm1307, %v1769, 0
        %1774 = vmatprep.subr.mxu0 0.0
        %1775 = vmatpush1.xpose.msra.mxu0 %v1772
        %1776 = vmatprep.subr.mxu0 0.0
        %1777 = vmatpush1.xpose.msra.mxu0 0.0
        %1778 = vmatprep.subr.mxu0 0.0
        %1779 = vmatpush1.xpose.msra.mxu0 0.0
        %1780 = vmatprep.subr.mxu0 0.0
        %1781 = vmatpush1.xpose.msra.mxu0 0.0
        %1782 = vmatprep.subr.mxu0 0.0
        %1783 = vmatpush1.xpose.msra.mxu0 0.0
        %1784 = vmatprep.subr.mxu0 0.0
        %1785 = vmatpush1.xpose.msra.mxu0 0.0
        %1786 = vmatprep.subr.mxu0 0.0
        %1787 = vmatpush1.xpose.msra.mxu0 0.0
        %1788 = vmatprep.subr.mxu0 0.0
        %1789 = vmatpush1.xpose.msra.mxu0 0.0
        %1790 = vmatprep.subr.mxu0 0.0
        %1791 = vmatpush1.xpose.msra.mxu0 0.0
        %1792 = vmatprep.subr.mxu0 0.0
        %1793 = vmatpush1.xpose.msra.mxu0 0.0
        %1794 = vmatprep.subr.mxu0 0.0
        %1795 = vmatpush1.xpose.msra.mxu0 0.0
        %1796 = vmatprep.subr.mxu0 0.0
        %1797 = vmatpush1.xpose.msra.mxu0 0.0
        %1798 = vmatprep.subr.mxu0 0.0
        %1799 = vmatpush1.xpose.msra.mxu0 0.0
        %1800 = vmatprep.subr.mxu0 0.0
        %1801 = vmatpush1.xpose.msra.mxu0 0.0
        %1802 = vmatprep.subr.mxu0 0.0
        %1803 = vmatpush1.xpose.msra.mxu0 0.0
        %1804 = vmatprep.subr.mxu0 0.0
        %1805 = vmatpush1.xpose.msra.mxu0 0.0
        %1806 = vmatprep.subr.mxu0 0.0
        %1807 = vmatpush1.xpose.msra.mxu0 0.0
        %1808 = vmatprep.subr.mxu0 0.0
        %1809 = vmatpush1.xpose.msra.mxu0 0.0
        %1810 = vmatprep.subr.mxu0 0.0
        %1811 = vmatpush1.xpose.msra.mxu0 0.0
        %1812 = vmatprep.subr.mxu0 0.0
        %1813 = vmatpush1.xpose.msra.mxu0 0.0
        %1814 = vmatprep.subr.mxu0 0.0
        %1815 = vmatpush1.xpose.msra.mxu0 0.0
        %1816 = vmatprep.subr.mxu0 0.0
        %1817 = vmatpush1.xpose.msra.mxu0 0.0
        %1818 = vmatprep.subr.mxu0 0.0
        %1819 = vmatpush1.xpose.msra.mxu0 0.0
        %1820 = vmatprep.subr.mxu0 0.0
        %1821 = vmatpush1.xpose.msra.mxu0 0.0
        %1822 = vmatprep.subr.mxu0 0.0
        %1823 = vmatpush1.xpose.msra.mxu0 0.0
        %1824 = vmatprep.subr.mxu0 0.0
        %1825 = vmatpush1.xpose.msra.mxu0 0.0
        %1826 = vmatprep.subr.mxu0 0.0
        %1827 = vmatpush1.xpose.msra.mxu0 0.0
        %1828 = vmatprep.subr.mxu0 0.0
        %1829 = vmatpush1.xpose.msra.mxu0 0.0
        %1830 = vmatprep.subr.mxu0 0.0
        %1831 = vmatpush1.xpose.msra.mxu0 0.0
        %1832 = vmatprep.subr.mxu0 0.0
        %1833 = vmatpush1.xpose.msra.mxu0 0.0
        %1834 = vmatprep.subr.mxu0 0.0
        %1835 = vmatpush1.xpose.msra.mxu0 0.0
        %1836 = vmatprep.subr.mxu0 0.0
        %1837 = vmatpush1.xpose.msra.mxu0 0.0
        %1838 = vmatprep.mubr.f32.mxu0 0.0
        %1839 = vmatmul.mubr.f32.gmra.mrb[0].mxu0 %v1770
        %v1840 = vpop.f32.mrb[0].mxu0
        %v1841 = vadd.f32 0.0, %v1840
        %v1842 = vpop.f32.mrb[0].mxu0
        %1843 = vdwg.mxu0
        %v1844 = vmul.f32 %v1841, 0.17677669
        %v1845 = vadd.f32 %v1844, %v1389
        %v1846 = vsel %vm1392, %v1845, -inf
        %1847 = vmax.xlane.f32.xlu0 %v1846
        %v1848 = vpop.xlane.xlu0 %1847
        %v1849 = vsub.f32 %v1845, %v1848
        %v1850 = vmul.f32 %v1849, 1.442695
        %v1851 = vpow.pop %v1850
        %v1852 = vsel %vm1392, %v1851, 0.0
        %1853 = vadd.xlane.f32.xlu0 %v1852
        %v1854 = vpop.xlane.xlu0 %1853
        %v1855 = vrcp.pop %v1854
        %v1856 = vmul.f32 %v1851, %v1855
        %1857 = vrot.lane.b32.xlu0 %v1302, 64
        %v1858 = vpop.permute.xlu0 %1857
        %v1861 = vsel %vm1392, %v1856, 0
        %1863 = vmatprep.subr.mxu0 0.0
        %1864 = vmatpush1.msra.mxu0 %v1858
        %1865 = vmatprep.subr.mxu0 0.0
        %1866 = vmatpush1.msra.mxu0 0.0
        %1867 = vmatprep.subr.mxu0 0.0
        %1868 = vmatpush1.msra.mxu0 0.0
        %1869 = vmatprep.subr.mxu0 0.0
        %1870 = vmatpush1.msra.mxu0 0.0
        %1871 = vmatprep.subr.mxu0 0.0
        %1872 = vmatpush1.msra.mxu0 0.0
        %1873 = vmatprep.subr.mxu0 0.0
        %1874 = vmatpush1.msra.mxu0 0.0
        %1875 = vmatprep.subr.mxu0 0.0
        %1876 = vmatpush1.msra.mxu0 0.0
        %1877 = vmatprep.subr.mxu0 0.0
        %1878 = vmatpush1.msra.mxu0 0.0
        %1879 = vmatprep.subr.mxu0 0.0
        %1880 = vmatpush1.msra.mxu0 0.0
        %1881 = vmatprep.subr.mxu0 0.0
        %1882 = vmatpush1.msra.mxu0 0.0
        %1883 = vmatprep.subr.mxu0 0.0
        %1884 = vmatpush1.msra.mxu0 0.0
        %1885 = vmatprep.subr.mxu0 0.0
        %1886 = vmatpush1.msra.mxu0 0.0
        %1887 = vmatprep.subr.mxu0 0.0
        %1888 = vmatpush1.msra.mxu0 0.0
        %1889 = vmatprep.subr.mxu0 0.0
        %1890 = vmatpush1.msra.mxu0 0.0
        %1891 = vmatprep.subr.mxu0 0.0
        %1892 = vmatpush1.msra.mxu0 0.0
        %1893 = vmatprep.subr.mxu0 0.0
        %1894 = vmatpush1.msra.mxu0 0.0
        %1895 = vmatprep.subr.mxu0 0.0
        %1896 = vmatpush1.msra.mxu0 0.0
        %1897 = vmatprep.subr.mxu0 0.0
        %1898 = vmatpush1.msra.mxu0 0.0
        %1899 = vmatprep.subr.mxu0 0.0
        %1900 = vmatpush1.msra.mxu0 0.0
        %1901 = vmatprep.subr.mxu0 0.0
        %1902 = vmatpush1.msra.mxu0 0.0
        %1903 = vmatprep.subr.mxu0 0.0
        %1904 = vmatpush1.msra.mxu0 0.0
        %1905 = vmatprep.subr.mxu0 0.0
        %1906 = vmatpush1.msra.mxu0 0.0
        %1907 = vmatprep.subr.mxu0 0.0
        %1908 = vmatpush1.msra.mxu0 0.0
        %1909 = vmatprep.subr.mxu0 0.0
        %1910 = vmatpush1.msra.mxu0 0.0
        %1911 = vmatprep.subr.mxu0 0.0
        %1912 = vmatpush1.msra.mxu0 0.0
        %1913 = vmatprep.subr.mxu0 0.0
        %1914 = vmatpush1.msra.mxu0 0.0
        %1915 = vmatprep.subr.mxu0 0.0
        %1916 = vmatpush1.msra.mxu0 0.0
        %1917 = vmatprep.subr.mxu0 0.0
        %1918 = vmatpush1.msra.mxu0 0.0
        %1919 = vmatprep.subr.mxu0 0.0
        %1920 = vmatpush1.msra.mxu0 0.0
        %1921 = vmatprep.subr.mxu0 0.0
        %1922 = vmatpush1.msra.mxu0 0.0
        %1923 = vmatprep.subr.mxu0 0.0
        %1924 = vmatpush1.msra.mxu0 0.0
        %1925 = vmatprep.subr.mxu0 0.0
        %1926 = vmatpush1.msra.mxu0 0.0
        %1927 = vmatprep.mubr.f32.mxu0 0.0
        %1928 = vmatmul.mubr.f32.gmra.mrb[0].mxu0 %v1861
        %v1929 = vpop.f32.mrb[0].mxu0
        %v1930 = vadd.f32 0.0, %v1929
        %v1931 = vpop.f32.mrb[0].mxu0
        %1932 = vdwg.mxu0
        %v1933 = vpack.c.bf16 %v1930, %v1930
        %s1934 = scalar_lea.vmem %s10, 32
        %v1935 = vld [vmem:[%s1934] sm:$0xf]
        %v1936 = vld [vmem:[%s1934 + $0x4] sm:$0xf]
        %v1937 = vld [vmem:[%s1934 + $0x8] sm:$0xf]
        %v1938 = vld [vmem:[%s1934 + $0xc] sm:$0xf]
        %v1943 = vunpack.c.l.b16 %v1935
        %v1944 = vunpack.c.l.b16 %v1936
        %v1945 = vunpack.c.l.b16 %v1937
        %v1946 = vunpack.c.l.b16 %v1938
        %v1947 = vpack.c.b16 %v1944, %v1943
        %v1948 = vpack.c.b16 %v1946, %v1945
        %v1952 = vsel %vm1307, %v1933, 0
        %1954 = vmatprep.subr.bf16.mxu0 0
        %1955 = vmatpush1.bf16.msra.mxu0 %v1947
        %1956 = vmatprep.subr.bf16.mxu0 0
        %1957 = vmatpush1.bf16.msra.mxu0 %v1948
        %1958 = vmatprep.subr.bf16.mxu0 0
        %1959 = vmatpush1.bf16.msra.mxu0 0
        %1960 = vmatprep.subr.bf16.mxu0 0
        %1961 = vmatpush1.bf16.msra.mxu0 0
        %1962 = vmatprep.subr.bf16.mxu0 0
        %1963 = vmatpush1.bf16.msra.mxu0 0
        %1964 = vmatprep.subr.bf16.mxu0 0
        %1965 = vmatpush1.bf16.msra.mxu0 0
        %1966 = vmatprep.subr.bf16.mxu0 0
        %1967 = vmatpush1.bf16.msra.mxu0 0
        %1968 = vmatprep.subr.bf16.mxu0 0
        %1969 = vmatpush1.bf16.msra.mxu0 0
        %1970 = vmatprep.subr.bf16.mxu0 0
        %1971 = vmatpush1.bf16.msra.mxu0 0
        %1972 = vmatprep.subr.bf16.mxu0 0
        %1973 = vmatpush1.bf16.msra.mxu0 0
        %1974 = vmatprep.subr.bf16.mxu0 0
        %1975 = vmatpush1.bf16.msra.mxu0 0
        %1976 = vmatprep.subr.bf16.mxu0 0
        %1977 = vmatpush1.bf16.msra.mxu0 0
        %1978 = vmatprep.subr.bf16.mxu0 0
        %1979 = vmatpush1.bf16.msra.mxu0 0
        %1980 = vmatprep.subr.bf16.mxu0 0
        %1981 = vmatpush1.bf16.msra.mxu0 0
        %1982 = vmatprep.subr.bf16.mxu0 0
        %1983 = vmatpush1.bf16.msra.mxu0 0
        %1984 = vmatprep.subr.bf16.mxu0 0
        %1985 = vmatpush1.bf16.msra.mxu0 0
        %1986 = vmatprep.mubr.bf16.mxu0 0
        %1987 = vmatmul.mubr.bf16.gmra.mrb[0].mxu0 %v1952
        %v1988 = vpop.f32.mrb[0].mxu0
        %v1989 = vadd.f32 0.0, %v1988
        %v1990 = vpop.f32.mrb[0].mxu0
        %v1991 = vpop.f32.mrb[0].mxu0
        %v1992 = vpop.f32.mrb[0].mxu0
        %1993 = vdwg.mxu0
        %v1994 = vadd.f32 %v1761, %v1989
        %1995 = vrot.lane.b32.xlu0 %v1261, 32
        %v1996 = vpop.permute.xlu0 %1995
        %1997 = vrot.lane.b32.xlu0 %v1263, 32
        %v1998 = vpop.permute.xlu0 %1997
        %v1999 = vsel %vm1307, %v1996, 0
        %v2001 = vsel %vm1307, %v1998, 0
        %2003 = vmatprep.subr.mxu0 0.0
        %2004 = vmatpush1.xpose.msra.mxu0 %v2001
        %2005 = vmatprep.subr.mxu0 0.0
        %2006 = vmatpush1.xpose.msra.mxu0 0.0
        %2007 = vmatprep.subr.mxu0 0.0
        %2008 = vmatpush1.xpose.msra.mxu0 0.0
        %2009 = vmatprep.subr.mxu0 0.0
        %2010 = vmatpush1.xpose.msra.mxu0 0.0
        %2011 = vmatprep.subr.mxu0 0.0
        %2012 = vmatpush1.xpose.msra.mxu0 0.0
        %2013 = vmatprep.subr.mxu0 0.0
        %2014 = vmatpush1.xpose.msra.mxu0 0.0
        %2015 = vmatprep.subr.mxu0 0.0
        %2016 = vmatpush1.xpose.msra.mxu0 0.0
        %2017 = vmatprep.subr.mxu0 0.0
        %2018 = vmatpush1.xpose.msra.mxu0 0.0
        %2019 = vmatprep.subr.mxu0 0.0
        %2020 = vmatpush1.xpose.msra.mxu0 0.0
        %2021 = vmatprep.subr.mxu0 0.0
        %2022 = vmatpush1.xpose.msra.mxu0 0.0
        %2023 = vmatprep.subr.mxu0 0.0
        %2024 = vmatpush1.xpose.msra.mxu0 0.0
        %2025 = vmatprep.subr.mxu0 0.0
        %2026 = vmatpush1.xpose.msra.mxu0 0.0
        %2027 = vmatprep.subr.mxu0 0.0
        %2028 = vmatpush1.xpose.msra.mxu0 0.0
        %2029 = vmatprep.subr.mxu0 0.0
        %2030 = vmatpush1.xpose.msra.mxu0 0.0
        %2031 = vmatprep.subr.mxu0 0.0
        %2032 = vmatpush1.xpose.msra.mxu0 0.0
        %2033 = vmatprep.subr.mxu0 0.0
        %2034 = vmatpush1.xpose.msra.mxu0 0.0
        %2035 = vmatprep.subr.mxu0 0.0
        %2036 = vmatpush1.xpose.msra.mxu0 0.0
        %2037 = vmatprep.subr.mxu0 0.0
        %2038 = vmatpush1.xpose.msra.mxu0 0.0
        %2039 = vmatprep.subr.mxu0 0.0
        %2040 = vmatpush1.xpose.msra.mxu0 0.0
        %2041 = vmatprep.subr.mxu0 0.0
        %2042 = vmatpush1.xpose.msra.mxu0 0.0
        %2043 = vmatprep.subr.mxu0 0.0
        %2044 = vmatpush1.xpose.msra.mxu0 0.0
        %2045 = vmatprep.subr.mxu0 0.0
        %2046 = vmatpush1.xpose.msra.mxu0 0.0
        %2047 = vmatprep.subr.mxu0 0.0
        %2048 = vmatpush1.xpose.msra.mxu0 0.0
        %2049 = vmatprep.subr.mxu0 0.0
        %2050 = vmatpush1.xpose.msra.mxu0 0.0
        %2051 = vmatprep.subr.mxu0 0.0
        %2052 = vmatpush1.xpose.msra.mxu0 0.0
        %2053 = vmatprep.subr.mxu0 0.0
        %2054 = vmatpush1.xpose.msra.mxu0 0.0
        %2055 = vmatprep.subr.mxu0 0.0
        %2056 = vmatpush1.xpose.msra.mxu0 0.0
        %2057 = vmatprep.subr.mxu0 0.0
        %2058 = vmatpush1.xpose.msra.mxu0 0.0
        %2059 = vmatprep.subr.mxu0 0.0
        %2060 = vmatpush1.xpose.msra.mxu0 0.0
        %2061 = vmatprep.subr.mxu0 0.0
        %2062 = vmatpush1.xpose.msra.mxu0 0.0
        %2063 = vmatprep.subr.mxu0 0.0
        %2064 = vmatpush1.xpose.msra.mxu0 0.0
        %2065 = vmatprep.subr.mxu0 0.0
        %2066 = vmatpush1.xpose.msra.mxu0 0.0
        %2067 = vmatprep.mubr.f32.mxu0 0.0
        %2068 = vmatmul.mubr.f32.gmra.mrb[0].mxu0 %v1999
        %v2069 = vpop.f32.mrb[0].mxu0
        %v2070 = vadd.f32 0.0, %v2069
        %v2071 = vpop.f32.mrb[0].mxu0
        %2072 = vdwg.mxu0
        %v2073 = vmul.f32 %v2070, 0.17677669
        %v2074 = vadd.f32 %v2073, %v1389
        %v2075 = vsel %vm1392, %v2074, -inf
        %2076 = vmax.xlane.f32.xlu0 %v2075
        %v2077 = vpop.xlane.xlu0 %2076
        %v2078 = vsub.f32 %v2074, %v2077
        %v2079 = vmul.f32 %v2078, 1.442695
        %v2080 = vpow.pop %v2079
        %v2081 = vsel %vm1392, %v2080, 0.0
        %2082 = vadd.xlane.f32.xlu0 %v2081
        %v2083 = vpop.xlane.xlu0 %2082
        %v2084 = vrcp.pop %v2083
        %v2085 = vmul.f32 %v2080, %v2084
        %2086 = vrot.lane.b32.xlu0 %v1302, 32
        %v2087 = vpop.permute.xlu0 %2086
        %v2090 = vsel %vm1392, %v2085, 0
        %2092 = vmatprep.subr.mxu0 0.0
        %2093 = vmatpush1.msra.mxu0 %v2087
        %2094 = vmatprep.subr.mxu0 0.0
        %2095 = vmatpush1.msra.mxu0 0.0
        %2096 = vmatprep.subr.mxu0 0.0
        %2097 = vmatpush1.msra.mxu0 0.0
        %2098 = vmatprep.subr.mxu0 0.0
        %2099 = vmatpush1.msra.mxu0 0.0
        %2100 = vmatprep.subr.mxu0 0.0
        %2101 = vmatpush1.msra.mxu0 0.0
        %2102 = vmatprep.subr.mxu0 0.0
        %2103 = vmatpush1.msra.mxu0 0.0
        %2104 = vmatprep.subr.mxu0 0.0
        %2105 = vmatpush1.msra.mxu0 0.0
        %2106 = vmatprep.subr.mxu0 0.0
        %2107 = vmatpush1.msra.mxu0 0.0
        %2108 = vmatprep.subr.mxu0 0.0
        %2109 = vmatpush1.msra.mxu0 0.0
        %2110 = vmatprep.subr.mxu0 0.0
        %2111 = vmatpush1.msra.mxu0 0.0
        %2112 = vmatprep.subr.mxu0 0.0
        %2113 = vmatpush1.msra.mxu0 0.0
        %2114 = vmatprep.subr.mxu0 0.0
        %2115 = vmatpush1.msra.mxu0 0.0
        %2116 = vmatprep.subr.mxu0 0.0
        %2117 = vmatpush1.msra.mxu0 0.0
        %2118 = vmatprep.subr.mxu0 0.0
        %2119 = vmatpush1.msra.mxu0 0.0
        %2120 = vmatprep.subr.mxu0 0.0
        %2121 = vmatpush1.msra.mxu0 0.0
        %2122 = vmatprep.subr.mxu0 0.0
        %2123 = vmatpush1.msra.mxu0 0.0
        %2124 = vmatprep.subr.mxu0 0.0
        %2125 = vmatpush1.msra.mxu0 0.0
        %2126 = vmatprep.subr.mxu0 0.0
        %2127 = vmatpush1.msra.mxu0 0.0
        %2128 = vmatprep.subr.mxu0 0.0
        %2129 = vmatpush1.msra.mxu0 0.0
        %2130 = vmatprep.subr.mxu0 0.0
        %2131 = vmatpush1.msra.mxu0 0.0
        %2132 = vmatprep.subr.mxu0 0.0
        %2133 = vmatpush1.msra.mxu0 0.0
        %2134 = vmatprep.subr.mxu0 0.0
        %2135 = vmatpush1.msra.mxu0 0.0
        %2136 = vmatprep.subr.mxu0 0.0
        %2137 = vmatpush1.msra.mxu0 0.0
        %2138 = vmatprep.subr.mxu0 0.0
        %2139 = vmatpush1.msra.mxu0 0.0
        %2140 = vmatprep.subr.mxu0 0.0
        %2141 = vmatpush1.msra.mxu0 0.0
        %2142 = vmatprep.subr.mxu0 0.0
        %2143 = vmatpush1.msra.mxu0 0.0
        %2144 = vmatprep.subr.mxu0 0.0
        %2145 = vmatpush1.msra.mxu0 0.0
        %2146 = vmatprep.subr.mxu0 0.0
        %2147 = vmatpush1.msra.mxu0 0.0
        %2148 = vmatprep.subr.mxu0 0.0
        %2149 = vmatpush1.msra.mxu0 0.0
        %2150 = vmatprep.subr.mxu0 0.0
        %2151 = vmatpush1.msra.mxu0 0.0
        %2152 = vmatprep.subr.mxu0 0.0
        %2153 = vmatpush1.msra.mxu0 0.0
        %2154 = vmatprep.subr.mxu0 0.0
        %2155 = vmatpush1.msra.mxu0 0.0
        %2156 = vmatprep.mubr.f32.mxu0 0.0
        %2157 = vmatmul.mubr.f32.gmra.mrb[0].mxu0 %v2090
        %v2158 = vpop.f32.mrb[0].mxu0
        %v2159 = vadd.f32 0.0, %v2158
        %v2160 = vpop.f32.mrb[0].mxu0
        %2161 = vdwg.mxu0
        %v2162 = vpack.c.bf16 %v2159, %v2159
        %s2163 = scalar_lea.vmem %s10, 48
        %v2164 = vld [vmem:[%s2163] sm:$0xf]
        %v2165 = vld [vmem:[%s2163 + $0x4] sm:$0xf]
        %v2166 = vld [vmem:[%s2163 + $0x8] sm:$0xf]
        %v2167 = vld [vmem:[%s2163 + $0xc] sm:$0xf]
        %v2172 = vunpack.c.l.b16 %v2164
        %v2173 = vunpack.c.l.b16 %v2165
        %v2174 = vunpack.c.l.b16 %v2166
        %v2175 = vunpack.c.l.b16 %v2167
        %v2176 = vpack.c.b16 %v2173, %v2172
        %v2177 = vpack.c.b16 %v2175, %v2174
        %v2181 = vsel %vm1307, %v2162, 0
        %2183 = vmatprep.subr.bf16.mxu0 0
        %2184 = vmatpush1.bf16.msra.mxu0 %v2176
        %2185 = vmatprep.subr.bf16.mxu0 0
        %2186 = vmatpush1.bf16.msra.mxu0 %v2177
        %2187 = vmatprep.subr.bf16.mxu0 0
        %2188 = vmatpush1.bf16.msra.mxu0 0
        %2189 = vmatprep.subr.bf16.mxu0 0
        %2190 = vmatpush1.bf16.msra.mxu0 0
        %2191 = vmatprep.subr.bf16.mxu0 0
        %2192 = vmatpush1.bf16.msra.mxu0 0
        %2193 = vmatprep.subr.bf16.mxu0 0
        %2194 = vmatpush1.bf16.msra.mxu0 0
        %2195 = vmatprep.subr.bf16.mxu0 0
        %2196 = vmatpush1.bf16.msra.mxu0 0
        %2197 = vmatprep.subr.bf16.mxu0 0
        %2198 = vmatpush1.bf16.msra.mxu0 0
        %2199 = vmatprep.subr.bf16.mxu0 0
        %2200 = vmatpush1.bf16.msra.mxu0 0
        %2201 = vmatprep.subr.bf16.mxu0 0
        %2202 = vmatpush1.bf16.msra.mxu0 0
        %2203 = vmatprep.subr.bf16.mxu0 0
        %2204 = vmatpush1.bf16.msra.mxu0 0
        %2205 = vmatprep.subr.bf16.mxu0 0
        %2206 = vmatpush1.bf16.msra.mxu0 0
        %2207 = vmatprep.subr.bf16.mxu0 0
        %2208 = vmatpush1.bf16.msra.mxu0 0
        %2209 = vmatprep.subr.bf16.mxu0 0
        %2210 = vmatpush1.bf16.msra.mxu0 0
        %2211 = vmatprep.subr.bf16.mxu0 0
        %2212 = vmatpush1.bf16.msra.mxu0 0
        %2213 = vmatprep.subr.bf16.mxu0 0
        %2214 = vmatpush1.bf16.msra.mxu0 0
        %2215 = vmatprep.mubr.bf16.mxu0 0
        %2216 = vmatmul.mubr.bf16.gmra.mrb[0].mxu0 %v2181
        %v2217 = vpop.f32.mrb[0].mxu0
        %v2218 = vadd.f32 0.0, %v2217
        %v2219 = vpop.f32.mrb[0].mxu0
        %v2220 = vpop.f32.mrb[0].mxu0
        %v2221 = vpop.f32.mrb[0].mxu0
        %2222 = vdwg.mxu0
        %v2223 = vadd.f32 %v1994, %v2218
        %v2224 = vadd.f32 %v1044, %v2223
        %v2225 = vld [vmem:[%s11] sm:$0x1]
        %v2227 = vlaneseq
        %v2228 = vshrl.u32 %v2227, 7
        %v2229 = vsub.s32 0, %v2228
        %v2230 = vrot.slane %v2225, %v2229
        %v2232 = vadd.f32 %v2224, %v2230
        %v2233 = vld [vmem:[%s12] sm:$0x1]
        %v2234 = vld [vmem:[%s13] sm:$0x1]
        %2235 = vadd.xlane.f32.xlu0 %v2232
        %v2236 = vpop.xlane.xlu0 %2235
        %v2237 = vmul.f32 %v2236, %v1021
        %v2238 = vsub.f32 %v2232, %v2237
        %v2239 = vmul.f32 %v2238, %v2238
        %2240 = vadd.xlane.f32.xlu0 %v2239
        %v2241 = vpop.xlane.xlu0 %2240
        %v2242 = vmul.f32 %v2241, %v1021
        %v2243 = vadd.f32 %v2242, 1e-05
        %v2244 = vrsqrt.pop %v2243
        %v2245 = vmul.f32 %v2238, %v2244
        %v2247 = vlaneseq
        %v2248 = vshrl.u32 %v2247, 7
        %v2249 = vsub.s32 0, %v2248
        %v2250 = vrot.slane %v2233, %v2249
        %v2252 = vmul.f32 %v2245, %v2250
        %v2254 = vlaneseq
        %v2255 = vshrl.u32 %v2254, 7
        %v2256 = vsub.s32 0, %v2255
        %v2257 = vrot.slane %v2234, %v2256
        %v2259 = vadd.f32 %v2252, %v2257
        %v2260 = vpack.c.bf16 %v2259, %v2259
        %v2261 = vld [vmem:[#allocation8] sm:$0xff]
        %v2262 = vld [vmem:[#allocation8 + $0x8] sm:$0xff]
        %v2263 = vld [vmem:[#allocation8 + $0x10] sm:$0xff]
        %v2264 = vld [vmem:[#allocation8 + $0x18] sm:$0xff]
        %v2265 = vld [vmem:[#allocation8 + $0x20] sm:$0xff]
        %v2266 = vld [vmem:[#allocation8 + $0x28] sm:$0xff]
        %v2267 = vld [vmem:[#allocation8 + $0x30] sm:$0xff]
        %v2268 = vld [vmem:[#allocation8 + $0x38] sm:$0xff]
        %v2269 = vld [vmem:[#allocation8 + $0x40] sm:$0xff]
        %v2270 = vld [vmem:[#allocation8 + $0x48] sm:$0xff]
        %v2271 = vld [vmem:[#allocation8 + $0x50] sm:$0xff]
        %v2272 = vld [vmem:[#allocation8 + $0x58] sm:$0xff]
        %v2273 = vld [vmem:[#allocation8 + $0x60] sm:$0xff]
        %v2274 = vld [vmem:[#allocation8 + $0x68] sm:$0xff]
        %v2275 = vld [vmem:[#allocation8 + $0x70] sm:$0xff]
        %v2276 = vld [vmem:[#allocation8 + $0x78] sm:$0xff]
        %v2277 = vld [vmem:[%s15] sm:$0x3]
        %v2279 = vlaneseq
        %v2280 = vshrl.u32 %v2279, 7
        %v2281 = vsub.s32 0, %v2280
        %v2282 = vrot.slane %v2277, %v2281
        %v2283 = vlaneseq
        %v2284 = vshrl.u32 %v2283, 7
        %v2285 = vsub.s32 1, %v2284
        %v2286 = vrot.slane %v2277, %v2285
        %v2305 = vunpack.c.l.b16 %v2261
        %v2306 = vunpack.c.h.b16 %v2261
        %v2307 = vunpack.c.l.b16 %v2262
        %v2308 = vunpack.c.h.b16 %v2262
        %v2309 = vunpack.c.l.b16 %v2263
        %v2310 = vunpack.c.h.b16 %v2263
        %v2311 = vunpack.c.l.b16 %v2264
        %v2312 = vunpack.c.h.b16 %v2264
        %v2313 = vunpack.c.l.b16 %v2265
        %v2314 = vunpack.c.h.b16 %v2265
        %v2315 = vunpack.c.l.b16 %v2266
        %v2316 = vunpack.c.h.b16 %v2266
        %v2317 = vunpack.c.l.b16 %v2267
        %v2318 = vunpack.c.h.b16 %v2267
        %v2319 = vunpack.c.l.b16 %v2268
        %v2320 = vunpack.c.h.b16 %v2268
        %v2321 = vunpack.c.l.b16 %v2269
        %v2322 = vunpack.c.h.b16 %v2269
        %v2323 = vunpack.c.l.b16 %v2270
        %v2324 = vunpack.c.h.b16 %v2270
        %v2325 = vunpack.c.l.b16 %v2271
        %v2326 = vunpack.c.h.b16 %v2271
        %v2327 = vunpack.c.l.b16 %v2272
        %v2328 = vunpack.c.h.b16 %v2272
        %v2329 = vunpack.c.l.b16 %v2273
        %v2330 = vunpack.c.h.b16 %v2273
        %v2331 = vunpack.c.l.b16 %v2274
        %v2332 = vunpack.c.h.b16 %v2274
        %v2333 = vunpack.c.l.b16 %v2275
        %v2334 = vunpack.c.h.b16 %v2275
        %v2335 = vunpack.c.l.b16 %v2276
        %v2336 = vunpack.c.h.b16 %v2276
        %v2337 = vpack.c.b16 %v2307, %v2305
        %v2338 = vpack.c.b16 %v2308, %v2306
        %v2339 = vpack.c.b16 %v2311, %v2309
        %v2340 = vpack.c.b16 %v2312, %v2310
        %v2341 = vpack.c.b16 %v2315, %v2313
        %v2342 = vpack.c.b16 %v2316, %v2314
        %v2343 = vpack.c.b16 %v2319, %v2317
        %v2344 = vpack.c.b16 %v2320, %v2318
        %v2345 = vpack.c.b16 %v2323, %v2321
        %v2346 = vpack.c.b16 %v2324, %v2322
        %v2347 = vpack.c.b16 %v2327, %v2325
        %v2348 = vpack.c.b16 %v2328, %v2326
        %v2349 = vpack.c.b16 %v2331, %v2329
        %v2350 = vpack.c.b16 %v2332, %v2330
        %v2351 = vpack.c.b16 %v2335, %v2333
        %v2352 = vpack.c.b16 %v2336, %v2334
        %2369 = vmatprep.subr.bf16.mxu0 %v2338
        %2370 = vmatpush1.bf16.msra.mxu0 %v2337
        %2371 = vmatprep.subr.bf16.mxu0 %v2340
        %2372 = vmatpush1.bf16.msra.mxu0 %v2339
        %2373 = vmatprep.subr.bf16.mxu0 %v2342
        %2374 = vmatpush1.bf16.msra.mxu0 %v2341
        %2375 = vmatprep.subr.bf16.mxu0 %v2344
        %2376 = vmatpush1.bf16.msra.mxu0 %v2343
        %2377 = vmatprep.subr.bf16.mxu0 %v2346
        %2378 = vmatpush1.bf16.msra.mxu0 %v2345
        %2379 = vmatprep.subr.bf16.mxu0 %v2348
        %2380 = vmatpush1.bf16.msra.mxu0 %v2347
        %2381 = vmatprep.subr.bf16.mxu0 %v2350
        %2382 = vmatpush1.bf16.msra.mxu0 %v2349
        %2383 = vmatprep.subr.bf16.mxu0 %v2352
        %2384 = vmatpush1.bf16.msra.mxu0 %v2351
        %2385 = vmatprep.subr.bf16.mxu0 0
        %2386 = vmatpush1.bf16.msra.mxu0 0
        %2387 = vmatprep.subr.bf16.mxu0 0
        %2388 = vmatpush1.bf16.msra.mxu0 0
        %2389 = vmatprep.subr.bf16.mxu0 0
        %2390 = vmatpush1.bf16.msra.mxu0 0
        %2391 = vmatprep.subr.bf16.mxu0 0
        %2392 = vmatpush1.bf16.msra.mxu0 0
        %2393 = vmatprep.subr.bf16.mxu0 0
        %2394 = vmatpush1.bf16.msra.mxu0 0
        %2395 = vmatprep.subr.bf16.mxu0 0
        %2396 = vmatpush1.bf16.msra.mxu0 0
        %2397 = vmatprep.subr.bf16.mxu0 0
        %2398 = vmatpush1.bf16.msra.mxu0 0
        %2399 = vmatprep.subr.bf16.mxu0 0
        %2400 = vmatpush1.bf16.msra.mxu0 0
        %2401 = vmatprep.mubr.bf16.mxu0 0
        %2402 = vmatmul.mubr.bf16.gmra.mrb[0].mxu0 %v2260
        %v2403 = vpop.f32.mrb[0].mxu0
        %v2404 = vadd.f32 %v2282, %v2403
        %v2405 = vpop.f32.mrb[0].mxu0
        %v2406 = vadd.f32 %v2286, %v2405
        %v2407 = vpop.f32.mrb[0].mxu0
        %v2408 = vpop.f32.mrb[0].mxu0
        %2409 = vdwg.mxu0
        %v2410 = vmul.f32 %v2404, 0.5
        %v2411 = vmul.f32 %v2406, 0.5
        %v2412 = vmul.f32 %v2404, 0.044715
        %v2413 = vmul.f32 %v2406, 0.044715
        %v2414 = vmul.f32 %v2412, %v2404
        %v2415 = vmul.f32 %v2413, %v2406
        %v2416 = vmul.f32 %v2414, %v2404
        %v2417 = vmul.f32 %v2415, %v2406
        %v2418 = vadd.f32 %v2404, %v2416
        %v2419 = vadd.f32 %v2406, %v2417
        %v2420 = vmul.f32 %v2418, 0.7978846
        %v2421 = vmul.f32 %v2419, 0.7978846
        %v2422 = vtanh.pop %v2420
        %v2423 = vtanh.pop %v2421
        %v2424 = vadd.f32 %v2422, 1.0
        %v2425 = vadd.f32 %v2423, 1.0
        %v2426 = vmul.f32 %v2410, %v2424
        %v2427 = vmul.f32 %v2411, %v2425
        %v2428 = vpack.c.bf16 %v2426, %v2426
        %v2429 = vpack.c.bf16 %v2427, %v2427
        %v2430 = vld [vmem:[#allocation10] sm:$0xf]
        %v2431 = vld [vmem:[#allocation10 + $0x4] sm:$0xf]
        %v2432 = vld [vmem:[#allocation10 + $0x8] sm:$0xf]
        %v2433 = vld [vmem:[#allocation10 + $0xc] sm:$0xf]
        %v2434 = vld [vmem:[#allocation10 + $0x10] sm:$0xf]
        %v2435 = vld [vmem:[#allocation10 + $0x14] sm:$0xf]
        %v2436 = vld [vmem:[#allocation10 + $0x18] sm:$0xf]
        %v2437 = vld [vmem:[#allocation10 + $0x1c] sm:$0xf]
        %v2438 = vld [vmem:[#allocation10 + $0x20] sm:$0xf]
        %v2439 = vld [vmem:[#allocation10 + $0x24] sm:$0xf]
        %v2440 = vld [vmem:[#allocation10 + $0x28] sm:$0xf]
        %v2441 = vld [vmem:[#allocation10 + $0x2c] sm:$0xf]
        %v2442 = vld [vmem:[#allocation10 + $0x30] sm:$0xf]
        %v2443 = vld [vmem:[#allocation10 + $0x34] sm:$0xf]
        %v2444 = vld [vmem:[#allocation10 + $0x38] sm:$0xf]
        %v2445 = vld [vmem:[#allocation10 + $0x3c] sm:$0xf]
        %v2446 = vld [vmem:[#allocation10 + $0x40] sm:$0xf]
        %v2447 = vld [vmem:[#allocation10 + $0x44] sm:$0xf]
        %v2448 = vld [vmem:[#allocation10 + $0x48] sm:$0xf]
        %v2449 = vld [vmem:[#allocation10 + $0x4c] sm:$0xf]
        %v2450 = vld [vmem:[#allocation10 + $0x50] sm:$0xf]
        %v2451 = vld [vmem:[#allocation10 + $0x54] sm:$0xf]
        %v2452 = vld [vmem:[#allocation10 + $0x58] sm:$0xf]
        %v2453 = vld [vmem:[#allocation10 + $0x5c] sm:$0xf]
        %v2454 = vld [vmem:[#allocation10 + $0x60] sm:$0xf]
        %v2455 = vld [vmem:[#allocation10 + $0x64] sm:$0xf]
        %v2456 = vld [vmem:[#allocation10 + $0x68] sm:$0xf]
        %v2457 = vld [vmem:[#allocation10 + $0x6c] sm:$0xf]
        %v2458 = vld [vmem:[#allocation10 + $0x70] sm:$0xf]
        %v2459 = vld [vmem:[#allocation10 + $0x74] sm:$0xf]
        %v2460 = vld [vmem:[#allocation10 + $0x78] sm:$0xf]
        %v2461 = vld [vmem:[#allocation10 + $0x7c] sm:$0xf]
        %v2462 = vld [vmem:[%s17] sm:$0x1]
        %v2464 = vlaneseq
        %v2465 = vshrl.u32 %v2464, 7
        %v2466 = vsub.s32 0, %v2465
        %v2467 = vrot.slane %v2462, %v2466
        %v2501 = vunpack.c.l.b16 %v2430
        %v2502 = vunpack.c.l.b16 %v2431
        %v2503 = vunpack.c.l.b16 %v2432
        %v2504 = vunpack.c.l.b16 %v2433
        %v2505 = vunpack.c.l.b16 %v2434
        %v2506 = vunpack.c.l.b16 %v2435
        %v2507 = vunpack.c.l.b16 %v2436
        %v2508 = vunpack.c.l.b16 %v2437
        %v2509 = vunpack.c.l.b16 %v2438
        %v2510 = vunpack.c.l.b16 %v2439
        %v2511 = vunpack.c.l.b16 %v2440
        %v2512 = vunpack.c.l.b16 %v2441
        %v2513 = vunpack.c.l.b16 %v2442
        %v2514 = vunpack.c.l.b16 %v2443
        %v2515 = vunpack.c.l.b16 %v2444
        %v2516 = vunpack.c.l.b16 %v2445
        %v2517 = vunpack.c.l.b16 %v2446
        %v2518 = vunpack.c.l.b16 %v2447
        %v2519 = vunpack.c.l.b16 %v2448
        %v2520 = vunpack.c.l.b16 %v2449
        %v2521 = vunpack.c.l.b16 %v2450
        %v2522 = vunpack.c.l.b16 %v2451
        %v2523 = vunpack.c.l.b16 %v2452
        %v2524 = vunpack.c.l.b16 %v2453
        %v2525 = vunpack.c.l.b16 %v2454
        %v2526 = vunpack.c.l.b16 %v2455
        %v2527 = vunpack.c.l.b16 %v2456
        %v2528 = vunpack.c.l.b16 %v2457
        %v2529 = vunpack.c.l.b16 %v2458
        %v2530 = vunpack.c.l.b16 %v2459
        %v2531 = vunpack.c.l.b16 %v2460
        %v2532 = vunpack.c.l.b16 %v2461
        %v2533 = vpack.c.b16 %v2502, %v2501
        %v2534 = vpack.c.b16 %v2504, %v2503
        %v2535 = vpack.c.b16 %v2506, %v2505
        %v2536 = vpack.c.b16 %v2508, %v2507
        %v2537 = vpack.c.b16 %v2510, %v2509
        %v2538 = vpack.c.b16 %v2512, %v2511
        %v2539 = vpack.c.b16 %v2514, %v2513
        %v2540 = vpack.c.b16 %v2516, %v2515
        %v2541 = vpack.c.b16 %v2518, %v2517
        %v2542 = vpack.c.b16 %v2520, %v2519
        %v2543 = vpack.c.b16 %v2522, %v2521
        %v2544 = vpack.c.b16 %v2524, %v2523
        %v2545 = vpack.c.b16 %v2526, %v2525
        %v2546 = vpack.c.b16 %v2528, %v2527
        %v2547 = vpack.c.b16 %v2530, %v2529
        %v2548 = vpack.c.b16 %v2532, %v2531
        %2565 = vmatprep.subr.bf16.mxu0 0
        %2566 = vmatpush1.bf16.msra.mxu0 %v2533
        %2567 = vmatprep.subr.bf16.mxu0 0
        %2568 = vmatpush1.bf16.msra.mxu0 %v2534
        %2569 = vmatprep.subr.bf16.mxu0 0
        %2570 = vmatpush1.bf16.msra.mxu0 %v2535
        %2571 = vmatprep.subr.bf16.mxu0 0
        %2572 = vmatpush1.bf16.msra.mxu0 %v2536
        %2573 = vmatprep.subr.bf16.mxu0 0
        %2574 = vmatpush1.bf16.msra.mxu0 %v2537
        %2575 = vmatprep.subr.bf16.mxu0 0
        %2576 = vmatpush1.bf16.msra.mxu0 %v2538
        %2577 = vmatprep.subr.bf16.mxu0 0
        %2578 = vmatpush1.bf16.msra.mxu0 %v2539
        %2579 = vmatprep.subr.bf16.mxu0 0
        %2580 = vmatpush1.bf16.msra.mxu0 %v2540
        %2581 = vmatprep.subr.bf16.mxu0 0
        %2582 = vmatpush1.bf16.msra.mxu0 %v2541
        %2583 = vmatprep.subr.bf16.mxu0 0
        %2584 = vmatpush1.bf16.msra.mxu0 %v2542
        %2585 = vmatprep.subr.bf16.mxu0 0
        %2586 = vmatpush1.bf16.msra.mxu0 %v2543
        %2587 = vmatprep.subr.bf16.mxu0 0
        %2588 = vmatpush1.bf16.msra.mxu0 %v2544
        %2589 = vmatprep.subr.bf16.mxu0 0
        %2590 = vmatpush1.bf16.msra.mxu0 %v2545
        %2591 = vmatprep.subr.bf16.mxu0 0
        %2592 = vmatpush1.bf16.msra.mxu0 %v2546
        %2593 = vmatprep.subr.bf16.mxu0 0
        %2594 = vmatpush1.bf16.msra.mxu0 %v2547
        %2595 = vmatprep.subr.bf16.mxu0 0
        %2596 = vmatpush1.bf16.msra.mxu0 %v2548
        %2597 = vmatprep.mubr.bf16.mxu0 %v2429
        %2598 = vmatmul.mubr.bf16.gmra.mrb[0].mxu0 %v2428
        %v2599 = vpop.f32.mrb[0].mxu0
        %v2600 = vadd.f32 %v2467, %v2599
        %v2601 = vpop.f32.mrb[0].mxu0
        %v2602 = vpop.f32.mrb[0].mxu0
        %v2603 = vpop.f32.mrb[0].mxu0
        %2604 = vdwg.mxu0
        %v2605 = vadd.f32 %v2259, %v2600
        %v2606 = vld [vmem:[%s18] sm:$0x1]
        %v2607 = vld [vmem:[%s19] sm:$0x1]
        %2608 = vadd.xlane.f32.xlu0 %v2605
        %v2609 = vpop.xlane.xlu0 %2608
        %v2610 = vmul.f32 %v2609, %v1021
        %v2611 = vsub.f32 %v2605, %v2610
        %v2612 = vmul.f32 %v2611, %v2611
        %2613 = vadd.xlane.f32.xlu0 %v2612
        %v2614 = vpop.xlane.xlu0 %2613
        %v2615 = vmul.f32 %v2614, %v1021
        %v2616 = vadd.f32 %v2615, 1e-05
        %v2617 = vrsqrt.pop %v2616
        %v2618 = vmul.f32 %v2611, %v2617
        %v2620 = vlaneseq
        %v2621 = vshrl.u32 %v2620, 7
        %v2622 = vsub.s32 0, %v2621
        %v2623 = vrot.slane %v2606, %v2622
        %v2625 = vmul.f32 %v2618, %v2623
        %v2627 = vlaneseq
        %v2628 = vshrl.u32 %v2627, 7
        %v2629 = vsub.s32 0, %v2628
        %v2630 = vrot.slane %v2607, %v2629
        %v2632 = vadd.f32 %v2625, %v2630
        %v2633 = vpack.c.bf16 %v2632, %v2632
        %s2634 = scalar_lea.vmem [#allocation7], 192
        %v2635 = vld [vmem:[%s2634] sm:$0xff]
        %v2636 = vld [vmem:[%s2634 + $0x8] sm:$0xf]
        %v2637 = vld [vmem:[%s2634 + $0xc] sm:$0xff]
        %v2638 = vld [vmem:[%s2634 + $0x14] sm:$0xf]
        %v2639 = vld [vmem:[%s2634 + $0x18] sm:$0xff]
        %v2640 = vld [vmem:[%s2634 + $0x20] sm:$0xf]
        %v2641 = vld [vmem:[%s2634 + $0x24] sm:$0xff]
        %v2642 = vld [vmem:[%s2634 + $0x2c] sm:$0xf]
        %v2643 = vld [vmem:[%s2634 + $0x30] sm:$0xff]
        %v2644 = vld [vmem:[%s2634 + $0x38] sm:$0xf]
        %v2645 = vld [vmem:[%s2634 + $0x3c] sm:$0xff]
        %v2646 = vld [vmem:[%s2634 + $0x44] sm:$0xf]
        %v2647 = vld [vmem:[%s2634 + $0x48] sm:$0xff]
        %v2648 = vld [vmem:[%s2634 + $0x50] sm:$0xf]
        %v2649 = vld [vmem:[%s2634 + $0x54] sm:$0xff]
        %v2650 = vld [vmem:[%s2634 + $0x5c] sm:$0xf]
        %v2651 = vld [vmem:[%s2634 + $0x60] sm:$0xff]
        %v2652 = vld [vmem:[%s2634 + $0x68] sm:$0xf]
        %v2653 = vld [vmem:[%s2634 + $0x6c] sm:$0xff]
        %v2654 = vld [vmem:[%s2634 + $0x74] sm:$0xf]
        %v2655 = vld [vmem:[%s2634 + $0x78] sm:$0xff]
        %v2656 = vld [vmem:[%s2634 + $0x80] sm:$0xf]
        %v2657 = vld [vmem:[%s2634 + $0x84] sm:$0xff]
        %v2658 = vld [vmem:[%s2634 + $0x8c] sm:$0xf]
        %v2659 = vld [vmem:[%s2634 + $0x90] sm:$0xff]
        %v2660 = vld [vmem:[%s2634 + $0x98] sm:$0xf]
        %v2661 = vld [vmem:[%s2634 + $0x9c] sm:$0xff]
        %v2662 = vld [vmem:[%s2634 + $0xa4] sm:$0xf]
        %v2663 = vld [vmem:[%s2634 + $0xa8] sm:$0xff]
        %v2664 = vld [vmem:[%s2634 + $0xb0] sm:$0xf]
        %v2665 = vld [vmem:[%s2634 + $0xb4] sm:$0xff]
        %v2666 = vld [vmem:[%s2634 + $0xbc] sm:$0xf]
        %s2667 = scalar_lea.vmem %s9, 3
        %v2668 = vld [vmem:[%s2667] sm:$0x7]
        %v2670 = vlaneseq
        %v2671 = vshrl.u32 %v2670, 7
        %v2672 = vsub.s32 0, %v2671
        %v2673 = vrot.slane %v2668, %v2672
        %v2674 = vlaneseq
        %v2675 = vshrl.u32 %v2674, 7
        %v2676 = vsub.s32 1, %v2675
        %v2677 = vrot.slane %v2668, %v2676
        %v2678 = vlaneseq
        %v2679 = vshrl.u32 %v2678, 7
        %v2680 = vsub.s32 2, %v2679
        %v2681 = vrot.slane %v2668, %v2680
        %v2717 = vunpack.c.l.b16 %v2635
        %v2718 = vunpack.c.h.b16 %v2635
        %v2719 = vunpack.c.l.b16 %v2636
        %v2720 = vunpack.c.l.b16 %v2637
        %v2721 = vunpack.c.h.b16 %v2637
        %v2722 = vunpack.c.l.b16 %v2638
        %v2723 = vunpack.c.l.b16 %v2639
        %v2724 = vunpack.c.h.b16 %v2639
        %v2725 = vunpack.c.l.b16 %v2640
        %v2726 = vunpack.c.l.b16 %v2641
        %v2727 = vunpack.c.h.b16 %v2641
        %v2728 = vunpack.c.l.b16 %v2642
        %v2729 = vunpack.c.l.b16 %v2643
        %v2730 = vunpack.c.h.b16 %v2643
        %v2731 = vunpack.c.l.b16 %v2644
        %v2732 = vunpack.c.l.b16 %v2645
        %v2733 = vunpack.c.h.b16 %v2645
        %v2734 = vunpack.c.l.b16 %v2646
        %v2735 = vunpack.c.l.b16 %v2647
        %v2736 = vunpack.c.h.b16 %v2647
        %v2737 = vunpack.c.l.b16 %v2648
        %v2738 = vunpack.c.l.b16 %v2649
        %v2739 = vunpack.c.h.b16 %v2649
        %v2740 = vunpack.c.l.b16 %v2650
        %v2741 = vunpack.c.l.b16 %v2651
        %v2742 = vunpack.c.h.b16 %v2651
        %v2743 = vunpack.c.l.b16 %v2652
        %v2744 = vunpack.c.l.b16 %v2653
        %v2745 = vunpack.c.h.b16 %v2653
        %v2746 = vunpack.c.l.b16 %v2654
        %v2747 = vunpack.c.l.b16 %v2655
        %v2748 = vunpack.c.h.b16 %v2655
        %v2749 = vunpack.c.l.b16 %v2656
        %v2750 = vunpack.c.l.b16 %v2657
        %v2751 = vunpack.c.h.b16 %v2657
        %v2752 = vunpack.c.l.b16 %v2658
        %v2753 = vunpack.c.l.b16 %v2659
        %v2754 = vunpack.c.h.b16 %v2659
        %v2755 = vunpack.c.l.b16 %v2660
        %v2756 = vunpack.c.l.b16 %v2661
        %v2757 = vunpack.c.h.b16 %v2661
        %v2758 = vunpack.c.l.b16 %v2662
        %v2759 = vunpack.c.l.b16 %v2663
        %v2760 = vunpack.c.h.b16 %v2663
        %v2761 = vunpack.c.l.b16 %v2664
        %v2762 = vunpack.c.l.b16 %v2665
        %v2763 = vunpack.c.h.b16 %v2665
        %v2764 = vunpack.c.l.b16 %v2666
        %v2765 = vpack.c.b16 %v2720, %v2717
        %v2766 = vpack.c.b16 %v2721, %v2718
        %v2767 = vpack.c.b16 %v2722, %v2719
        %v2768 = vpack.c.b16 %v2726, %v2723
        %v2769 = vpack.c.b16 %v2727, %v2724
        %v2770 = vpack.c.b16 %v2728, %v2725
        %v2771 = vpack.c.b16 %v2732, %v2729
        %v2772 = vpack.c.b16 %v2733, %v2730
        %v2773 = vpack.c.b16 %v2734, %v2731
        %v2774 = vpack.c.b16 %v2738, %v2735
        %v2775 = vpack.c.b16 %v2739, %v2736
        %v2776 = vpack.c.b16 %v2740, %v2737
        %v2777 = vpack.c.b16 %v2744, %v2741
        %v2778 = vpack.c.b16 %v2745, %v2742
        %v2779 = vpack.c.b16 %v2746, %v2743
        %v2780 = vpack.c.b16 %v2750, %v2747
        %v2781 = vpack.c.b16 %v2751, %v2748
        %v2782 = vpack.c.b16 %v2752, %v2749
        %v2783 = vpack.c.b16 %v2756, %v2753
        %v2784 = vpack.c.b16 %v2757, %v2754
        %v2785 = vpack.c.b16 %v2758, %v2755
        %v2786 = vpack.c.b16 %v2762, %v2759
        %v2787 = vpack.c.b16 %v2763, %v2760
        %v2788 = vpack.c.b16 %v2764, %v2761
        %2813 = vmatprep.subr.bf16.mxu0 %v2766
        %2814 = vmatpush1.bf16.msra.mxu0 %v2765
        %2815 = vmatprep.subr.bf16.mxu0 %v2769
        %2816 = vmatpush1.bf16.msra.mxu0 %v2768
        %2817 = vmatprep.subr.bf16.mxu0 %v2772
        %2818 = vmatpush1.bf16.msra.mxu0 %v2771
        %2819 = vmatprep.subr.bf16.mxu0 %v2775
        %2820 = vmatpush1.bf16.msra.mxu0 %v2774
        %2821 = vmatprep.subr.bf16.mxu0 %v2778
        %2822 = vmatpush1.bf16.msra.mxu0 %v2777
        %2823 = vmatprep.subr.bf16.mxu0 %v2781
        %2824 = vmatpush1.bf16.msra.mxu0 %v2780
        %2825 = vmatprep.subr.bf16.mxu0 %v2784
        %2826 = vmatpush1.bf16.msra.mxu0 %v2783
        %2827 = vmatprep.subr.bf16.mxu0 %v2787
        %2828 = vmatpush1.bf16.msra.mxu0 %v2786
        %2829 = vmatprep.subr.bf16.mxu0 0
        %2830 = vmatpush1.bf16.msra.mxu0 0
        %2831 = vmatprep.subr.bf16.mxu0 0
        %2832 = vmatpush1.bf16.msra.mxu0 0
        %2833 = vmatprep.subr.bf16.mxu0 0
        %2834 = vmatpush1.bf16.msra.mxu0 0
        %2835 = vmatprep.subr.bf16.mxu0 0
        %2836 = vmatpush1.bf16.msra.mxu0 0
        %2837 = vmatprep.subr.bf16.mxu0 0
        %2838 = vmatpush1.bf16.msra.mxu0 0
        %2839 = vmatprep.subr.bf16.mxu0 0
        %2840 = vmatpush1.bf16.msra.mxu0 0
        %2841 = vmatprep.subr.bf16.mxu0 0
        %2842 = vmatpush1.bf16.msra.mxu0 0
        %2843 = vmatprep.subr.bf16.mxu0 0
        %2844 = vmatpush1.bf16.msra.mxu0 0
        %2845 = vmatprep.mubr.bf16.mxu0 0
        %2846 = vmatmul.mubr.bf16.gmra.mrb[0].mxu0 %v2633
        %v2847 = vpop.f32.mrb[0].mxu0
        %v2848 = vadd.f32 %v2673, %v2847
        %v2849 = vpop.f32.mrb[0].mxu0
        %v2850 = vadd.f32 %v2677, %v2849
        %v2851 = vpop.f32.mrb[0].mxu0
        %v2852 = vpop.f32.mrb[0].mxu0
        %2853 = vdwg.mxu0
        %2854 = vmatprep.subr.bf16.mxu0 0
        %2855 = vmatpush1.bf16.msra.mxu0 %v2767
        %2856 = vmatprep.subr.bf16.mxu0 0
        %2857 = vmatpush1.bf16.msra.mxu0 %v2770
        %2858 = vmatprep.subr.bf16.mxu0 0
        %2859 = vmatpush1.bf16.msra.mxu0 %v2773
        %2860 = vmatprep.subr.bf16.mxu0 0
        %2861 = vmatpush1.bf16.msra.mxu0 %v2776
        %2862 = vmatprep.subr.bf16.mxu0 0
        %2863 = vmatpush1.bf16.msra.mxu0 %v2779
        %2864 = vmatprep.subr.bf16.mxu0 0
        %2865 = vmatpush1.bf16.msra.mxu0 %v2782
        %2866 = vmatprep.subr.bf16.mxu0 0
        %2867 = vmatpush1.bf16.msra.mxu0 %v2785
        %2868 = vmatprep.subr.bf16.mxu0 0
        %2869 = vmatpush1.bf16.msra.mxu0 %v2788
        %2870 = vmatprep.subr.bf16.mxu0 0
        %2871 = vmatpush1.bf16.msra.mxu0 0
        %2872 = vmatprep.subr.bf16.mxu0 0
        %2873 = vmatpush1.bf16.msra.mxu0 0
        %2874 = vmatprep.subr.bf16.mxu0 0
        %2875 = vmatpush1.bf16.msra.mxu0 0
        %2876 = vmatprep.subr.bf16.mxu0 0
        %2877 = vmatpush1.bf16.msra.mxu0 0
        %2878 = vmatprep.subr.bf16.mxu0 0
        %2879 = vmatpush1.bf16.msra.mxu0 0
        %2880 = vmatprep.subr.bf16.mxu0 0
        %2881 = vmatpush1.bf16.msra.mxu0 0
        %2882 = vmatprep.subr.bf16.mxu0 0
        %2883 = vmatpush1.bf16.msra.mxu0 0
        %2884 = vmatprep.subr.bf16.mxu0 0
        %2885 = vmatpush1.bf16.msra.mxu0 0
        %2886 = vmatprep.mubr.bf16.mxu0 0
        %2887 = vmatmul.mubr.bf16.gmra.mrb[0].mxu0 %v2633
        %v2888 = vpop.f32.mrb[0].mxu0
        %v2889 = vadd.f32 %v2681, %v2888
        %v2890 = vpop.f32.mrb[0].mxu0
        %v2891 = vpop.f32.mrb[0].mxu0
        %v2892 = vpop.f32.mrb[0].mxu0
        %2893 = vdwg.mxu0
        %v2895 = vsel %vm1307, %v2848, 0
        %v2898 = vsel %vm1307, %v2850, 0
        %2900 = vmatprep.subr.mxu0 0.0
        %2901 = vmatpush1.xpose.msra.mxu0 %v2898
        %2902 = vmatprep.subr.mxu0 0.0
        %2903 = vmatpush1.xpose.msra.mxu0 0.0
        %2904 = vmatprep.subr.mxu0 0.0
        %2905 = vmatpush1.xpose.msra.mxu0 0.0
        %2906 = vmatprep.subr.mxu0 0.0
        %2907 = vmatpush1.xpose.msra.mxu0 0.0
        %2908 = vmatprep.subr.mxu0 0.0
        %2909 = vmatpush1.xpose.msra.mxu0 0.0
        %2910 = vmatprep.subr.mxu0 0.0
        %2911 = vmatpush1.xpose.msra.mxu0 0.0
        %2912 = vmatprep.subr.mxu0 0.0
        %2913 = vmatpush1.xpose.msra.mxu0 0.0
        %2914 = vmatprep.subr.mxu0 0.0
        %2915 = vmatpush1.xpose.msra.mxu0 0.0
        %2916 = vmatprep.subr.mxu0 0.0
        %2917 = vmatpush1.xpose.msra.mxu0 0.0
        %2918 = vmatprep.subr.mxu0 0.0
        %2919 = vmatpush1.xpose.msra.mxu0 0.0
        %2920 = vmatprep.subr.mxu0 0.0
        %2921 = vmatpush1.xpose.msra.mxu0 0.0
        %2922 = vmatprep.subr.mxu0 0.0
        %2923 = vmatpush1.xpose.msra.mxu0 0.0
        %2924 = vmatprep.subr.mxu0 0.0
        %2925 = vmatpush1.xpose.msra.mxu0 0.0
        %2926 = vmatprep.subr.mxu0 0.0
        %2927 = vmatpush1.xpose.msra.mxu0 0.0
        %2928 = vmatprep.subr.mxu0 0.0
        %2929 = vmatpush1.xpose.msra.mxu0 0.0
        %2930 = vmatprep.subr.mxu0 0.0
        %2931 = vmatpush1.xpose.msra.mxu0 0.0
        %2932 = vmatprep.subr.mxu0 0.0
        %2933 = vmatpush1.xpose.msra.mxu0 0.0
        %2934 = vmatprep.subr.mxu0 0.0
        %2935 = vmatpush1.xpose.msra.mxu0 0.0
        %2936 = vmatprep.subr.mxu0 0.0
        %2937 = vmatpush1.xpose.msra.mxu0 0.0
        %2938 = vmatprep.subr.mxu0 0.0
        %2939 = vmatpush1.xpose.msra.mxu0 0.0
        %2940 = vmatprep.subr.mxu0 0.0
        %2941 = vmatpush1.xpose.msra.mxu0 0.0
        %2942 = vmatprep.subr.mxu0 0.0
        %2943 = vmatpush1.xpose.msra.mxu0 0.0
        %2944 = vmatprep.subr.mxu0 0.0
        %2945 = vmatpush1.xpose.msra.mxu0 0.0
        %2946 = vmatprep.subr.mxu0 0.0
        %2947 = vmatpush1.xpose.msra.mxu0 0.0
        %2948 = vmatprep.subr.mxu0 0.0
        %2949 = vmatpush1.xpose.msra.mxu0 0.0
        %2950 = vmatprep.subr.mxu0 0.0
        %2951 = vmatpush1.xpose.msra.mxu0 0.0
        %2952 = vmatprep.subr.mxu0 0.0
        %2953 = vmatpush1.xpose.msra.mxu0 0.0
        %2954 = vmatprep.subr.mxu0 0.0
        %2955 = vmatpush1.xpose.msra.mxu0 0.0
        %2956 = vmatprep.subr.mxu0 0.0
        %2957 = vmatpush1.xpose.msra.mxu0 0.0
        %2958 = vmatprep.subr.mxu0 0.0
        %2959 = vmatpush1.xpose.msra.mxu0 0.0
        %2960 = vmatprep.subr.mxu0 0.0
        %2961 = vmatpush1.xpose.msra.mxu0 0.0
        %2962 = vmatprep.subr.mxu0 0.0
        %2963 = vmatpush1.xpose.msra.mxu0 0.0
        %2964 = vmatprep.mubr.f32.mxu0 0.0
        %2965 = vmatmul.mubr.f32.gmra.mrb[0].mxu0 %v2895
        %v2966 = vpop.f32.mrb[0].mxu0
        %v2967 = vadd.f32 0.0, %v2966
        %v2968 = vpop.f32.mrb[0].mxu0
        %2969 = vdwg.mxu0
        %v2970 = vmul.f32 %v2967, 0.17677669
        %v2971 = vadd.f32 %v2970, %v1389
        %v2972 = vsel %vm1392, %v2971, -inf
        %2973 = vmax.xlane.f32.xlu0 %v2972
        %v2974 = vpop.xlane.xlu0 %2973
        %v2975 = vsub.f32 %v2971, %v2974
        %v2976 = vmul.f32 %v2975, 1.442695
        %v2977 = vpow.pop %v2976
        %v2978 = vsel %vm1392, %v2977, 0.0
        %2979 = vadd.xlane.f32.xlu0 %v2978
        %v2980 = vpop.xlane.xlu0 %2979
        %v2981 = vrcp.pop %v2980
        %v2982 = vmul.f32 %v2977, %v2981
        %v2984 = vsel %vm1392, %v2982, 0
        %2986 = vmatprep.subr.mxu0 0.0
        %2987 = vmatpush1.msra.mxu0 %v2889
        %2988 = vmatprep.subr.mxu0 0.0
        %2989 = vmatpush1.msra.mxu0 0.0
        %2990 = vmatprep.subr.mxu0 0.0
        %2991 = vmatpush1.msra.mxu0 0.0
        %2992 = vmatprep.subr.mxu0 0.0
        %2993 = vmatpush1.msra.mxu0 0.0
        %2994 = vmatprep.subr.mxu0 0.0
        %2995 = vmatpush1.msra.mxu0 0.0
        %2996 = vmatprep.subr.mxu0 0.0
        %2997 = vmatpush1.msra.mxu0 0.0
        %2998 = vmatprep.subr.mxu0 0.0
        %2999 = vmatpush1.msra.mxu0 0.0
        %3000 = vmatprep.subr.mxu0 0.0
        %3001 = vmatpush1.msra.mxu0 0.0
        %3002 = vmatprep.subr.mxu0 0.0
        %3003 = vmatpush1.msra.mxu0 0.0
        %3004 = vmatprep.subr.mxu0 0.0
        %3005 = vmatpush1.msra.mxu0 0.0
        %3006 = vmatprep.subr.mxu0 0.0
        %3007 = vmatpush1.msra.mxu0 0.0
        %3008 = vmatprep.subr.mxu0 0.0
        %3009 = vmatpush1.msra.mxu0 0.0
        %3010 = vmatprep.subr.mxu0 0.0
        %3011 = vmatpush1.msra.mxu0 0.0
        %3012 = vmatprep.subr.mxu0 0.0
        %3013 = vmatpush1.msra.mxu0 0.0
        %3014 = vmatprep.subr.mxu0 0.0
        %3015 = vmatpush1.msra.mxu0 0.0
        %3016 = vmatprep.subr.mxu0 0.0
        %3017 = vmatpush1.msra.mxu0 0.0
        %3018 = vmatprep.subr.mxu0 0.0
        %3019 = vmatpush1.msra.mxu0 0.0
        %3020 = vmatprep.subr.mxu0 0.0
        %3021 = vmatpush1.msra.mxu0 0.0
        %3022 = vmatprep.subr.mxu0 0.0
        %3023 = vmatpush1.msra.mxu0 0.0
        %3024 = vmatprep.subr.mxu0 0.0
        %3025 = vmatpush1.msra.mxu0 0.0
        %3026 = vmatprep.subr.mxu0 0.0
        %3027 = vmatpush1.msra.mxu0 0.0
        %3028 = vmatprep.subr.mxu0 0.0
        %3029 = vmatpush1.msra.mxu0 0.0
        %3030 = vmatprep.subr.mxu0 0.0
        %3031 = vmatpush1.msra.mxu0 0.0
        %3032 = vmatprep.subr.mxu0 0.0
        %3033 = vmatpush1.msra.mxu0 0.0
        %3034 = vmatprep.subr.mxu0 0.0
        %3035 = vmatpush1.msra.mxu0 0.0
        %3036 = vmatprep.subr.mxu0 0.0
        %3037 = vmatpush1.msra.mxu0 0.0
        %3038 = vmatprep.subr.mxu0 0.0
        %3039 = vmatpush1.msra.mxu0 0.0
        %3040 = vmatprep.subr.mxu0 0.0
        %3041 = vmatpush1.msra.mxu0 0.0
        %3042 = vmatprep.subr.mxu0 0.0
        %3043 = vmatpush1.msra.mxu0 0.0
        %3044 = vmatprep.subr.mxu0 0.0
        %3045 = vmatpush1.msra.mxu0 0.0
        %3046 = vmatprep.subr.mxu0 0.0
        %3047 = vmatpush1.msra.mxu0 0.0
        %3048 = vmatprep.subr.mxu0 0.0
        %3049 = vmatpush1.msra.mxu0 0.0
        %3050 = vmatprep.mubr.f32.mxu0 0.0
        %3051 = vmatmul.mubr.f32.gmra.mrb[0].mxu0 %v2984
        %v3052 = vpop.f32.mrb[0].mxu0
        %v3053 = vadd.f32 0.0, %v3052
        %v3054 = vpop.f32.mrb[0].mxu0
        %3055 = vdwg.mxu0
        %v3056 = vpack.c.bf16 %v3053, %v3053
        %s3057 = scalar_lea.vmem %s10, 64
        %v3058 = vld [vmem:[%s3057] sm:$0xf]
        %v3059 = vld [vmem:[%s3057 + $0x4] sm:$0xf]
        %v3060 = vld [vmem:[%s3057 + $0x8] sm:$0xf]
        %v3061 = vld [vmem:[%s3057 + $0xc] sm:$0xf]
        %3062 = vrot.lane.b32.xlu0 %v2848, 96
        %v3063 = vpop.permute.xlu0 %3062
        %3064 = vrot.lane.b32.xlu0 %v2850, 96
        %v3065 = vpop.permute.xlu0 %3064
        %v3066 = vsel %vm1307, %v3063, 0
        %v3068 = vsel %vm1307, %v3065, 0
        %3070 = vmatprep.subr.mxu0 0.0
        %3071 = vmatpush1.xpose.msra.mxu0 %v3068
        %3072 = vmatprep.subr.mxu0 0.0
        %3073 = vmatpush1.xpose.msra.mxu0 0.0
        %3074 = vmatprep.subr.mxu0 0.0
        %3075 = vmatpush1.xpose.msra.mxu0 0.0
        %3076 = vmatprep.subr.mxu0 0.0
        %3077 = vmatpush1.xpose.msra.mxu0 0.0
        %3078 = vmatprep.subr.mxu0 0.0
        %3079 = vmatpush1.xpose.msra.mxu0 0.0
        %3080 = vmatprep.subr.mxu0 0.0
        %3081 = vmatpush1.xpose.msra.mxu0 0.0
        %3082 = vmatprep.subr.mxu0 0.0
        %3083 = vmatpush1.xpose.msra.mxu0 0.0
        %3084 = vmatprep.subr.mxu0 0.0
        %3085 = vmatpush1.xpose.msra.mxu0 0.0
        %3086 = vmatprep.subr.mxu0 0.0
        %3087 = vmatpush1.xpose.msra.mxu0 0.0
        %3088 = vmatprep.subr.mxu0 0.0
        %3089 = vmatpush1.xpose.msra.mxu0 0.0
        %3090 = vmatprep.subr.mxu0 0.0
        %3091 = vmatpush1.xpose.msra.mxu0 0.0
        %3092 = vmatprep.subr.mxu0 0.0
        %3093 = vmatpush1.xpose.msra.mxu0 0.0
        %3094 = vmatprep.subr.mxu0 0.0
        %3095 = vmatpush1.xpose.msra.mxu0 0.0
        %3096 = vmatprep.subr.mxu0 0.0
        %3097 = vmatpush1.xpose.msra.mxu0 0.0
        %3098 = vmatprep.subr.mxu0 0.0
        %3099 = vmatpush1.xpose.msra.mxu0 0.0
        %3100 = vmatprep.subr.mxu0 0.0
        %3101 = vmatpush1.xpose.msra.mxu0 0.0
        %3102 = vmatprep.subr.mxu0 0.0
        %3103 = vmatpush1.xpose.msra.mxu0 0.0
        %3104 = vmatprep.subr.mxu0 0.0
        %3105 = vmatpush1.xpose.msra.mxu0 0.0
        %3106 = vmatprep.subr.mxu0 0.0
        %3107 = vmatpush1.xpose.msra.mxu0 0.0
        %3108 = vmatprep.subr.mxu0 0.0
        %3109 = vmatpush1.xpose.msra.mxu0 0.0
        %3110 = vmatprep.subr.mxu0 0.0
        %3111 = vmatpush1.xpose.msra.mxu0 0.0
        %3112 = vmatprep.subr.mxu0 0.0
        %3113 = vmatpush1.xpose.msra.mxu0 0.0
        %3114 = vmatprep.subr.mxu0 0.0
        %3115 = vmatpush1.xpose.msra.mxu0 0.0
        %3116 = vmatprep.subr.mxu0 0.0
        %3117 = vmatpush1.xpose.msra.mxu0 0.0
        %3118 = vmatprep.subr.mxu0 0.0
        %3119 = vmatpush1.xpose.msra.mxu0 0.0
        %3120 = vmatprep.subr.mxu0 0.0
        %3121 = vmatpush1.xpose.msra.mxu0 0.0
        %3122 = vmatprep.subr.mxu0 0.0
        %3123 = vmatpush1.xpose.msra.mxu0 0.0
        %3124 = vmatprep.subr.mxu0 0.0
        %3125 = vmatpush1.xpose.msra.mxu0 0.0
        %3126 = vmatprep.subr.mxu0 0.0
        %3127 = vmatpush1.xpose.msra.mxu0 0.0
        %3128 = vmatprep.subr.mxu0 0.0
        %3129 = vmatpush1.xpose.msra.mxu0 0.0
        %3130 = vmatprep.subr.mxu0 0.0
        %3131 = vmatpush1.xpose.msra.mxu0 0.0
        %3132 = vmatprep.subr.mxu0 0.0
        %3133 = vmatpush1.xpose.msra.mxu0 0.0
        %3134 = vmatprep.mubr.f32.mxu0 0.0
        %3135 = vmatmul.mubr.f32.gmra.mrb[0].mxu0 %v3066
        %v3136 = vpop.f32.mrb[0].mxu0
        %v3137 = vadd.f32 0.0, %v3136
        %v3138 = vpop.f32.mrb[0].mxu0
        %3139 = vdwg.mxu0
        %v3140 = vmul.f32 %v3137, 0.17677669
        %v3141 = vadd.f32 %v3140, %v1389
        %v3142 = vsel %vm1392, %v3141, -inf
        %3143 = vmax.xlane.f32.xlu0 %v3142
        %v3144 = vpop.xlane.xlu0 %3143
        %v3145 = vsub.f32 %v3141, %v3144
        %v3146 = vmul.f32 %v3145, 1.442695
        %v3147 = vpow.pop %v3146
        %v3148 = vsel %vm1392, %v3147, 0.0
        %3149 = vadd.xlane.f32.xlu0 %v3148
        %v3150 = vpop.xlane.xlu0 %3149
        %v3151 = vrcp.pop %v3150
        %v3152 = vmul.f32 %v3147, %v3151
        %3154 = vrot.lane.b32.xlu0 %v2889, 96
        %v3155 = vpop.permute.xlu0 %3154
        %v3158 = vsel %vm1392, %v3152, 0
        %3160 = vmatprep.subr.mxu0 0.0
        %3161 = vmatpush1.msra.mxu0 %v3155
        %3162 = vmatprep.subr.mxu0 0.0
        %3163 = vmatpush1.msra.mxu0 0.0
        %3164 = vmatprep.subr.mxu0 0.0
        %3165 = vmatpush1.msra.mxu0 0.0
        %3166 = vmatprep.subr.mxu0 0.0
        %3167 = vmatpush1.msra.mxu0 0.0
        %3168 = vmatprep.subr.mxu0 0.0
        %3169 = vmatpush1.msra.mxu0 0.0
        %3170 = vmatprep.subr.mxu0 0.0
        %3171 = vmatpush1.msra.mxu0 0.0
        %3172 = vmatprep.subr.mxu0 0.0
        %3173 = vmatpush1.msra.mxu0 0.0
        %3174 = vmatprep.subr.mxu0 0.0
        %3175 = vmatpush1.msra.mxu0 0.0
        %3176 = vmatprep.subr.mxu0 0.0
        %3177 = vmatpush1.msra.mxu0 0.0
        %3178 = vmatprep.subr.mxu0 0.0
        %3179 = vmatpush1.msra.mxu0 0.0
        %3180 = vmatprep.subr.mxu0 0.0
        %3181 = vmatpush1.msra.mxu0 0.0
        %3182 = vmatprep.subr.mxu0 0.0
        %3183 = vmatpush1.msra.mxu0 0.0
        %3184 = vmatprep.subr.mxu0 0.0
        %3185 = vmatpush1.msra.mxu0 0.0
        %3186 = vmatprep.subr.mxu0 0.0
        %3187 = vmatpush1.msra.mxu0 0.0
        %3188 = vmatprep.subr.mxu0 0.0
        %3189 = vmatpush1.msra.mxu0 0.0
        %3190 = vmatprep.subr.mxu0 0.0
        %3191 = vmatpush1.msra.mxu0 0.0
        %3192 = vmatprep.subr.mxu0 0.0
        %3193 = vmatpush1.msra.mxu0 0.0
        %3194 = vmatprep.subr.mxu0 0.0
        %3195 = vmatpush1.msra.mxu0 0.0
        %3196 = vmatprep.subr.mxu0 0.0
        %3197 = vmatpush1.msra.mxu0 0.0
        %3198 = vmatprep.subr.mxu0 0.0
        %3199 = vmatpush1.msra.mxu0 0.0
        %3200 = vmatprep.subr.mxu0 0.0
        %3201 = vmatpush1.msra.mxu0 0.0
        %3202 = vmatprep.subr.mxu0 0.0
        %3203 = vmatpush1.msra.mxu0 0.0
        %3204 = vmatprep.subr.mxu0 0.0
        %3205 = vmatpush1.msra.mxu0 0.0
        %3206 = vmatprep.subr.mxu0 0.0
        %3207 = vmatpush1.msra.mxu0 0.0
        %3208 = vmatprep.subr.mxu0 0.0
        %3209 = vmatpush1.msra.mxu0 0.0
        %3210 = vmatprep.subr.mxu0 0.0
        %3211 = vmatpush1.msra.mxu0 0.0
        %3212 = vmatprep.subr.mxu0 0.0
        %3213 = vmatpush1.msra.mxu0 0.0
        %3214 = vmatprep.subr.mxu0 0.0
        %3215 = vmatpush1.msra.mxu0 0.0
        %3216 = vmatprep.subr.mxu0 0.0
        %3217 = vmatpush1.msra.mxu0 0.0
        %3218 = vmatprep.subr.mxu0 0.0
        %3219 = vmatpush1.msra.mxu0 0.0
        %3220 = vmatprep.subr.mxu0 0.0
        %3221 = vmatpush1.msra.mxu0 0.0
        %3222 = vmatprep.subr.mxu0 0.0
        %3223 = vmatpush1.msra.mxu0 0.0
        %3224 = vmatprep.mubr.f32.mxu0 0.0
        %3225 = vmatmul.mubr.f32.gmra.mrb[0].mxu0 %v3158
        %v3226 = vpop.f32.mrb[0].mxu0
        %v3227 = vadd.f32 0.0, %v3226
        %v3228 = vpop.f32.mrb[0].mxu0
        %3229 = vdwg.mxu0
        %v3230 = vpack.c.bf16 %v3227, %v3227
        %s3231 = scalar_lea.vmem %s10, 80
        %v3232 = vld [vmem:[%s3231] sm:$0xf]
        %v3233 = vld [vmem:[%s3231 + $0x4] sm:$0xf]
        %v3234 = vld [vmem:[%s3231 + $0x8] sm:$0xf]
        %v3235 = vld [vmem:[%s3231 + $0xc] sm:$0xf]
        %v3240 = vunpack.c.l.b16 %v3232
        %v3241 = vunpack.c.l.b16 %v3233
        %v3242 = vunpack.c.l.b16 %v3234
        %v3243 = vunpack.c.l.b16 %v3235
        %v3244 = vpack.c.b16 %v3241, %v3240
        %v3245 = vpack.c.b16 %v3243, %v3242
        %v3249 = vsel %vm1307, %v3230, 0
        %3251 = vmatprep.subr.bf16.mxu0 0
        %3252 = vmatpush1.bf16.msra.mxu0 %v3244
        %3253 = vmatprep.subr.bf16.mxu0 0
        %3254 = vmatpush1.bf16.msra.mxu0 %v3245
        %3255 = vmatprep.subr.bf16.mxu0 0
        %3256 = vmatpush1.bf16.msra.mxu0 0
        %3257 = vmatprep.subr.bf16.mxu0 0
        %3258 = vmatpush1.bf16.msra.mxu0 0
        %3259 = vmatprep.subr.bf16.mxu0 0
        %3260 = vmatpush1.bf16.msra.mxu0 0
        %3261 = vmatprep.subr.bf16.mxu0 0
        %3262 = vmatpush1.bf16.msra.mxu0 0
        %3263 = vmatprep.subr.bf16.mxu0 0
        %3264 = vmatpush1.bf16.msra.mxu0 0
        %3265 = vmatprep.subr.bf16.mxu0 0
        %3266 = vmatpush1.bf16.msra.mxu0 0
        %3267 = vmatprep.subr.bf16.mxu0 0
        %3268 = vmatpush1.bf16.msra.mxu0 0
        %3269 = vmatprep.subr.bf16.mxu0 0
        %3270 = vmatpush1.bf16.msra.mxu0 0
        %3271 = vmatprep.subr.bf16.mxu0 0
        %3272 = vmatpush1.bf16.msra.mxu0 0
        %3273 = vmatprep.subr.bf16.mxu0 0
        %3274 = vmatpush1.bf16.msra.mxu0 0
        %3275 = vmatprep.subr.bf16.mxu0 0
        %3276 = vmatpush1.bf16.msra.mxu0 0
        %3277 = vmatprep.subr.bf16.mxu0 0
        %3278 = vmatpush1.bf16.msra.mxu0 0
        %3279 = vmatprep.subr.bf16.mxu0 0
        %3280 = vmatpush1.bf16.msra.mxu0 0
        %3281 = vmatprep.subr.bf16.mxu0 0
        %3282 = vmatpush1.bf16.msra.mxu0 0
        %3283 = vmatprep.mubr.bf16.mxu0 0
        %3284 = vmatmul.mubr.bf16.gmra.mrb[0].mxu0 %v3249
        %v3285 = vpop.f32.mrb[0].mxu0
        %v3286 = vadd.f32 0.0, %v3285
        %v3287 = vpop.f32.mrb[0].mxu0
        %v3288 = vpop.f32.mrb[0].mxu0
        %v3289 = vpop.f32.mrb[0].mxu0
        %3290 = vdwg.mxu0
        %v3295 = vunpack.c.l.b16 %v3058
        %v3296 = vunpack.c.l.b16 %v3059
        %v3297 = vunpack.c.l.b16 %v3060
        %v3298 = vunpack.c.l.b16 %v3061
        %v3299 = vpack.c.b16 %v3296, %v3295
        %v3300 = vpack.c.b16 %v3298, %v3297
        %v3304 = vsel %vm1307, %v3056, 0
        %3306 = vmatprep.subr.bf16.mxu0 0
        %3307 = vmatpush1.bf16.msra.mxu0 %v3299
        %3308 = vmatprep.subr.bf16.mxu0 0
        %3309 = vmatpush1.bf16.msra.mxu0 %v3300
        %3310 = vmatprep.subr.bf16.mxu0 0
        %3311 = vmatpush1.bf16.msra.mxu0 0
        %3312 = vmatprep.subr.bf16.mxu0 0
        %3313 = vmatpush1.bf16.msra.mxu0 0
        %3314 = vmatprep.subr.bf16.mxu0 0
        %3315 = vmatpush1.bf16.msra.mxu0 0
        %3316 = vmatprep.subr.bf16.mxu0 0
        %3317 = vmatpush1.bf16.msra.mxu0 0
        %3318 = vmatprep.subr.bf16.mxu0 0
        %3319 = vmatpush1.bf16.msra.mxu0 0
        %3320 = vmatprep.subr.bf16.mxu0 0
        %3321 = vmatpush1.bf16.msra.mxu0 0
        %3322 = vmatprep.subr.bf16.mxu0 0
        %3323 = vmatpush1.bf16.msra.mxu0 0
        %3324 = vmatprep.subr.bf16.mxu0 0
        %3325 = vmatpush1.bf16.msra.mxu0 0
        %3326 = vmatprep.subr.bf16.mxu0 0
        %3327 = vmatpush1.bf16.msra.mxu0 0
        %3328 = vmatprep.subr.bf16.mxu0 0
        %3329 = vmatpush1.bf16.msra.mxu0 0
        %3330 = vmatprep.subr.bf16.mxu0 0
        %3331 = vmatpush1.bf16.msra.mxu0 0
        %3332 = vmatprep.subr.bf16.mxu0 0
        %3333 = vmatpush1.bf16.msra.mxu0 0
        %3334 = vmatprep.subr.bf16.mxu0 0
        %3335 = vmatpush1.bf16.msra.mxu0 0
        %3336 = vmatprep.subr.bf16.mxu0 0
        %3337 = vmatpush1.bf16.msra.mxu0 0
        %3338 = vmatprep.mubr.bf16.mxu0 0
        %3339 = vmatmul.mubr.bf16.gmra.mrb[0].mxu0 %v3304
        %v3340 = vpop.f32.mrb[0].mxu0
        %v3341 = vadd.f32 %v3286, %v3340
        %v3342 = vpop.f32.mrb[0].mxu0
        %v3343 = vpop.f32.mrb[0].mxu0
        %v3344 = vpop.f32.mrb[0].mxu0
        %3345 = vdwg.mxu0
        %3346 = vrot.lane.b32.xlu0 %v2848, 64
        %v3347 = vpop.permute.xlu0 %3346
        %3348 = vrot.lane.b32.xlu0 %v2850, 64
        %v3349 = vpop.permute.xlu0 %3348
        %v3350 = vsel %vm1307, %v3347, 0
        %v3352 = vsel %vm1307, %v3349, 0
        %3354 = vmatprep.subr.mxu0 0.0
        %3355 = vmatpush1.xpose.msra.mxu0 %v3352
        %3356 = vmatprep.subr.mxu0 0.0
        %3357 = vmatpush1.xpose.msra.mxu0 0.0
        %3358 = vmatprep.subr.mxu0 0.0
        %3359 = vmatpush1.xpose.msra.mxu0 0.0
        %3360 = vmatprep.subr.mxu0 0.0
        %3361 = vmatpush1.xpose.msra.mxu0 0.0
        %3362 = vmatprep.subr.mxu0 0.0
        %3363 = vmatpush1.xpose.msra.mxu0 0.0
        %3364 = vmatprep.subr.mxu0 0.0
        %3365 = vmatpush1.xpose.msra.mxu0 0.0
        %3366 = vmatprep.subr.mxu0 0.0
        %3367 = vmatpush1.xpose.msra.mxu0 0.0
        %3368 = vmatprep.subr.mxu0 0.0
        %3369 = vmatpush1.xpose.msra.mxu0 0.0
        %3370 = vmatprep.subr.mxu0 0.0
        %3371 = vmatpush1.xpose.msra.mxu0 0.0
        %3372 = vmatprep.subr.mxu0 0.0
        %3373 = vmatpush1.xpose.msra.mxu0 0.0
        %3374 = vmatprep.subr.mxu0 0.0
        %3375 = vmatpush1.xpose.msra.mxu0 0.0
        %3376 = vmatprep.subr.mxu0 0.0
        %3377 = vmatpush1.xpose.msra.mxu0 0.0
        %3378 = vmatprep.subr.mxu0 0.0
        %3379 = vmatpush1.xpose.msra.mxu0 0.0
        %3380 = vmatprep.subr.mxu0 0.0
        %3381 = vmatpush1.xpose.msra.mxu0 0.0
        %3382 = vmatprep.subr.mxu0 0.0
        %3383 = vmatpush1.xpose.msra.mxu0 0.0
        %3384 = vmatprep.subr.mxu0 0.0
        %3385 = vmatpush1.xpose.msra.mxu0 0.0
        %3386 = vmatprep.subr.mxu0 0.0
        %3387 = vmatpush1.xpose.msra.mxu0 0.0
        %3388 = vmatprep.subr.mxu0 0.0
        %3389 = vmatpush1.xpose.msra.mxu0 0.0
        %3390 = vmatprep.subr.mxu0 0.0
        %3391 = vmatpush1.xpose.msra.mxu0 0.0
        %3392 = vmatprep.subr.mxu0 0.0
        %3393 = vmatpush1.xpose.msra.mxu0 0.0
        %3394 = vmatprep.subr.mxu0 0.0
        %3395 = vmatpush1.xpose.msra.mxu0 0.0
        %3396 = vmatprep.subr.mxu0 0.0
        %3397 = vmatpush1.xpose.msra.mxu0 0.0
        %3398 = vmatprep.subr.mxu0 0.0
        %3399 = vmatpush1.xpose.msra.mxu0 0.0
        %3400 = vmatprep.subr.mxu0 0.0
        %3401 = vmatpush1.xpose.msra.mxu0 0.0
        %3402 = vmatprep.subr.mxu0 0.0
        %3403 = vmatpush1.xpose.msra.mxu0 0.0
        %3404 = vmatprep.subr.mxu0 0.0
        %3405 = vmatpush1.xpose.msra.mxu0 0.0
        %3406 = vmatprep.subr.mxu0 0.0
        %3407 = vmatpush1.xpose.msra.mxu0 0.0
        %3408 = vmatprep.subr.mxu0 0.0
        %3409 = vmatpush1.xpose.msra.mxu0 0.0
        %3410 = vmatprep.subr.mxu0 0.0
        %3411 = vmatpush1.xpose.msra.mxu0 0.0
        %3412 = vmatprep.subr.mxu0 0.0
        %3413 = vmatpush1.xpose.msra.mxu0 0.0
        %3414 = vmatprep.subr.mxu0 0.0
        %3415 = vmatpush1.xpose.msra.mxu0 0.0
        %3416 = vmatprep.subr.mxu0 0.0
        %3417 = vmatpush1.xpose.msra.mxu0 0.0
        %3418 = vmatprep.mubr.f32.mxu0 0.0
        %3419 = vmatmul.mubr.f32.gmra.mrb[0].mxu0 %v3350
        %v3420 = vpop.f32.mrb[0].mxu0
        %v3421 = vadd.f32 0.0, %v3420
        %v3422 = vpop.f32.mrb[0].mxu0
        %3423 = vdwg.mxu0
        %v3424 = vmul.f32 %v3421, 0.17677669
        %v3425 = vadd.f32 %v3424, %v1389
        %v3426 = vsel %vm1392, %v3425, -inf
        %3427 = vmax.xlane.f32.xlu0 %v3426
        %v3428 = vpop.xlane.xlu0 %3427
        %v3429 = vsub.f32 %v3425, %v3428
        %v3430 = vmul.f32 %v3429, 1.442695
        %v3431 = vpow.pop %v3430
        %v3432 = vsel %vm1392, %v3431, 0.0
        %3433 = vadd.xlane.f32.xlu0 %v3432
        %v3434 = vpop.xlane.xlu0 %3433
        %v3435 = vrcp.pop %v3434
        %v3436 = vmul.f32 %v3431, %v3435
        %3437 = vrot.lane.b32.xlu0 %v2889, 64
        %v3438 = vpop.permute.xlu0 %3437
        %v3441 = vsel %vm1392, %v3436, 0
        %3443 = vmatprep.subr.mxu0 0.0
        %3444 = vmatpush1.msra.mxu0 %v3438
        %3445 = vmatprep.subr.mxu0 0.0
        %3446 = vmatpush1.msra.mxu0 0.0
        %3447 = vmatprep.subr.mxu0 0.0
        %3448 = vmatpush1.msra.mxu0 0.0
        %3449 = vmatprep.subr.mxu0 0.0
        %3450 = vmatpush1.msra.mxu0 0.0
        %3451 = vmatprep.subr.mxu0 0.0
        %3452 = vmatpush1.msra.mxu0 0.0
        %3453 = vmatprep.subr.mxu0 0.0
        %3454 = vmatpush1.msra.mxu0 0.0
        %3455 = vmatprep.subr.mxu0 0.0
        %3456 = vmatpush1.msra.mxu0 0.0
        %3457 = vmatprep.subr.mxu0 0.0
        %3458 = vmatpush1.msra.mxu0 0.0
        %3459 = vmatprep.subr.mxu0 0.0
        %3460 = vmatpush1.msra.mxu0 0.0
        %3461 = vmatprep.subr.mxu0 0.0
        %3462 = vmatpush1.msra.mxu0 0.0
        %3463 = vmatprep.subr.mxu0 0.0
        %3464 = vmatpush1.msra.mxu0 0.0
        %3465 = vmatprep.subr.mxu0 0.0
        %3466 = vmatpush1.msra.mxu0 0.0
        %3467 = vmatprep.subr.mxu0 0.0
        %3468 = vmatpush1.msra.mxu0 0.0
        %3469 = vmatprep.subr.mxu0 0.0
        %3470 = vmatpush1.msra.mxu0 0.0
        %3471 = vmatprep.subr.mxu0 0.0
        %3472 = vmatpush1.msra.mxu0 0.0
        %3473 = vmatprep.subr.mxu0 0.0
        %3474 = vmatpush1.msra.mxu0 0.0
        %3475 = vmatprep.subr.mxu0 0.0
        %3476 = vmatpush1.msra.mxu0 0.0
        %3477 = vmatprep.subr.mxu0 0.0
        %3478 = vmatpush1.msra.mxu0 0.0
        %3479 = vmatprep.subr.mxu0 0.0
        %3480 = vmatpush1.msra.mxu0 0.0
        %3481 = vmatprep.subr.mxu0 0.0
        %3482 = vmatpush1.msra.mxu0 0.0
        %3483 = vmatprep.subr.mxu0 0.0
        %3484 = vmatpush1.msra.mxu0 0.0
        %3485 = vmatprep.subr.mxu0 0.0
        %3486 = vmatpush1.msra.mxu0 0.0
        %3487 = vmatprep.subr.mxu0 0.0
        %3488 = vmatpush1.msra.mxu0 0.0
        %3489 = vmatprep.subr.mxu0 0.0
        %3490 = vmatpush1.msra.mxu0 0.0
        %3491 = vmatprep.subr.mxu0 0.0
        %3492 = vmatpush1.msra.mxu0 0.0
        %3493 = vmatprep.subr.mxu0 0.0
        %3494 = vmatpush1.msra.mxu0 0.0
        %3495 = vmatprep.subr.mxu0 0.0
        %3496 = vmatpush1.msra.mxu0 0.0
        %3497 = vmatprep.subr.mxu0 0.0
        %3498 = vmatpush1.msra.mxu0 0.0
        %3499 = vmatprep.subr.mxu0 0.0
        %3500 = vmatpush1.msra.mxu0 0.0
        %3501 = vmatprep.subr.mxu0 0.0
        %3502 = vmatpush1.msra.mxu0 0.0
        %3503 = vmatprep.subr.mxu0 0.0
        %3504 = vmatpush1.msra.mxu0 0.0
        %3505 = vmatprep.subr.mxu0 0.0
        %3506 = vmatpush1.msra.mxu0 0.0
        %3507 = vmatprep.mubr.f32.mxu0 0.0
        %3508 = vmatmul.mubr.f32.gmra.mrb[0].mxu0 %v3441
        %v3509 = vpop.f32.mrb[0].mxu0
        %v3510 = vadd.f32 0.0, %v3509
        %v3511 = vpop.f32.mrb[0].mxu0
        %3512 = vdwg.mxu0
        %v3513 = vpack.c.bf16 %v3510, %v3510
        %s3514 = scalar_lea.vmem %s10, 96
        %v3515 = vld [vmem:[%s3514] sm:$0xf]
        %v3516 = vld [vmem:[%s3514 + $0x4] sm:$0xf]
        %v3517 = vld [vmem:[%s3514 + $0x8] sm:$0xf]
        %v3518 = vld [vmem:[%s3514 + $0xc] sm:$0xf]
        %v3523 = vunpack.c.l.b16 %v3515
        %v3524 = vunpack.c.l.b16 %v3516
        %v3525 = vunpack.c.l.b16 %v3517
        %v3526 = vunpack.c.l.b16 %v3518
        %v3527 = vpack.c.b16 %v3524, %v3523
        %v3528 = vpack.c.b16 %v3526, %v3525
        %v3532 = vsel %vm1307, %v3513, 0
        %3534 = vmatprep.subr.bf16.mxu0 0
        %3535 = vmatpush1.bf16.msra.mxu0 %v3527
        %3536 = vmatprep.subr.bf16.mxu0 0
        %3537 = vmatpush1.bf16.msra.mxu0 %v3528
        %3538 = vmatprep.subr.bf16.mxu0 0
        %3539 = vmatpush1.bf16.msra.mxu0 0
        %3540 = vmatprep.subr.bf16.mxu0 0
        %3541 = vmatpush1.bf16.msra.mxu0 0
        %3542 = vmatprep.subr.bf16.mxu0 0
        %3543 = vmatpush1.bf16.msra.mxu0 0
        %3544 = vmatprep.subr.bf16.mxu0 0
        %3545 = vmatpush1.bf16.msra.mxu0 0
        %3546 = vmatprep.subr.bf16.mxu0 0
        %3547 = vmatpush1.bf16.msra.mxu0 0
        %3548 = vmatprep.subr.bf16.mxu0 0
        %3549 = vmatpush1.bf16.msra.mxu0 0
        %3550 = vmatprep.subr.bf16.mxu0 0
        %3551 = vmatpush1.bf16.msra.mxu0 0
        %3552 = vmatprep.subr.bf16.mxu0 0
        %3553 = vmatpush1.bf16.msra.mxu0 0
        %3554 = vmatprep.subr.bf16.mxu0 0
        %3555 = vmatpush1.bf16.msra.mxu0 0
        %3556 = vmatprep.subr.bf16.mxu0 0
        %3557 = vmatpush1.bf16.msra.mxu0 0
        %3558 = vmatprep.subr.bf16.mxu0 0
        %3559 = vmatpush1.bf16.msra.mxu0 0
        %3560 = vmatprep.subr.bf16.mxu0 0
        %3561 = vmatpush1.bf16.msra.mxu0 0
        %3562 = vmatprep.subr.bf16.mxu0 0
        %3563 = vmatpush1.bf16.msra.mxu0 0
        %3564 = vmatprep.subr.bf16.mxu0 0
        %3565 = vmatpush1.bf16.msra.mxu0 0
        %3566 = vmatprep.mubr.bf16.mxu0 0
        %3567 = vmatmul.mubr.bf16.gmra.mrb[0].mxu0 %v3532
        %v3568 = vpop.f32.mrb[0].mxu0
        %v3569 = vadd.f32 0.0, %v3568
        %v3570 = vpop.f32.mrb[0].mxu0
        %v3571 = vpop.f32.mrb[0].mxu0
        %v3572 = vpop.f32.mrb[0].mxu0
        %3573 = vdwg.mxu0
        %v3574 = vadd.f32 %v3341, %v3569
        %3575 = vrot.lane.b32.xlu0 %v2848, 32
        %v3576 = vpop.permute.xlu0 %3575
        %3577 = vrot.lane.b32.xlu0 %v2850, 32
        %v3578 = vpop.permute.xlu0 %3577
        %v3579 = vsel %vm1307, %v3576, 0
        %v3581 = vsel %vm1307, %v3578, 0
        %3583 = vmatprep.subr.mxu0 0.0
        %3584 = vmatpush1.xpose.msra.mxu0 %v3581
        %3585 = vmatprep.subr.mxu0 0.0
        %3586 = vmatpush1.xpose.msra.mxu0 0.0
        %3587 = vmatprep.subr.mxu0 0.0
        %3588 = vmatpush1.xpose.msra.mxu0 0.0
        %3589 = vmatprep.subr.mxu0 0.0
        %3590 = vmatpush1.xpose.msra.mxu0 0.0
        %3591 = vmatprep.subr.mxu0 0.0
        %3592 = vmatpush1.xpose.msra.mxu0 0.0
        %3593 = vmatprep.subr.mxu0 0.0
        %3594 = vmatpush1.xpose.msra.mxu0 0.0
        %3595 = vmatprep.subr.mxu0 0.0
        %3596 = vmatpush1.xpose.msra.mxu0 0.0
        %3597 = vmatprep.subr.mxu0 0.0
        %3598 = vmatpush1.xpose.msra.mxu0 0.0
        %3599 = vmatprep.subr.mxu0 0.0
        %3600 = vmatpush1.xpose.msra.mxu0 0.0
        %3601 = vmatprep.subr.mxu0 0.0
        %3602 = vmatpush1.xpose.msra.mxu0 0.0
        %3603 = vmatprep.subr.mxu0 0.0
        %3604 = vmatpush1.xpose.msra.mxu0 0.0
        %3605 = vmatprep.subr.mxu0 0.0
        %3606 = vmatpush1.xpose.msra.mxu0 0.0
        %3607 = vmatprep.subr.mxu0 0.0
        %3608 = vmatpush1.xpose.msra.mxu0 0.0
        %3609 = vmatprep.subr.mxu0 0.0
        %3610 = vmatpush1.xpose.msra.mxu0 0.0
        %3611 = vmatprep.subr.mxu0 0.0
        %3612 = vmatpush1.xpose.msra.mxu0 0.0
        %3613 = vmatprep.subr.mxu0 0.0
        %3614 = vmatpush1.xpose.msra.mxu0 0.0
        %3615 = vmatprep.subr.mxu0 0.0
        %3616 = vmatpush1.xpose.msra.mxu0 0.0
        %3617 = vmatprep.subr.mxu0 0.0
        %3618 = vmatpush1.xpose.msra.mxu0 0.0
        %3619 = vmatprep.subr.mxu0 0.0
        %3620 = vmatpush1.xpose.msra.mxu0 0.0
        %3621 = vmatprep.subr.mxu0 0.0
        %3622 = vmatpush1.xpose.msra.mxu0 0.0
        %3623 = vmatprep.subr.mxu0 0.0
        %3624 = vmatpush1.xpose.msra.mxu0 0.0
        %3625 = vmatprep.subr.mxu0 0.0
        %3626 = vmatpush1.xpose.msra.mxu0 0.0
        %3627 = vmatprep.subr.mxu0 0.0
        %3628 = vmatpush1.xpose.msra.mxu0 0.0
        %3629 = vmatprep.subr.mxu0 0.0
        %3630 = vmatpush1.xpose.msra.mxu0 0.0
        %3631 = vmatprep.subr.mxu0 0.0
        %3632 = vmatpush1.xpose.msra.mxu0 0.0
        %3633 = vmatprep.subr.mxu0 0.0
        %3634 = vmatpush1.xpose.msra.mxu0 0.0
        %3635 = vmatprep.subr.mxu0 0.0
        %3636 = vmatpush1.xpose.msra.mxu0 0.0
        %3637 = vmatprep.subr.mxu0 0.0
        %3638 = vmatpush1.xpose.msra.mxu0 0.0
        %3639 = vmatprep.subr.mxu0 0.0
        %3640 = vmatpush1.xpose.msra.mxu0 0.0
        %3641 = vmatprep.subr.mxu0 0.0
        %3642 = vmatpush1.xpose.msra.mxu0 0.0
        %3643 = vmatprep.subr.mxu0 0.0
        %3644 = vmatpush1.xpose.msra.mxu0 0.0
        %3645 = vmatprep.subr.mxu0 0.0
        %3646 = vmatpush1.xpose.msra.mxu0 0.0
        %3647 = vmatprep.mubr.f32.mxu0 0.0
        %3648 = vmatmul.mubr.f32.gmra.mrb[0].mxu0 %v3579
        %v3649 = vpop.f32.mrb[0].mxu0
        %v3650 = vadd.f32 0.0, %v3649
        %v3651 = vpop.f32.mrb[0].mxu0
        %3652 = vdwg.mxu0
        %v3653 = vmul.f32 %v3650, 0.17677669
        %v3654 = vadd.f32 %v3653, %v1389
        %v3655 = vsel %vm1392, %v3654, -inf
        %3656 = vmax.xlane.f32.xlu0 %v3655
        %v3657 = vpop.xlane.xlu0 %3656
        %v3658 = vsub.f32 %v3654, %v3657
        %v3659 = vmul.f32 %v3658, 1.442695
        %v3660 = vpow.pop %v3659
        %v3661 = vsel %vm1392, %v3660, 0.0
        %3662 = vadd.xlane.f32.xlu0 %v3661
        %v3663 = vpop.xlane.xlu0 %3662
        %v3664 = vrcp.pop %v3663
        %v3665 = vmul.f32 %v3660, %v3664
        %3666 = vrot.lane.b32.xlu0 %v2889, 32
        %v3667 = vpop.permute.xlu0 %3666
        %v3670 = vsel %vm1392, %v3665, 0
        %3672 = vmatprep.subr.mxu0 0.0
        %3673 = vmatpush1.msra.mxu0 %v3667
        %3674 = vmatprep.subr.mxu0 0.0
        %3675 = vmatpush1.msra.mxu0 0.0
        %3676 = vmatprep.subr.mxu0 0.0
        %3677 = vmatpush1.msra.mxu0 0.0
        %3678 = vmatprep.subr.mxu0 0.0
        %3679 = vmatpush1.msra.mxu0 0.0
        %3680 = vmatprep.subr.mxu0 0.0
        %3681 = vmatpush1.msra.mxu0 0.0
        %3682 = vmatprep.subr.mxu0 0.0
        %3683 = vmatpush1.msra.mxu0 0.0
        %3684 = vmatprep.subr.mxu0 0.0
        %3685 = vmatpush1.msra.mxu0 0.0
        %3686 = vmatprep.subr.mxu0 0.0
        %3687 = vmatpush1.msra.mxu0 0.0
        %3688 = vmatprep.subr.mxu0 0.0
        %3689 = vmatpush1.msra.mxu0 0.0
        %3690 = vmatprep.subr.mxu0 0.0
        %3691 = vmatpush1.msra.mxu0 0.0
        %3692 = vmatprep.subr.mxu0 0.0
        %3693 = vmatpush1.msra.mxu0 0.0
        %3694 = vmatprep.subr.mxu0 0.0
        %3695 = vmatpush1.msra.mxu0 0.0
        %3696 = vmatprep.subr.mxu0 0.0
        %3697 = vmatpush1.msra.mxu0 0.0
        %3698 = vmatprep.subr.mxu0 0.0
        %3699 = vmatpush1.msra.mxu0 0.0
        %3700 = vmatprep.subr.mxu0 0.0
        %3701 = vmatpush1.msra.mxu0 0.0
        %3702 = vmatprep.subr.mxu0 0.0
        %3703 = vmatpush1.msra.mxu0 0.0
        %3704 = vmatprep.subr.mxu0 0.0
        %3705 = vmatpush1.msra.mxu0 0.0
        %3706 = vmatprep.subr.mxu0 0.0
        %3707 = vmatpush1.msra.mxu0 0.0
        %3708 = vmatprep.subr.mxu0 0.0
        %3709 = vmatpush1.msra.mxu0 0.0
        %3710 = vmatprep.subr.mxu0 0.0
        %3711 = vmatpush1.msra.mxu0 0.0
        %3712 = vmatprep.subr.mxu0 0.0
        %3713 = vmatpush1.msra.mxu0 0.0
        %3714 = vmatprep.subr.mxu0 0.0
        %3715 = vmatpush1.msra.mxu0 0.0
        %3716 = vmatprep.subr.mxu0 0.0
        %3717 = vmatpush1.msra.mxu0 0.0
        %3718 = vmatprep.subr.mxu0 0.0
        %3719 = vmatpush1.msra.mxu0 0.0
        %3720 = vmatprep.subr.mxu0 0.0
        %3721 = vmatpush1.msra.mxu0 0.0
        %3722 = vmatprep.subr.mxu0 0.0
        %3723 = vmatpush1.msra.mxu0 0.0
        %3724 = vmatprep.subr.mxu0 0.0
        %3725 = vmatpush1.msra.mxu0 0.0
        %3726 = vmatprep.subr.mxu0 0.0
        %3727 = vmatpush1.msra.mxu0 0.0
        %3728 = vmatprep.subr.mxu0 0.0
        %3729 = vmatpush1.msra.mxu0 0.0
        %3730 = vmatprep.subr.mxu0 0.0
        %3731 = vmatpush1.msra.mxu0 0.0
        %3732 = vmatprep.subr.mxu0 0.0
        %3733 = vmatpush1.msra.mxu0 0.0
        %3734 = vmatprep.subr.mxu0 0.0
        %3735 = vmatpush1.msra.mxu0 0.0
        %3736 = vmatprep.mubr.f32.mxu0 0.0
        %3737 = vmatmul.mubr.f32.gmra.mrb[0].mxu0 %v3670
        %v3738 = vpop.f32.mrb[0].mxu0
        %v3739 = vadd.f32 0.0, %v3738
        %v3740 = vpop.f32.mrb[0].mxu0
        %3741 = vdwg.mxu0
        %v3742 = vpack.c.bf16 %v3739, %v3739
        %s3743 = scalar_lea.vmem %s10, 112
        %v3744 = vld [vmem:[%s3743] sm:$0xf]
        %v3745 = vld [vmem:[%s3743 + $0x4] sm:$0xf]
        %v3746 = vld [vmem:[%s3743 + $0x8] sm:$0xf]
        %v3747 = vld [vmem:[%s3743 + $0xc] sm:$0xf]
        %v3752 = vunpack.c.l.b16 %v3744
        %v3753 = vunpack.c.l.b16 %v3745
        %v3754 = vunpack.c.l.b16 %v3746
        %v3755 = vunpack.c.l.b16 %v3747
        %v3756 = vpack.c.b16 %v3753, %v3752
        %v3757 = vpack.c.b16 %v3755, %v3754
        %v3761 = vsel %vm1307, %v3742, 0
        %3763 = vmatprep.subr.bf16.mxu0 0
        %3764 = vmatpush1.bf16.msra.mxu0 %v3756
        %3765 = vmatprep.subr.bf16.mxu0 0
        %3766 = vmatpush1.bf16.msra.mxu0 %v3757
        %3767 = vmatprep.subr.bf16.mxu0 0
        %3768 = vmatpush1.bf16.msra.mxu0 0
        %3769 = vmatprep.subr.bf16.mxu0 0
        %3770 = vmatpush1.bf16.msra.mxu0 0
        %3771 = vmatprep.subr.bf16.mxu0 0
        %3772 = vmatpush1.bf16.msra.mxu0 0
        %3773 = vmatprep.subr.bf16.mxu0 0
        %3774 = vmatpush1.bf16.msra.mxu0 0
        %3775 = vmatprep.subr.bf16.mxu0 0
        %3776 = vmatpush1.bf16.msra.mxu0 0
        %3777 = vmatprep.subr.bf16.mxu0 0
        %3778 = vmatpush1.bf16.msra.mxu0 0
        %3779 = vmatprep.subr.bf16.mxu0 0
        %3780 = vmatpush1.bf16.msra.mxu0 0
        %3781 = vmatprep.subr.bf16.mxu0 0
        %3782 = vmatpush1.bf16.msra.mxu0 0
        %3783 = vmatprep.subr.bf16.mxu0 0
        %3784 = vmatpush1.bf16.msra.mxu0 0
        %3785 = vmatprep.subr.bf16.mxu0 0
        %3786 = vmatpush1.bf16.msra.mxu0 0
        %3787 = vmatprep.subr.bf16.mxu0 0
        %3788 = vmatpush1.bf16.msra.mxu0 0
        %3789 = vmatprep.subr.bf16.mxu0 0
        %3790 = vmatpush1.bf16.msra.mxu0 0
        %3791 = vmatprep.subr.bf16.mxu0 0
        %3792 = vmatpush1.bf16.msra.mxu0 0
        %3793 = vmatprep.subr.bf16.mxu0 0
        %3794 = vmatpush1.bf16.msra.mxu0 0
        %3795 = vmatprep.mubr.bf16.mxu0 0
        %3796 = vmatmul.mubr.bf16.gmra.mrb[0].mxu0 %v3761
        %v3797 = vpop.f32.mrb[0].mxu0
        %v3798 = vadd.f32 0.0, %v3797
        %v3799 = vpop.f32.mrb[0].mxu0
        %v3800 = vpop.f32.mrb[0].mxu0
        %v3801 = vpop.f32.mrb[0].mxu0
        %3802 = vdwg.mxu0
        %v3803 = vadd.f32 %v3574, %v3798
        %v3804 = vadd.f32 %v2632, %v3803
        %s3805 = scalar_lea.vmem %s11, 1
        %v3806 = vld [vmem:[%s3805] sm:$0x1]
        %v3808 = vlaneseq
        %v3809 = vshrl.u32 %v3808, 7
        %v3810 = vsub.s32 0, %v3809
        %v3811 = vrot.slane %v3806, %v3810
        %v3813 = vadd.f32 %v3804, %v3811
        %s3814 = scalar_lea.vmem %s12, 1
        %v3815 = vld [vmem:[%s3814] sm:$0x1]
        %s3816 = scalar_lea.vmem %s13, 1
        %v3817 = vld [vmem:[%s3816] sm:$0x1]
        %3818 = vadd.xlane.f32.xlu0 %v3813
        %v3819 = vpop.xlane.xlu0 %3818
        %v3820 = vmul.f32 %v3819, %v1021
        %v3821 = vsub.f32 %v3813, %v3820
        %v3822 = vmul.f32 %v3821, %v3821
        %3823 = vadd.xlane.f32.xlu0 %v3822
        %v3824 = vpop.xlane.xlu0 %3823
        %v3825 = vmul.f32 %v3824, %v1021
        %v3826 = vadd.f32 %v3825, 1e-05
        %v3827 = vrsqrt.pop %v3826
        %v3828 = vmul.f32 %v3821, %v3827
        %v3830 = vlaneseq
        %v3831 = vshrl.u32 %v3830, 7
        %v3832 = vsub.s32 0, %v3831
        %v3833 = vrot.slane %v3815, %v3832
        %v3835 = vmul.f32 %v3828, %v3833
        %v3837 = vlaneseq
        %v3838 = vshrl.u32 %v3837, 7
        %v3839 = vsub.s32 0, %v3838
        %v3840 = vrot.slane %v3817, %v3839
        %v3842 = vadd.f32 %v3835, %v3840
        %v3843 = vpack.c.bf16 %v3842, %v3842
        %s3844 = scalar_lea.vmem [#allocation8], 128
        %v3845 = vld [vmem:[%s3844] sm:$0xff]
        %v3846 = vld [vmem:[%s3844 + $0x8] sm:$0xff]
        %v3847 = vld [vmem:[%s3844 + $0x10] sm:$0xff]
        %v3848 = vld [vmem:[%s3844 + $0x18] sm:$0xff]
        %v3849 = vld [vmem:[%s3844 + $0x20] sm:$0xff]
        %v3850 = vld [vmem:[%s3844 + $0x28] sm:$0xff]
        %v3851 = vld [vmem:[%s3844 + $0x30] sm:$0xff]
        %v3852 = vld [vmem:[%s3844 + $0x38] sm:$0xff]
        %v3853 = vld [vmem:[%s3844 + $0x40] sm:$0xff]
        %v3854 = vld [vmem:[%s3844 + $0x48] sm:$0xff]
        %v3855 = vld [vmem:[%s3844 + $0x50] sm:$0xff]
        %v3856 = vld [vmem:[%s3844 + $0x58] sm:$0xff]
        %v3857 = vld [vmem:[%s3844 + $0x60] sm:$0xff]
        %v3858 = vld [vmem:[%s3844 + $0x68] sm:$0xff]
        %v3859 = vld [vmem:[%s3844 + $0x70] sm:$0xff]
        %v3860 = vld [vmem:[%s3844 + $0x78] sm:$0xff]
        %s3861 = scalar_lea.vmem %s15, 2
        %v3862 = vld [vmem:[%s3861] sm:$0x3]
        %v3864 = vlaneseq
        %v3865 = vshrl.u32 %v3864, 7
        %v3866 = vsub.s32 0, %v3865
        %v3867 = vrot.slane %v3862, %v3866
        %v3868 = vlaneseq
        %v3869 = vshrl.u32 %v3868, 7
        %v3870 = vsub.s32 1, %v3869
        %v3871 = vrot.slane %v3862, %v3870
        %v3890 = vunpack.c.l.b16 %v3845
        %v3891 = vunpack.c.h.b16 %v3845
        %v3892 = vunpack.c.l.b16 %v3846
        %v3893 = vunpack.c.h.b16 %v3846
        %v3894 = vunpack.c.l.b16 %v3847
        %v3895 = vunpack.c.h.b16 %v3847
        %v3896 = vunpack.c.l.b16 %v3848
        %v3897 = vunpack.c.h.b16 %v3848
        %v3898 = vunpack.c.l.b16 %v3849
        %v3899 = vunpack.c.h.b16 %v3849
        %v3900 = vunpack.c.l.b16 %v3850
        %v3901 = vunpack.c.h.b16 %v3850
        %v3902 = vunpack.c.l.b16 %v3851
        %v3903 = vunpack.c.h.b16 %v3851
        %v3904 = vunpack.c.l.b16 %v3852
        %v3905 = vunpack.c.h.b16 %v3852
        %v3906 = vunpack.c.l.b16 %v3853
        %v3907 = vunpack.c.h.b16 %v3853
        %v3908 = vunpack.c.l.b16 %v3854
        %v3909 = vunpack.c.h.b16 %v3854
        %v3910 = vunpack.c.l.b16 %v3855
        %v3911 = vunpack.c.h.b16 %v3855
        %v3912 = vunpack.c.l.b16 %v3856
        %v3913 = vunpack.c.h.b16 %v3856
        %v3914 = vunpack.c.l.b16 %v3857
        %v3915 = vunpack.c.h.b16 %v3857
        %v3916 = vunpack.c.l.b16 %v3858
        %v3917 = vunpack.c.h.b16 %v3858
        %v3918 = vunpack.c.l.b16 %v3859
        %v3919 = vunpack.c.h.b16 %v3859
        %v3920 = vunpack.c.l.b16 %v3860
        %v3921 = vunpack.c.h.b16 %v3860
        %v3922 = vpack.c.b16 %v3892, %v3890
        %v3923 = vpack.c.b16 %v3893, %v3891
        %v3924 = vpack.c.b16 %v3896, %v3894
        %v3925 = vpack.c.b16 %v3897, %v3895
        %v3926 = vpack.c.b16 %v3900, %v3898
        %v3927 = vpack.c.b16 %v3901, %v3899
        %v3928 = vpack.c.b16 %v3904, %v3902
        %v3929 = vpack.c.b16 %v3905, %v3903
        %v3930 = vpack.c.b16 %v3908, %v3906
        %v3931 = vpack.c.b16 %v3909, %v3907
        %v3932 = vpack.c.b16 %v3912, %v3910
        %v3933 = vpack.c.b16 %v3913, %v3911
        %v3934 = vpack.c.b16 %v3916, %v3914
        %v3935 = vpack.c.b16 %v3917, %v3915
        %v3936 = vpack.c.b16 %v3920, %v3918
        %v3937 = vpack.c.b16 %v3921, %v3919
        %3954 = vmatprep.subr.bf16.mxu0 %v3923
        %3955 = vmatpush1.bf16.msra.mxu0 %v3922
        %3956 = vmatprep.subr.bf16.mxu0 %v3925
        %3957 = vmatpush1.bf16.msra.mxu0 %v3924
        %3958 = vmatprep.subr.bf16.mxu0 %v3927
        %3959 = vmatpush1.bf16.msra.mxu0 %v3926
        %3960 = vmatprep.subr.bf16.mxu0 %v3929
        %3961 = vmatpush1.bf16.msra.mxu0 %v3928
        %3962 = vmatprep.subr.bf16.mxu0 %v3931
        %3963 = vmatpush1.bf16.msra.mxu0 %v3930
        %3964 = vmatprep.subr.bf16.mxu0 %v3933
        %3965 = vmatpush1.bf16.msra.mxu0 %v3932
        %3966 = vmatprep.subr.bf16.mxu0 %v3935
        %3967 = vmatpush1.bf16.msra.mxu0 %v3934
        %3968 = vmatprep.subr.bf16.mxu0 %v3937
        %3969 = vmatpush1.bf16.msra.mxu0 %v3936
        %3970 = vmatprep.subr.bf16.mxu0 0
        %3971 = vmatpush1.bf16.msra.mxu0 0
        %3972 = vmatprep.subr.bf16.mxu0 0
        %3973 = vmatpush1.bf16.msra.mxu0 0
        %3974 = vmatprep.subr.bf16.mxu0 0
        %3975 = vmatpush1.bf16.msra.mxu0 0
        %3976 = vmatprep.subr.bf16.mxu0 0
        %3977 = vmatpush1.bf16.msra.mxu0 0
        %3978 = vmatprep.subr.bf16.mxu0 0
        %3979 = vmatpush1.bf16.msra.mxu0 0
        %3980 = vmatprep.subr.bf16.mxu0 0
        %3981 = vmatpush1.bf16.msra.mxu0 0
        %3982 = vmatprep.subr.bf16.mxu0 0
        %3983 = vmatpush1.bf16.msra.mxu0 0
        %3984 = vmatprep.subr.bf16.mxu0 0
        %3985 = vmatpush1.bf16.msra.mxu0 0
        %3986 = vmatprep.mubr.bf16.mxu0 0
        %3987 = vmatmul.mubr.bf16.gmra.mrb[0].mxu0 %v3843
        %v3988 = vpop.f32.mrb[0].mxu0
        %v3989 = vadd.f32 %v3867, %v3988
        %v3990 = vpop.f32.mrb[0].mxu0
        %v3991 = vadd.f32 %v3871, %v3990
        %v3992 = vpop.f32.mrb[0].mxu0
        %v3993 = vpop.f32.mrb[0].mxu0
        %3994 = vdwg.mxu0
        %v3995 = vmul.f32 %v3989, 0.5
        %v3996 = vmul.f32 %v3991, 0.5
        %v3997 = vmul.f32 %v3989, 0.044715
        %v3998 = vmul.f32 %v3991, 0.044715
        %v3999 = vmul.f32 %v3997, %v3989
        %v4000 = vmul.f32 %v3998, %v3991
        %v4001 = vmul.f32 %v3999, %v3989
        %v4002 = vmul.f32 %v4000, %v3991
        %v4003 = vadd.f32 %v3989, %v4001
        %v4004 = vadd.f32 %v3991, %v4002
        %v4005 = vmul.f32 %v4003, 0.7978846
        %v4006 = vmul.f32 %v4004, 0.7978846
        %v4007 = vtanh.pop %v4005
        %v4008 = vtanh.pop %v4006
        %v4009 = vadd.f32 %v4007, 1.0
        %v4010 = vadd.f32 %v4008, 1.0
        %v4011 = vmul.f32 %v3995, %v4009
        %v4012 = vmul.f32 %v3996, %v4010
        %v4013 = vpack.c.bf16 %v4011, %v4011
        %v4014 = vpack.c.bf16 %v4012, %v4012
        %s4015 = scalar_lea.vmem [#allocation10], 128
        %v4016 = vld [vmem:[%s4015] sm:$0xf]
        %v4017 = vld [vmem:[%s4015 + $0x4] sm:$0xf]
        %v4018 = vld [vmem:[%s4015 + $0x8] sm:$0xf]
        %v4019 = vld [vmem:[%s4015 + $0xc] sm:$0xf]
        %v4020 = vld [vmem:[%s4015 + $0x10] sm:$0xf]
        %v4021 = vld [vmem:[%s4015 + $0x14] sm:$0xf]
        %v4022 = vld [vmem:[%s4015 + $0x18] sm:$0xf]
        %v4023 = vld [vmem:[%s4015 + $0x1c] sm:$0xf]
        %v4024 = vld [vmem:[%s4015 + $0x20] sm:$0xf]
        %v4025 = vld [vmem:[%s4015 + $0x24] sm:$0xf]
        %v4026 = vld [vmem:[%s4015 + $0x28] sm:$0xf]
        %v4027 = vld [vmem:[%s4015 + $0x2c] sm:$0xf]
        %v4028 = vld [vmem:[%s4015 + $0x30] sm:$0xf]
        %v4029 = vld [vmem:[%s4015 + $0x34] sm:$0xf]
        %v4030 = vld [vmem:[%s4015 + $0x38] sm:$0xf]
        %v4031 = vld [vmem:[%s4015 + $0x3c] sm:$0xf]
        %v4032 = vld [vmem:[%s4015 + $0x40] sm:$0xf]
        %v4033 = vld [vmem:[%s4015 + $0x44] sm:$0xf]
        %v4034 = vld [vmem:[%s4015 + $0x48] sm:$0xf]
        %v4035 = vld [vmem:[%s4015 + $0x4c] sm:$0xf]
        %v4036 = vld [vmem:[%s4015 + $0x50] sm:$0xf]
        %v4037 = vld [vmem:[%s4015 + $0x54] sm:$0xf]
        %v4038 = vld [vmem:[%s4015 + $0x58] sm:$0xf]
        %v4039 = vld [vmem:[%s4015 + $0x5c] sm:$0xf]
        %v4040 = vld [vmem:[%s4015 + $0x60] sm:$0xf]
        %v4041 = vld [vmem:[%s4015 + $0x64] sm:$0xf]
        %v4042 = vld [vmem:[%s4015 + $0x68] sm:$0xf]
        %v4043 = vld [vmem:[%s4015 + $0x6c] sm:$0xf]
        %v4044 = vld [vmem:[%s4015 + $0x70] sm:$0xf]
        %v4045 = vld [vmem:[%s4015 + $0x74] sm:$0xf]
        %v4046 = vld [vmem:[%s4015 + $0x78] sm:$0xf]
        %v4047 = vld [vmem:[%s4015 + $0x7c] sm:$0xf]
        %s4048 = scalar_lea.vmem %s17, 1
        %v4049 = vld [vmem:[%s4048] sm:$0x1]
        %v4051 = vlaneseq
        %v4052 = vshrl.u32 %v4051, 7
        %v4053 = vsub.s32 0, %v4052
        %v4054 = vrot.slane %v4049, %v4053
        %v4088 = vunpack.c.l.b16 %v4016
        %v4089 = vunpack.c.l.b16 %v4017
        %v4090 = vunpack.c.l.b16 %v4018
        %v4091 = vunpack.c.l.b16 %v4019
        %v4092 = vunpack.c.l.b16 %v4020
        %v4093 = vunpack.c.l.b16 %v4021
        %v4094 = vunpack.c.l.b16 %v4022
        %v4095 = vunpack.c.l.b16 %v4023
        %v4096 = vunpack.c.l.b16 %v4024
        %v4097 = vunpack.c.l.b16 %v4025
        %v4098 = vunpack.c.l.b16 %v4026
        %v4099 = vunpack.c.l.b16 %v4027
        %v4100 = vunpack.c.l.b16 %v4028
        %v4101 = vunpack.c.l.b16 %v4029
        %v4102 = vunpack.c.l.b16 %v4030
        %v4103 = vunpack.c.l.b16 %v4031
        %v4104 = vunpack.c.l.b16 %v4032
        %v4105 = vunpack.c.l.b16 %v4033
        %v4106 = vunpack.c.l.b16 %v4034
        %v4107 = vunpack.c.l.b16 %v4035
        %v4108 = vunpack.c.l.b16 %v4036
        %v4109 = vunpack.c.l.b16 %v4037
        %v4110 = vunpack.c.l.b16 %v4038
        %v4111 = vunpack.c.l.b16 %v4039
        %v4112 = vunpack.c.l.b16 %v4040
        %v4113 = vunpack.c.l.b16 %v4041
        %v4114 = vunpack.c.l.b16 %v4042
        %v4115 = vunpack.c.l.b16 %v4043
        %v4116 = vunpack.c.l.b16 %v4044
        %v4117 = vunpack.c.l.b16 %v4045
        %v4118 = vunpack.c.l.b16 %v4046
        %v4119 = vunpack.c.l.b16 %v4047
        %v4120 = vpack.c.b16 %v4089, %v4088
        %v4121 = vpack.c.b16 %v4091, %v4090
        %v4122 = vpack.c.b16 %v4093, %v4092
        %v4123 = vpack.c.b16 %v4095, %v4094
        %v4124 = vpack.c.b16 %v4097, %v4096
        %v4125 = vpack.c.b16 %v4099, %v4098
        %v4126 = vpack.c.b16 %v4101, %v4100
        %v4127 = vpack.c.b16 %v4103, %v4102
        %v4128 = vpack.c.b16 %v4105, %v4104
        %v4129 = vpack.c.b16 %v4107, %v4106
        %v4130 = vpack.c.b16 %v4109, %v4108
        %v4131 = vpack.c.b16 %v4111, %v4110
        %v4132 = vpack.c.b16 %v4113, %v4112
        %v4133 = vpack.c.b16 %v4115, %v4114
        %v4134 = vpack.c.b16 %v4117, %v4116
        %v4135 = vpack.c.b16 %v4119, %v4118
        %4152 = vmatprep.subr.bf16.mxu0 0
        %4153 = vmatpush1.bf16.msra.mxu0 %v4120
        %4154 = vmatprep.subr.bf16.mxu0 0
        %4155 = vmatpush1.bf16.msra.mxu0 %v4121
        %4156 = vmatprep.subr.bf16.mxu0 0
        %4157 = vmatpush1.bf16.msra.mxu0 %v4122
        %4158 = vmatprep.subr.bf16.mxu0 0
        %4159 = vmatpush1.bf16.msra.mxu0 %v4123
        %4160 = vmatprep.subr.bf16.mxu0 0
        %4161 = vmatpush1.bf16.msra.mxu0 %v4124
        %4162 = vmatprep.subr.bf16.mxu0 0
        %4163 = vmatpush1.bf16.msra.mxu0 %v4125
        %4164 = vmatprep.subr.bf16.mxu0 0
        %4165 = vmatpush1.bf16.msra.mxu0 %v4126
        %4166 = vmatprep.subr.bf16.mxu0 0
        %4167 = vmatpush1.bf16.msra.mxu0 %v4127
        %4168 = vmatprep.subr.bf16.mxu0 0
        %4169 = vmatpush1.bf16.msra.mxu0 %v4128
        %4170 = vmatprep.subr.bf16.mxu0 0
        %4171 = vmatpush1.bf16.msra.mxu0 %v4129
        %4172 = vmatprep.subr.bf16.mxu0 0
        %4173 = vmatpush1.bf16.msra.mxu0 %v4130
        %4174 = vmatprep.subr.bf16.mxu0 0
        %4175 = vmatpush1.bf16.msra.mxu0 %v4131
        %4176 = vmatprep.subr.bf16.mxu0 0
        %4177 = vmatpush1.bf16.msra.mxu0 %v4132
        %4178 = vmatprep.subr.bf16.mxu0 0
        %4179 = vmatpush1.bf16.msra.mxu0 %v4133
        %4180 = vmatprep.subr.bf16.mxu0 0
        %4181 = vmatpush1.bf16.msra.mxu0 %v4134
        %4182 = vmatprep.subr.bf16.mxu0 0
        %4183 = vmatpush1.bf16.msra.mxu0 %v4135
        %4184 = vmatprep.mubr.bf16.mxu0 %v4014
        %4185 = vmatmul.mubr.bf16.gmra.mrb[0].mxu0 %v4013
        %v4186 = vpop.f32.mrb[0].mxu0
        %v4187 = vadd.f32 %v4054, %v4186
        %v4188 = vpop.f32.mrb[0].mxu0
        %v4189 = vpop.f32.mrb[0].mxu0
        %v4190 = vpop.f32.mrb[0].mxu0
        %4191 = vdwg.mxu0
        %v4192 = vadd.f32 %v3842, %v4187
        %s4193 = scalar_lea.vmem %s18, 1
        %v4194 = vld [vmem:[%s4193] sm:$0x1]
        %s4195 = scalar_lea.vmem %s19, 1
        %v4196 = vld [vmem:[%s4195] sm:$0x1]
        %4197 = vadd.xlane.f32.xlu0 %v4192
        %v4198 = vpop.xlane.xlu0 %4197
        %v4199 = vmul.f32 %v4198, %v1021
        %v4200 = vsub.f32 %v4192, %v4199
        %v4201 = vmul.f32 %v4200, %v4200
        %4202 = vadd.xlane.f32.xlu0 %v4201
        %v4203 = vpop.xlane.xlu0 %4202
        %v4204 = vmul.f32 %v4203, %v1021
        %v4205 = vadd.f32 %v4204, 1e-05
        %v4206 = vrsqrt.pop %v4205
        %v4207 = vmul.f32 %v4200, %v4206
        %v4209 = vlaneseq
        %v4210 = vshrl.u32 %v4209, 7
        %v4211 = vsub.s32 0, %v4210
        %v4212 = vrot.slane %v4194, %v4211
        %v4214 = vmul.f32 %v4207, %v4212
        %v4216 = vlaneseq
        %v4217 = vshrl.u32 %v4216, 7
        %v4218 = vsub.s32 0, %v4217
        %v4219 = vrot.slane %v4196, %v4218
        %v4221 = vadd.f32 %v4214, %v4219
        %v4222 = vrot.slane %v4221, 4
        %v4223 = vmax.f32 %v4221, %v4222
        %v4224 = vrot.slane %v4223, 2
        %v4225 = vmax.f32 %v4223, %v4224
        %v4226 = vrot.slane %v4225, 1
        %v4227 = vmax.f32 %v4225, %v4226
        %v4228 = vpack.c.bf16 %v4227, %v4227
        %v4229 = vld [vmem:[%s20] sm:$0xf]
        %v4230 = vld [vmem:[%s20 + $0x4] sm:$0xf]
        %v4231 = vld [vmem:[%s20 + $0x8] sm:$0xf]
        %v4232 = vld [vmem:[%s20 + $0xc] sm:$0xf]
        %v4233 = vld [vmem:[%s20 + $0x10] sm:$0xf]
        %v4234 = vld [vmem:[%s20 + $0x14] sm:$0xf]
        %v4235 = vld [vmem:[%s20 + $0x18] sm:$0xf]
        %v4236 = vld [vmem:[%s20 + $0x1c] sm:$0xf]
        %v4237 = vld [vmem:[%s20 + $0x20] sm:$0xf]
        %v4238 = vld [vmem:[%s20 + $0x24] sm:$0xf]
        %v4239 = vld [vmem:[%s20 + $0x28] sm:$0xf]
        %v4240 = vld [vmem:[%s20 + $0x2c] sm:$0xf]
        %v4241 = vld [vmem:[%s20 + $0x30] sm:$0xf]
        %v4242 = vld [vmem:[%s20 + $0x34] sm:$0xf]
        %v4243 = vld [vmem:[%s20 + $0x38] sm:$0xf]
        %v4244 = vld [vmem:[%s20 + $0x3c] sm:$0xf]
        %v4245 = vld [vmem:[%s21] sm:$0x1]
        %v4262 = vunpack.c.l.b16 %v4229
        %v4263 = vunpack.c.l.b16 %v4230
        %v4264 = vunpack.c.l.b16 %v4231
        %v4265 = vunpack.c.l.b16 %v4232
        %v4266 = vunpack.c.l.b16 %v4233
        %v4267 = vunpack.c.l.b16 %v4234
        %v4268 = vunpack.c.l.b16 %v4235
        %v4269 = vunpack.c.l.b16 %v4236
        %v4270 = vunpack.c.l.b16 %v4237
        %v4271 = vunpack.c.l.b16 %v4238
        %v4272 = vunpack.c.l.b16 %v4239
        %v4273 = vunpack.c.l.b16 %v4240
        %v4274 = vunpack.c.l.b16 %v4241
        %v4275 = vunpack.c.l.b16 %v4242
        %v4276 = vunpack.c.l.b16 %v4243
        %v4277 = vunpack.c.l.b16 %v4244
        %v4278 = vpack.c.b16 %v4263, %v4262
        %v4279 = vpack.c.b16 %v4265, %v4264
        %v4280 = vpack.c.b16 %v4267, %v4266
        %v4281 = vpack.c.b16 %v4269, %v4268
        %v4282 = vpack.c.b16 %v4271, %v4270
        %v4283 = vpack.c.b16 %v4273, %v4272
        %v4284 = vpack.c.b16 %v4275, %v4274
        %v4285 = vpack.c.b16 %v4277, %v4276
        %4294 = vmatprep.subr.bf16.mxu0 0
        %4295 = vmatpush1.bf16.msra.mxu0 %v4278
        %4296 = vmatprep.subr.bf16.mxu0 0
        %4297 = vmatpush1.bf16.msra.mxu0 %v4279
        %4298 = vmatprep.subr.bf16.mxu0 0
        %4299 = vmatpush1.bf16.msra.mxu0 %v4280
        %4300 = vmatprep.subr.bf16.mxu0 0
        %4301 = vmatpush1.bf16.msra.mxu0 %v4281
        %4302 = vmatprep.subr.bf16.mxu0 0
        %4303 = vmatpush1.bf16.msra.mxu0 %v4282
        %4304 = vmatprep.subr.bf16.mxu0 0
        %4305 = vmatpush1.bf16.msra.mxu0 %v4283
        %4306 = vmatprep.subr.bf16.mxu0 0
        %4307 = vmatpush1.bf16.msra.mxu0 %v4284
        %4308 = vmatprep.subr.bf16.mxu0 0
        %4309 = vmatpush1.bf16.msra.mxu0 %v4285
        %4310 = vmatprep.subr.bf16.mxu0 0
        %4311 = vmatpush1.bf16.msra.mxu0 0
        %4312 = vmatprep.subr.bf16.mxu0 0
        %4313 = vmatpush1.bf16.msra.mxu0 0
        %4314 = vmatprep.subr.bf16.mxu0 0
        %4315 = vmatpush1.bf16.msra.mxu0 0
        %4316 = vmatprep.subr.bf16.mxu0 0
        %4317 = vmatpush1.bf16.msra.mxu0 0
        %4318 = vmatprep.subr.bf16.mxu0 0
        %4319 = vmatpush1.bf16.msra.mxu0 0
        %4320 = vmatprep.subr.bf16.mxu0 0
        %4321 = vmatpush1.bf16.msra.mxu0 0
        %4322 = vmatprep.subr.bf16.mxu0 0
        %4323 = vmatpush1.bf16.msra.mxu0 0
        %4324 = vmatprep.subr.bf16.mxu0 0
        %4325 = vmatpush1.bf16.msra.mxu0 0
        %4326 = vmatprep.mubr.bf16.mxu0 0
        %4327 = vmatmul.mubr.bf16.gmra.mrb[0].mxu0 %v4228
        %v4328 = vpop.f32.mrb[0].mxu0
        %v4329 = vadd.f32 %v4245, %v4328
        %v4330 = vpop.f32.mrb[0].mxu0
        %v4331 = vpop.f32.mrb[0].mxu0
        %v4332 = vpop.f32.mrb[0].mxu0
        %4333 = vdwg.mxu0
        %vm4334 = vcmask 8192
        %v4335 = vsel %vm4334, %v4329, -inf
        %4336 = vmax.xlane.f32.xlu0 %v4335
        %v4337 = vpop.xlane.xlu0 %4336
        %v4338 = vsub.f32 %v4329, %v4337
        %v4339 = vmul.f32 %v4338, 1.442695
        %v4340 = vpow.pop %v4339
        %v4341 = vsel %vm4334, %v4340, 0.0
        %4342 = vadd.xlane.f32.xlu0 %v4341
        %v4343 = vpop.xlane.xlu0 %4342
        %v4344 = vlog2.pop %v4343
        %v4345 = vmul.f32 %v4344, 0.6931472
        %v4346 = vsub.f32 %v4338, %v4345
        %4347 = vst.msk [vmem:[%s770] sm:$0x1] %vm4334, %v4346
        %s4348 = sand.u32 %s524, 1
        %s4349 = scalar_lea.sflag [#allocation4], %s4348
        %s4350 = sand.u32 %s524, 1
        %s4351 = scalar_lea.vmem [#allocation11], %s4350
        // Predicated region
        $region129: #{transformer_classifier.1} parent=107 // pred_check
          %p4352 = pneg %p534
        $region130: #{transformer_classifier.1} parent=107 // pred_check_branch
          %4354 = sbr.rel (%p4352) target = $region132
        $region131: #{transformer_classifier.1} parent=107 // pred_region
          %s4356 = ssub.s32 16, 16
          %4357 = vsyncadd %s4349, %s4356
          %s4358 = smul.addr %s39, 16
          %s4359 = scalar_lea.hbm %s22, %s4358
          %s4361 = sshll.u32 %s4351, 4
          %s4362 = int_to_ptr.vmem [resolvable:$true] %s4361
          %4364 = dma.vmem_to_hbm [thread:$0]  %s4362, 16, %s4359, %s4349
        $region132: #{transformer_classifier.1} parent=107 // pred_fallthru
          _
      $region108: #{transformer_classifier.1} parent=5 // pred_fallthru
        _
      %p4365 = scmp.le.s32.totalorder 2, %s34
      // Predicated region
      $region133: #{transformer_classifier.1} parent=5 // pred_check
        %p4366 = pneg %p4365
      $region134: #{transformer_classifier.1} parent=5 // pred_check_branch
        %4368 = sbr.rel (%p4366) target = $region136
      $region135: #{transformer_classifier.1} parent=5 // pred_region
        %s4369 = ssub.s32 %s34, 2
        // Predicated region
        $region137: #{transformer_classifier.1} parent=135 // pred_check
          %p4370 = pneg %p540
        $region138: #{transformer_classifier.1} parent=135 // pred_check_branch
          %4372 = sbr.rel (%p4370) target = $region140
        $region139: #{transformer_classifier.1} parent=135 // pred_region
          %s4373 = sand.u32 %s525, 1
          %s4374 = scalar_lea.sflag [#allocation4], %s4373
          %s4375 = sand.u32 %s525, 1
          %s4376 = scalar_lea.vmem [#allocation11], %s4375
          %4377 = dma.done %s4374, 16
        $region140: #{transformer_classifier.1} parent=135 // pred_fallthru
          _
      $region136: #{transformer_classifier.1} parent=5 // pred_fallthru
        _
    $region6: #{transformer_classifier.1} parent=1 // loop_footer
      %s38 = sadd.s32 1, %s34
    $region7: #{transformer_classifier.1} parent=1 // loop_footer_branch
      %33 = sbr.rel target = $region3
    $region8: #{transformer_classifier.1} parent=1 // loop_exit
      _
    %4378 = vsyncpa [#allocation3], 1
    %s4379 = scalar_lea.sflag [#allocation3], 1
    %4380 = vsyncpa %s4379, 1
    %4381 = vsyncpa [#allocation6], 1
    %4382 = vsyncpa [#allocation9], 1
    %4383 = vsyncpa [#allocation4], 1
    %s4384 = scalar_lea.sflag [#allocation4], 1
    %4385 = vsyncpa %s4384, 1

</llo_original>
